<compile_context>
chip_gen: v7x
topology: tpu7x:2x2x1
jax: 0.10.0
libtpu: 0.0.40
codegen_flags: <defaults>
</compile_context>

<pallas_src>
import numpy as np
import jax
import jax.numpy as jnp
from jax.experimental import pallas as pl
from jax.experimental.pallas import tpu as pltpu  # noqa: F401  (TPU backend)


# ----------------------------------------------------------------------------
# Fused whole-encoder kernel (factory closes over the static shapes)
# ----------------------------------------------------------------------------
def _make_encoder_kernel(B, T, V, Kt, channels):
    BT = B * T
    n_blocks = len(channels) - 1
    pad = Kt // 2
    inv_n = 1.0 / (BT * V)

    def kernel(*refs):
        x_ref, o_ref = refs[0], refs[-1]
        wrefs = refs[1:-1]                         # 4 refs per block

        h = x_ref[...]                             # (BT, V*C0), (b,t | v,c)

        for blk in range(n_blocks):                # static unroll over blocks
            wsg_ref, wt_ref, p_ref, pv_ref = wrefs[4 * blk:4 * blk + 4]
            Co = channels[blk + 1]
            VCo = V * Co
            pv = pv_ref[...]                       # (4, V*Co)
            b_s, b_t, gamma, beta = pv[0:1], pv[1:2], pv[2:3], pv[3:4]

            # ---- graph conv + 1x1 spatial conv (fused) + ReLU --------------
            #   y2 = relu( h @ kron(A^T, Ws) + bias_s )
            y2 = jnp.dot(h, wsg_ref[...], preferred_element_type=jnp.float32)
            y2 = jnp.maximum(y2 + b_s, 0.0)        # (BT, V*Co)

            # ---- temporal (Kt,1) conv, 'same' zero pad along T -------------
            #   im2col + one (BT, Kt*V*Co) @ (Kt*V*Co, V*Co) matmul
            y2r = y2.reshape(B, T, VCo)
            z = jnp.zeros((B, pad, VCo), jnp.float32)
            y2p = jnp.concatenate([z, y2r, z], axis=1)        # (B, T+2p, VCo)
            cols = jnp.concatenate(
                [y2p[:, k:k + T, :] for k in range(Kt)], axis=-1)
            y3 = jnp.dot(cols.reshape(BT, Kt * VCo), wt_ref[...],
                         preferred_element_type=jnp.float32) + b_t

            # ---- BatchNorm2d (training-mode batch stats, eps=1e-5) + ReLU --
            # per-channel reduce over (B,T,V) / broadcast over V done with the
            # fold matrix P = kron(1_{VxV}, I_Co)  (MXU; no lane reshapes)
            P = p_ref[...]
            mean = jnp.dot(jnp.sum(y3, axis=0, keepdims=True), P,
                           preferred_element_type=jnp.float32) * inv_n
            cen = y3 - mean
            var = jnp.dot(jnp.sum(cen * cen, axis=0, keepdims=True), P,
                          preferred_element_type=jnp.float32) * inv_n
            scale = gamma * jax.lax.rsqrt(var + 1e-5)
            h = jnp.maximum(cen * scale + beta, 0.0)          # (BT, V*Co)

        o_ref[...] = h                             # lane-dense (BT, V*C_last)

    return kernel


# ----------------------------------------------------------------------------
# Wrapper: host-side operator layout prep + single pallas_call
# ----------------------------------------------------------------------------
def stgcn_encoder(x, A, params):
    """x: (B, T, 2*V) -> (B, T, V * C_last)."""
    B, T, D = x.shape
    V = D // 2
    BT = B * T
    channels = [2] + [ws.shape[1] for (ws, _, _, _, _, _) in params]
    Kt = params[0][2].shape[0]
    C_last = channels[-1]

    A32 = A.astype(jnp.float32)
    eyeV = jnp.eye(V, dtype=jnp.float32)

    args = [x.astype(jnp.float32).reshape(BT, V * channels[0])]
    for (ws, bs, wt, bt, gamma, beta) in params:
        Co = ws.shape[1]
        ws32, wt32 = ws.astype(jnp.float32), wt.astype(jnp.float32)
        # fused graph-conv + 1x1-conv operator on the (v, c) axis
        wsg = jnp.kron(A32.T, ws32)                               # (V*Ci, V*Co)
        # temporal im2col operator (block-diagonal across v)
        wtb = jnp.concatenate([jnp.kron(eyeV, wt32[k]) for k in range(Kt)],
                              axis=0)                             # (Kt*VCo, VCo)
        # BN channel fold/broadcast matrix
        Pm = jnp.kron(jnp.ones((V, V), jnp.float32),
                      jnp.eye(Co, dtype=jnp.float32))             # (VCo, VCo)
        # per-block vectors tiled across V (channel index minor)
        tile = lambda v: jnp.tile(v.astype(jnp.float32).reshape(1, Co), (1, V))
        pv = jnp.concatenate([tile(bs), tile(bt), tile(gamma), tile(beta)],
                             axis=0)                              # (4, V*Co)
        args += [wsg, wtb, Pm, pv]

    kernel = _make_encoder_kernel(B, T, V, Kt, channels)
    out = pl.pallas_call(
        kernel,
        out_shape=jax.ShapeDtypeStruct((BT, V * C_last), jnp.float32),
    )(*args)
    return out.reshape(B, T, V * C_last)


# ----------------------------------------------------------------------------
# Pure-JAX reference (mirrors the PyTorch forward) for correctness check
# ----------------------------------------------------------------------------
def reference_forward(x, A, params):
    hp = jax.lax.Precision.HIGHEST
    B, T, D = x.shape
    V = D // 2
    h = x.reshape(B, T, V, 2)
    for (ws, bs, wt, bt, gamma, beta) in params:
        y1 = jnp.einsum('vw,btwc->btvc', A, h, precision=hp)
        y2 = jax.nn.relu(
            jnp.einsum('btvc,co->btvo', y1, ws, precision=hp)
            + bs.reshape(1, 1, 1, -1))
        Kt = wt.shape[0]
        pad = Kt // 2
        y2p = jnp.pad(y2, ((0, 0), (pad, pad), (0, 0), (0, 0)))
        acc = sum(jnp.einsum('btvc,co->btvo', y2p[:, k:k + T], wt[k],
                             precision=hp) for k in range(Kt))
        acc = acc + bt.reshape(1, 1, 1, -1)
        mean = acc.mean(axis=(0, 1, 2), keepdims=True)
        var = ((acc - mean) ** 2).mean(axis=(0, 1, 2), keepdims=True)
        h = jax.nn.relu((acc - mean) * jax.lax.rsqrt(var + 1e-5)
                        * gamma.reshape(1, 1, 1, -1)
                        + beta.reshape(1, 1, 1, -1))
    return h.reshape(B, T, -1)


# ----------------------------------------------------------------------------
if __name__ == "__main__":
    key = jax.random.PRNGKey(0)

    # Small shapes consistent with the module's forward.
    B, T, V, Kt = 2, 8, 6, 9
    D = 2 * V                               # in_channels = 2 after view/permute
    hidden = [8, 16, 32]

    # Deterministic normalized adjacency: ring graph + self-loops, row-normed.
    idx = jnp.arange(V)
    A = (jnp.eye(V, dtype=jnp.float32)
         + jnp.eye(V, dtype=jnp.float32)[(idx + 1) % V]
         + jnp.eye(V, dtype=jnp.float32)[(idx - 1) % V])
    A = A / A.sum(axis=1, keepdims=True)

    # Deterministic parameter init (shapes match STGCNBlock, already in the
    # kernel-friendly layout: ws = conv_spatial.weight[:, :, 0, 0].T,
    # wt[k, ci, co] = conv_temporal.weight[co, ci, k, 0]).
    params = []
    c_in = 2
    for c_out in hidden:
        key, k1, k2, k3, k4, k5, k6 = jax.random.split(key, 7)
        ws = 0.2 * jax.random.normal(k1, (c_in, c_out), jnp.float32)
        bs = 0.1 * jax.random.normal(k2, (1, c_out), jnp.float32)
        wt = 0.1 * jax.random.normal(k3, (Kt, c_out, c_out), jnp.float32)
        bt = 0.1 * jax.random.normal(k4, (1, c_out), jnp.float32)
        gamma = 1.0 + 0.1 * jax.random.normal(k5, (1, c_out), jnp.float32)
        beta = 0.1 * jax.random.normal(k6, (1, c_out), jnp.float32)
        params.append((ws, bs, wt, bt, gamma, beta))
        c_in = c_out

    key, kx = jax.random.split(key)
    x = jax.random.normal(kx, (B, T, D), jnp.float32)

    out = jax.jit(stgcn_encoder)(x, A, params)
    out = jax.block_until_ready(out)

    assert out.shape == (B, T, V * hidden[-1]), out.shape
    ref = reference_forward(x, A, params)
    np.testing.assert_allclose(np.asarray(out), np.asarray(ref),
                               rtol=2e-3, atol=2e-3)
    print("KERNEL_OK")
</pallas_src>

<mosaic_0001>
module attributes {stable_mosaic.version = 11 : i64} {
  func.func @kernel(%arg0: memref<16x12xf32, #tpu.memory_space<vmem>>, %arg1: memref<12x48xf32, #tpu.memory_space<vmem>>, %arg2: memref<432x48xf32, #tpu.memory_space<vmem>>, %arg3: memref<48x48xf32, #tpu.memory_space<vmem>>, %arg4: memref<4x48xf32, #tpu.memory_space<vmem>>, %arg5: memref<48x96xf32, #tpu.memory_space<vmem>>, %arg6: memref<864x96xf32, #tpu.memory_space<vmem>>, %arg7: memref<96x96xf32, #tpu.memory_space<vmem>>, %arg8: memref<4x96xf32, #tpu.memory_space<vmem>>, %arg9: memref<96x192xf32, #tpu.memory_space<vmem>>, %arg10: memref<1728x192xf32, #tpu.memory_space<vmem>>, %arg11: memref<192x192xf32, #tpu.memory_space<vmem>>, %arg12: memref<4x192xf32, #tpu.memory_space<vmem>>, %arg13: memref<16x192xf32, #tpu.memory_space<vmem>>) attributes {dimension_semantics = [], scalar_prefetch = 0 : i64, scratch_operands = 0 : i64, tpu.core_type = #tpu.core_type<tc>} {
    %c0 = arith.constant 0 : index
    %c0_0 = arith.constant 0 : index
    %0 = vector.load %arg0[%c0, %c0_0] : memref<16x12xf32, #tpu.memory_space<vmem>>, vector<16x12xf32>
    %c0_1 = arith.constant 0 : index
    %c0_2 = arith.constant 0 : index
    %1 = vector.load %arg4[%c0_1, %c0_2] : memref<4x48xf32, #tpu.memory_space<vmem>>, vector<4x48xf32>
    %2 = vector.extract_strided_slice %1 {offsets = [0, 0], sizes = [1, 48], strides = [1, 1]} : vector<4x48xf32> to vector<1x48xf32>
    %3 = vector.extract_strided_slice %1 {offsets = [1, 0], sizes = [1, 48], strides = [1, 1]} : vector<4x48xf32> to vector<1x48xf32>
    %4 = vector.extract_strided_slice %1 {offsets = [2, 0], sizes = [1, 48], strides = [1, 1]} : vector<4x48xf32> to vector<1x48xf32>
    %5 = vector.extract_strided_slice %1 {offsets = [3, 0], sizes = [1, 48], strides = [1, 1]} : vector<4x48xf32> to vector<1x48xf32>
    %c0_3 = arith.constant 0 : index
    %c0_4 = arith.constant 0 : index
    %6 = vector.load %arg1[%c0_3, %c0_4] : memref<12x48xf32, #tpu.memory_space<vmem>>, vector<12x48xf32>
    %cst = arith.constant dense<0.000000e+00> : vector<16x48xf32>
    %7 = tpu.matmul %0, %6, %cst {dimension_numbers = #tpu.dot_dimension_numbers<[1], [0], [0], [1], [0, 0, 1, 1], [], []>} : vector<16x12xf32>, vector<12x48xf32>, vector<16x48xf32> -> vector<16x48xf32>
    %8 = vector.broadcast %2 : vector<1x48xf32> to vector<16x48xf32>
    %9 = arith.addf %7, %8 : vector<16x48xf32>
    %cst_5 = arith.constant 0.000000e+00 : f32
    %10 = vector.broadcast %cst_5 : f32 to vector<16x48xf32>
    %11 = arith.maximumf %9, %10 : vector<16x48xf32>
    %12 = vector.shape_cast %11 : vector<16x48xf32> to vector<2x8x48xf32>
    %cst_6 = arith.constant 0.000000e+00 : f32
    %13 = vector.broadcast %cst_6 : f32 to vector<2x4x48xf32>
    %14 = tpu.concatenate %13, %12, %13 in 1 : vector<2x4x48xf32>, vector<2x8x48xf32>, vector<2x4x48xf32> -> vector<2x16x48xf32>
    %15 = vector.extract_strided_slice %14 {offsets = [0, 0, 0], sizes = [2, 8, 48], strides = [1, 1, 1]} : vector<2x16x48xf32> to vector<2x8x48xf32>
    %16 = vector.extract_strided_slice %14 {offsets = [0, 1, 0], sizes = [2, 8, 48], strides = [1, 1, 1]} : vector<2x16x48xf32> to vector<2x8x48xf32>
    %17 = vector.extract_strided_slice %14 {offsets = [0, 2, 0], sizes = [2, 8, 48], strides = [1, 1, 1]} : vector<2x16x48xf32> to vector<2x8x48xf32>
    %18 = vector.extract_strided_slice %14 {offsets = [0, 3, 0], sizes = [2, 8, 48], strides = [1, 1, 1]} : vector<2x16x48xf32> to vector<2x8x48xf32>
    %19 = vector.extract_strided_slice %14 {offsets = [0, 4, 0], sizes = [2, 8, 48], strides = [1, 1, 1]} : vector<2x16x48xf32> to vector<2x8x48xf32>
    %20 = vector.extract_strided_slice %14 {offsets = [0, 5, 0], sizes = [2, 8, 48], strides = [1, 1, 1]} : vector<2x16x48xf32> to vector<2x8x48xf32>
    %21 = vector.extract_strided_slice %14 {offsets = [0, 6, 0], sizes = [2, 8, 48], strides = [1, 1, 1]} : vector<2x16x48xf32> to vector<2x8x48xf32>
    %22 = vector.extract_strided_slice %14 {offsets = [0, 7, 0], sizes = [2, 8, 48], strides = [1, 1, 1]} : vector<2x16x48xf32> to vector<2x8x48xf32>
    %23 = vector.extract_strided_slice %14 {offsets = [0, 8, 0], sizes = [2, 8, 48], strides = [1, 1, 1]} : vector<2x16x48xf32> to vector<2x8x48xf32>
    %24 = tpu.concatenate %15, %16, %17, %18, %19, %20, %21, %22, %23 in 2 : vector<2x8x48xf32>, vector<2x8x48xf32>, vector<2x8x48xf32>, vector<2x8x48xf32>, vector<2x8x48xf32>, vector<2x8x48xf32>, vector<2x8x48xf32>, vector<2x8x48xf32>, vector<2x8x48xf32> -> vector<2x8x432xf32>
    %25 = vector.shape_cast %24 : vector<2x8x432xf32> to vector<16x432xf32>
    %c0_7 = arith.constant 0 : index
    %c0_8 = arith.constant 0 : index
    %26 = vector.load %arg2[%c0_7, %c0_8] : memref<432x48xf32, #tpu.memory_space<vmem>>, vector<432x48xf32>
    %cst_9 = arith.constant dense<0.000000e+00> : vector<16x48xf32>
    %27 = tpu.matmul %25, %26, %cst_9 {dimension_numbers = #tpu.dot_dimension_numbers<[1], [0], [0], [1], [0, 0, 1, 1], [], []>} : vector<16x432xf32>, vector<432x48xf32>, vector<16x48xf32> -> vector<16x48xf32>
    %28 = vector.broadcast %3 : vector<1x48xf32> to vector<16x48xf32>
    %29 = arith.addf %27, %28 : vector<16x48xf32>
    %c0_10 = arith.constant 0 : index
    %c0_11 = arith.constant 0 : index
    %30 = vector.load %arg3[%c0_10, %c0_11] : memref<48x48xf32, #tpu.memory_space<vmem>>, vector<48x48xf32>
    %cst_12 = arith.constant dense<0.000000e+00> : vector<48xf32>
    %31 = vector.multi_reduction <add>, %29, %cst_12 [0] : vector<16x48xf32> to vector<48xf32>
    %32 = vector.shape_cast %31 : vector<48xf32> to vector<1x48xf32>
    %cst_13 = arith.constant dense<0.000000e+00> : vector<1x48xf32>
    %33 = tpu.matmul %32, %30, %cst_13 {dimension_numbers = #tpu.dot_dimension_numbers<[1], [0], [0], [1], [0, 0, 1, 1], [], []>} : vector<1x48xf32>, vector<48x48xf32>, vector<1x48xf32> -> vector<1x48xf32>
    %cst_14 = arith.constant 0.010416667 : f32
    %34 = vector.broadcast %cst_14 : f32 to vector<1x48xf32>
    %35 = arith.mulf %33, %34 : vector<1x48xf32>
    %36 = vector.broadcast %35 : vector<1x48xf32> to vector<16x48xf32>
    %37 = arith.subf %29, %36 : vector<16x48xf32>
    %38 = arith.mulf %37, %37 : vector<16x48xf32>
    %cst_15 = arith.constant dense<0.000000e+00> : vector<48xf32>
    %39 = vector.multi_reduction <add>, %38, %cst_15 [0] : vector<16x48xf32> to vector<48xf32>
    %40 = vector.shape_cast %39 : vector<48xf32> to vector<1x48xf32>
    %cst_16 = arith.constant dense<0.000000e+00> : vector<1x48xf32>
    %41 = tpu.matmul %40, %30, %cst_16 {dimension_numbers = #tpu.dot_dimension_numbers<[1], [0], [0], [1], [0, 0, 1, 1], [], []>} : vector<1x48xf32>, vector<48x48xf32>, vector<1x48xf32> -> vector<1x48xf32>
    %cst_17 = arith.constant 0.010416667 : f32
    %42 = vector.broadcast %cst_17 : f32 to vector<1x48xf32>
    %43 = arith.mulf %41, %42 : vector<1x48xf32>
    %cst_18 = arith.constant 9.99999974E-6 : f32
    %44 = vector.broadcast %cst_18 : f32 to vector<1x48xf32>
    %45 = arith.addf %43, %44 : vector<1x48xf32>
    %46 = math.rsqrt %45 : vector<1x48xf32>
    %47 = arith.mulf %4, %46 : vector<1x48xf32>
    %48 = vector.broadcast %47 : vector<1x48xf32> to vector<16x48xf32>
    %49 = arith.mulf %37, %48 : vector<16x48xf32>
    %50 = vector.broadcast %5 : vector<1x48xf32> to vector<16x48xf32>
    %51 = arith.addf %49, %50 : vector<16x48xf32>
    %cst_19 = arith.constant 0.000000e+00 : f32
    %52 = vector.broadcast %cst_19 : f32 to vector<16x48xf32>
    %53 = arith.maximumf %51, %52 : vector<16x48xf32>
    %c0_20 = arith.constant 0 : index
    %c0_21 = arith.constant 0 : index
    %54 = vector.load %arg8[%c0_20, %c0_21] : memref<4x96xf32, #tpu.memory_space<vmem>>, vector<4x96xf32>
    %55 = vector.extract_strided_slice %54 {offsets = [0, 0], sizes = [1, 96], strides = [1, 1]} : vector<4x96xf32> to vector<1x96xf32>
    %56 = vector.extract_strided_slice %54 {offsets = [1, 0], sizes = [1, 96], strides = [1, 1]} : vector<4x96xf32> to vector<1x96xf32>
    %57 = vector.extract_strided_slice %54 {offsets = [2, 0], sizes = [1, 96], strides = [1, 1]} : vector<4x96xf32> to vector<1x96xf32>
    %58 = vector.extract_strided_slice %54 {offsets = [3, 0], sizes = [1, 96], strides = [1, 1]} : vector<4x96xf32> to vector<1x96xf32>
    %c0_22 = arith.constant 0 : index
    %c0_23 = arith.constant 0 : index
    %59 = vector.load %arg5[%c0_22, %c0_23] : memref<48x96xf32, #tpu.memory_space<vmem>>, vector<48x96xf32>
    %cst_24 = arith.constant dense<0.000000e+00> : vector<16x96xf32>
    %60 = tpu.matmul %53, %59, %cst_24 {dimension_numbers = #tpu.dot_dimension_numbers<[1], [0], [0], [1], [0, 0, 1, 1], [], []>} : vector<16x48xf32>, vector<48x96xf32>, vector<16x96xf32> -> vector<16x96xf32>
    %61 = vector.broadcast %55 : vector<1x96xf32> to vector<16x96xf32>
    %62 = arith.addf %60, %61 : vector<16x96xf32>
    %cst_25 = arith.constant 0.000000e+00 : f32
    %63 = vector.broadcast %cst_25 : f32 to vector<16x96xf32>
    %64 = arith.maximumf %62, %63 : vector<16x96xf32>
    %65 = vector.shape_cast %64 : vector<16x96xf32> to vector<2x8x96xf32>
    %cst_26 = arith.constant 0.000000e+00 : f32
    %66 = vector.broadcast %cst_26 : f32 to vector<2x4x96xf32>
    %67 = tpu.concatenate %66, %65, %66 in 1 : vector<2x4x96xf32>, vector<2x8x96xf32>, vector<2x4x96xf32> -> vector<2x16x96xf32>
    %68 = vector.extract_strided_slice %67 {offsets = [0, 0, 0], sizes = [2, 8, 96], strides = [1, 1, 1]} : vector<2x16x96xf32> to vector<2x8x96xf32>
    %69 = vector.extract_strided_slice %67 {offsets = [0, 1, 0], sizes = [2, 8, 96], strides = [1, 1, 1]} : vector<2x16x96xf32> to vector<2x8x96xf32>
    %70 = vector.extract_strided_slice %67 {offsets = [0, 2, 0], sizes = [2, 8, 96], strides = [1, 1, 1]} : vector<2x16x96xf32> to vector<2x8x96xf32>
    %71 = vector.extract_strided_slice %67 {offsets = [0, 3, 0], sizes = [2, 8, 96], strides = [1, 1, 1]} : vector<2x16x96xf32> to vector<2x8x96xf32>
    %72 = vector.extract_strided_slice %67 {offsets = [0, 4, 0], sizes = [2, 8, 96], strides = [1, 1, 1]} : vector<2x16x96xf32> to vector<2x8x96xf32>
    %73 = vector.extract_strided_slice %67 {offsets = [0, 5, 0], sizes = [2, 8, 96], strides = [1, 1, 1]} : vector<2x16x96xf32> to vector<2x8x96xf32>
    %74 = vector.extract_strided_slice %67 {offsets = [0, 6, 0], sizes = [2, 8, 96], strides = [1, 1, 1]} : vector<2x16x96xf32> to vector<2x8x96xf32>
    %75 = vector.extract_strided_slice %67 {offsets = [0, 7, 0], sizes = [2, 8, 96], strides = [1, 1, 1]} : vector<2x16x96xf32> to vector<2x8x96xf32>
    %76 = vector.extract_strided_slice %67 {offsets = [0, 8, 0], sizes = [2, 8, 96], strides = [1, 1, 1]} : vector<2x16x96xf32> to vector<2x8x96xf32>
    %77 = tpu.concatenate %68, %69, %70, %71, %72, %73, %74, %75, %76 in 2 : vector<2x8x96xf32>, vector<2x8x96xf32>, vector<2x8x96xf32>, vector<2x8x96xf32>, vector<2x8x96xf32>, vector<2x8x96xf32>, vector<2x8x96xf32>, vector<2x8x96xf32>, vector<2x8x96xf32> -> vector<2x8x864xf32>
    %78 = vector.shape_cast %77 : vector<2x8x864xf32> to vector<16x864xf32>
    %c0_27 = arith.constant 0 : index
    %c0_28 = arith.constant 0 : index
    %79 = vector.load %arg6[%c0_27, %c0_28] : memref<864x96xf32, #tpu.memory_space<vmem>>, vector<864x96xf32>
    %cst_29 = arith.constant dense<0.000000e+00> : vector<16x96xf32>
    %80 = tpu.matmul %78, %79, %cst_29 {dimension_numbers = #tpu.dot_dimension_numbers<[1], [0], [0], [1], [0, 0, 1, 1], [], []>} : vector<16x864xf32>, vector<864x96xf32>, vector<16x96xf32> -> vector<16x96xf32>
    %81 = vector.broadcast %56 : vector<1x96xf32> to vector<16x96xf32>
    %82 = arith.addf %80, %81 : vector<16x96xf32>
    %c0_30 = arith.constant 0 : index
    %c0_31 = arith.constant 0 : index
    %83 = vector.load %arg7[%c0_30, %c0_31] : memref<96x96xf32, #tpu.memory_space<vmem>>, vector<96x96xf32>
    %cst_32 = arith.constant dense<0.000000e+00> : vector<96xf32>
    %84 = vector.multi_reduction <add>, %82, %cst_32 [0] : vector<16x96xf32> to vector<96xf32>
    %85 = vector.shape_cast %84 : vector<96xf32> to vector<1x96xf32>
    %cst_33 = arith.constant dense<0.000000e+00> : vector<1x96xf32>
    %86 = tpu.matmul %85, %83, %cst_33 {dimension_numbers = #tpu.dot_dimension_numbers<[1], [0], [0], [1], [0, 0, 1, 1], [], []>} : vector<1x96xf32>, vector<96x96xf32>, vector<1x96xf32> -> vector<1x96xf32>
    %cst_34 = arith.constant 0.010416667 : f32
    %87 = vector.broadcast %cst_34 : f32 to vector<1x96xf32>
    %88 = arith.mulf %86, %87 : vector<1x96xf32>
    %89 = vector.broadcast %88 : vector<1x96xf32> to vector<16x96xf32>
    %90 = arith.subf %82, %89 : vector<16x96xf32>
    %91 = arith.mulf %90, %90 : vector<16x96xf32>
    %cst_35 = arith.constant dense<0.000000e+00> : vector<96xf32>
    %92 = vector.multi_reduction <add>, %91, %cst_35 [0] : vector<16x96xf32> to vector<96xf32>
    %93 = vector.shape_cast %92 : vector<96xf32> to vector<1x96xf32>
    %cst_36 = arith.constant dense<0.000000e+00> : vector<1x96xf32>
    %94 = tpu.matmul %93, %83, %cst_36 {dimension_numbers = #tpu.dot_dimension_numbers<[1], [0], [0], [1], [0, 0, 1, 1], [], []>} : vector<1x96xf32>, vector<96x96xf32>, vector<1x96xf32> -> vector<1x96xf32>
    %cst_37 = arith.constant 0.010416667 : f32
    %95 = vector.broadcast %cst_37 : f32 to vector<1x96xf32>
    %96 = arith.mulf %94, %95 : vector<1x96xf32>
    %cst_38 = arith.constant 9.99999974E-6 : f32
    %97 = vector.broadcast %cst_38 : f32 to vector<1x96xf32>
    %98 = arith.addf %96, %97 : vector<1x96xf32>
    %99 = math.rsqrt %98 : vector<1x96xf32>
    %100 = arith.mulf %57, %99 : vector<1x96xf32>
    %101 = vector.broadcast %100 : vector<1x96xf32> to vector<16x96xf32>
    %102 = arith.mulf %90, %101 : vector<16x96xf32>
    %103 = vector.broadcast %58 : vector<1x96xf32> to vector<16x96xf32>
    %104 = arith.addf %102, %103 : vector<16x96xf32>
    %cst_39 = arith.constant 0.000000e+00 : f32
    %105 = vector.broadcast %cst_39 : f32 to vector<16x96xf32>
    %106 = arith.maximumf %104, %105 : vector<16x96xf32>
    %c0_40 = arith.constant 0 : index
    %c0_41 = arith.constant 0 : index
    %107 = vector.load %arg12[%c0_40, %c0_41] : memref<4x192xf32, #tpu.memory_space<vmem>>, vector<4x192xf32>
    %108 = vector.extract_strided_slice %107 {offsets = [0, 0], sizes = [1, 192], strides = [1, 1]} : vector<4x192xf32> to vector<1x192xf32>
    %109 = vector.extract_strided_slice %107 {offsets = [1, 0], sizes = [1, 192], strides = [1, 1]} : vector<4x192xf32> to vector<1x192xf32>
    %110 = vector.extract_strided_slice %107 {offsets = [2, 0], sizes = [1, 192], strides = [1, 1]} : vector<4x192xf32> to vector<1x192xf32>
    %111 = vector.extract_strided_slice %107 {offsets = [3, 0], sizes = [1, 192], strides = [1, 1]} : vector<4x192xf32> to vector<1x192xf32>
    %c0_42 = arith.constant 0 : index
    %c0_43 = arith.constant 0 : index
    %112 = vector.load %arg9[%c0_42, %c0_43] : memref<96x192xf32, #tpu.memory_space<vmem>>, vector<96x192xf32>
    %cst_44 = arith.constant dense<0.000000e+00> : vector<16x192xf32>
    %113 = tpu.matmul %106, %112, %cst_44 {dimension_numbers = #tpu.dot_dimension_numbers<[1], [0], [0], [1], [0, 0, 1, 1], [], []>} : vector<16x96xf32>, vector<96x192xf32>, vector<16x192xf32> -> vector<16x192xf32>
    %114 = vector.broadcast %108 : vector<1x192xf32> to vector<16x192xf32>
    %115 = arith.addf %113, %114 : vector<16x192xf32>
    %cst_45 = arith.constant 0.000000e+00 : f32
    %116 = vector.broadcast %cst_45 : f32 to vector<16x192xf32>
    %117 = arith.maximumf %115, %116 : vector<16x192xf32>
    %118 = vector.shape_cast %117 : vector<16x192xf32> to vector<2x8x192xf32>
    %cst_46 = arith.constant 0.000000e+00 : f32
    %119 = vector.broadcast %cst_46 : f32 to vector<2x4x192xf32>
    %120 = tpu.concatenate %119, %118, %119 in 1 : vector<2x4x192xf32>, vector<2x8x192xf32>, vector<2x4x192xf32> -> vector<2x16x192xf32>
    %121 = vector.extract_strided_slice %120 {offsets = [0, 0, 0], sizes = [2, 8, 192], strides = [1, 1, 1]} : vector<2x16x192xf32> to vector<2x8x192xf32>
    %122 = vector.extract_strided_slice %120 {offsets = [0, 1, 0], sizes = [2, 8, 192], strides = [1, 1, 1]} : vector<2x16x192xf32> to vector<2x8x192xf32>
    %123 = vector.extract_strided_slice %120 {offsets = [0, 2, 0], sizes = [2, 8, 192], strides = [1, 1, 1]} : vector<2x16x192xf32> to vector<2x8x192xf32>
    %124 = vector.extract_strided_slice %120 {offsets = [0, 3, 0], sizes = [2, 8, 192], strides = [1, 1, 1]} : vector<2x16x192xf32> to vector<2x8x192xf32>
    %125 = vector.extract_strided_slice %120 {offsets = [0, 4, 0], sizes = [2, 8, 192], strides = [1, 1, 1]} : vector<2x16x192xf32> to vector<2x8x192xf32>
    %126 = vector.extract_strided_slice %120 {offsets = [0, 5, 0], sizes = [2, 8, 192], strides = [1, 1, 1]} : vector<2x16x192xf32> to vector<2x8x192xf32>
    %127 = vector.extract_strided_slice %120 {offsets = [0, 6, 0], sizes = [2, 8, 192], strides = [1, 1, 1]} : vector<2x16x192xf32> to vector<2x8x192xf32>
    %128 = vector.extract_strided_slice %120 {offsets = [0, 7, 0], sizes = [2, 8, 192], strides = [1, 1, 1]} : vector<2x16x192xf32> to vector<2x8x192xf32>
    %129 = vector.extract_strided_slice %120 {offsets = [0, 8, 0], sizes = [2, 8, 192], strides = [1, 1, 1]} : vector<2x16x192xf32> to vector<2x8x192xf32>
    %130 = tpu.concatenate %121, %122, %123, %124, %125, %126, %127, %128, %129 in 2 : vector<2x8x192xf32>, vector<2x8x192xf32>, vector<2x8x192xf32>, vector<2x8x192xf32>, vector<2x8x192xf32>, vector<2x8x192xf32>, vector<2x8x192xf32>, vector<2x8x192xf32>, vector<2x8x192xf32> -> vector<2x8x1728xf32>
    %131 = vector.shape_cast %130 : vector<2x8x1728xf32> to vector<16x1728xf32>
    %c0_47 = arith.constant 0 : index
    %c0_48 = arith.constant 0 : index
    %132 = vector.load %arg10[%c0_47, %c0_48] : memref<1728x192xf32, #tpu.memory_space<vmem>>, vector<1728x192xf32>
    %cst_49 = arith.constant dense<0.000000e+00> : vector<16x192xf32>
    %133 = tpu.matmul %131, %132, %cst_49 {dimension_numbers = #tpu.dot_dimension_numbers<[1], [0], [0], [1], [0, 0, 1, 1], [], []>} : vector<16x1728xf32>, vector<1728x192xf32>, vector<16x192xf32> -> vector<16x192xf32>
    %134 = vector.broadcast %109 : vector<1x192xf32> to vector<16x192xf32>
    %135 = arith.addf %133, %134 : vector<16x192xf32>
    %c0_50 = arith.constant 0 : index
    %c0_51 = arith.constant 0 : index
    %136 = vector.load %arg11[%c0_50, %c0_51] : memref<192x192xf32, #tpu.memory_space<vmem>>, vector<192x192xf32>
    %cst_52 = arith.constant dense<0.000000e+00> : vector<192xf32>
    %137 = vector.multi_reduction <add>, %135, %cst_52 [0] : vector<16x192xf32> to vector<192xf32>
    %138 = vector.shape_cast %137 : vector<192xf32> to vector<1x192xf32>
    %cst_53 = arith.constant dense<0.000000e+00> : vector<1x192xf32>
    %139 = tpu.matmul %138, %136, %cst_53 {dimension_numbers = #tpu.dot_dimension_numbers<[1], [0], [0], [1], [0, 0, 1, 1], [], []>} : vector<1x192xf32>, vector<192x192xf32>, vector<1x192xf32> -> vector<1x192xf32>
    %cst_54 = arith.constant 0.010416667 : f32
    %140 = vector.broadcast %cst_54 : f32 to vector<1x192xf32>
    %141 = arith.mulf %139, %140 : vector<1x192xf32>
    %142 = vector.broadcast %141 : vector<1x192xf32> to vector<16x192xf32>
    %143 = arith.subf %135, %142 : vector<16x192xf32>
    %144 = arith.mulf %143, %143 : vector<16x192xf32>
    %cst_55 = arith.constant dense<0.000000e+00> : vector<192xf32>
    %145 = vector.multi_reduction <add>, %144, %cst_55 [0] : vector<16x192xf32> to vector<192xf32>
    %146 = vector.shape_cast %145 : vector<192xf32> to vector<1x192xf32>
    %cst_56 = arith.constant dense<0.000000e+00> : vector<1x192xf32>
    %147 = tpu.matmul %146, %136, %cst_56 {dimension_numbers = #tpu.dot_dimension_numbers<[1], [0], [0], [1], [0, 0, 1, 1], [], []>} : vector<1x192xf32>, vector<192x192xf32>, vector<1x192xf32> -> vector<1x192xf32>
    %cst_57 = arith.constant 0.010416667 : f32
    %148 = vector.broadcast %cst_57 : f32 to vector<1x192xf32>
    %149 = arith.mulf %147, %148 : vector<1x192xf32>
    %cst_58 = arith.constant 9.99999974E-6 : f32
    %150 = vector.broadcast %cst_58 : f32 to vector<1x192xf32>
    %151 = arith.addf %149, %150 : vector<1x192xf32>
    %152 = math.rsqrt %151 : vector<1x192xf32>
    %153 = arith.mulf %110, %152 : vector<1x192xf32>
    %154 = vector.broadcast %153 : vector<1x192xf32> to vector<16x192xf32>
    %155 = arith.mulf %143, %154 : vector<16x192xf32>
    %156 = vector.broadcast %111 : vector<1x192xf32> to vector<16x192xf32>
    %157 = arith.addf %155, %156 : vector<16x192xf32>
    %cst_59 = arith.constant 0.000000e+00 : f32
    %158 = vector.broadcast %cst_59 : f32 to vector<16x192xf32>
    %159 = arith.maximumf %157, %158 : vector<16x192xf32>
    %c0_60 = arith.constant 0 : index
    %c0_61 = arith.constant 0 : index
    %160 = vector.load %arg13[%c0_60, %c0_61] : memref<16x192xf32, #tpu.memory_space<vmem>>, vector<16x192xf32>
    tpu.vector_store %arg13[%c0_60, %c0_61], %159 {strides = array<i32>} : memref<16x192xf32, #tpu.memory_space<vmem>>, vector<16x192xf32>,
    return
  }
}

</mosaic_0001>

<llo_original>
// kernel: stgcn_encoder.1
$region0: #{stgcn_encoder.1}
  #allocation0 [shape = 'u32[]', space=smem, size = 0x4, offset = 0x4, fixed_abs, tag = 'smem constant byte address 0x4 - core index']
  #allocation1 [shape = 'u32[144,128]{1,0:T(1,128)}', space=vmem, size = 0x12000, scoped, tag = 'internal scratch']
  %s0 = inlined_call_operand.vmem [shape: f32[16,12], index: 0, kind: input, shape index: {}]
  %s1 = inlined_call_operand.vmem [shape: f32[12,48], index: 1, kind: input, shape index: {}]
  %s2 = inlined_call_operand.vmem [shape: f32[432,48], index: 2, kind: input, shape index: {}]
  %s3 = inlined_call_operand.vmem [shape: f32[48,48], index: 3, kind: input, shape index: {}]
  %s4 = inlined_call_operand.vmem [shape: f32[4,48], index: 4, kind: input, shape index: {}]
  %s5 = inlined_call_operand.vmem [shape: f32[48,96], index: 5, kind: input, shape index: {}]
  %s6 = inlined_call_operand.vmem [shape: f32[864,96], index: 6, kind: input, shape index: {}]
  %s7 = inlined_call_operand.vmem [shape: f32[96,96], index: 7, kind: input, shape index: {}]
  %s8 = inlined_call_operand.vmem [shape: f32[4,96], index: 8, kind: input, shape index: {}]
  %s9 = inlined_call_operand.vmem [shape: f32[96,192], index: 9, kind: input, shape index: {}]
  %s10 = inlined_call_operand.vmem [shape: f32[1728,192], index: 10, kind: input, shape index: {}]
  %s11 = inlined_call_operand.vmem [shape: f32[192,192], index: 11, kind: input, shape index: {}]
  %s12 = inlined_call_operand.vmem [shape: f32[4,192], index: 12, kind: input, shape index: {}]
  %s13 = inlined_call_operand.hbm [shape: f32[16,192], index: 13, kind: output, shape index: {}]
  %s14 = sld [smem:[#allocation0]]
  $region62: #{stgcn_encoder.1} parent=0
    _
  %s16 = ssub.s32 1, %s14
  %s17 = scalar_select 0, %s16, %s14
  $region1: #{stgcn_encoder.1} parent=0
    #allocation2 [shape = 'u8[16384]{0}', space=vmem, size = 0x4000, scoped, tag = 'output window, operand 0, single buffered']
    #allocation3 [shape = 's32[1]{0}', space=sflag, size = 0x4, scoped, tag = 'scoped memory for stgcn_encoder.1']
    %18 = vsyncpa [#allocation3], 0
    // Predicated region
    $region2: #{stgcn_encoder.1} parent=1 // pred_check
      _
    $region3: #{stgcn_encoder.1} parent=1 // pred_check_branch
      %20 = sbr.rel (0) target = $region5
    $region4: #{stgcn_encoder.1} parent=1 // pred_region
      _
    $region5: #{stgcn_encoder.1} parent=1 // pred_fallthru
      _
    // Predicated region
    $region6: #{stgcn_encoder.1} parent=1 // pred_check
      _
    $region7: #{stgcn_encoder.1} parent=1 // pred_check_branch
      %22 = sbr.rel (0) target = $region9
    $region8: #{stgcn_encoder.1} parent=1 // pred_region
      _
    $region9: #{stgcn_encoder.1} parent=1 // pred_fallthru
      _
    // Predicated region
    $region10: #{stgcn_encoder.1} parent=1 // pred_check
      _
    $region11: #{stgcn_encoder.1} parent=1 // pred_check_branch
      %24 = sbr.rel (0) target = $region13
    $region12: #{stgcn_encoder.1} parent=1 // pred_region
      _
    $region13: #{stgcn_encoder.1} parent=1 // pred_fallthru
      _
    // Predicated region
    $region14: #{stgcn_encoder.1} parent=1 // pred_check
      _
    $region15: #{stgcn_encoder.1} parent=1 // pred_check_branch
      %26 = sbr.rel (0) target = $region17
    $region16: #{stgcn_encoder.1} parent=1 // pred_region
      _
    $region17: #{stgcn_encoder.1} parent=1 // pred_fallthru
      _
    // Predicated region
    $region18: #{stgcn_encoder.1} parent=1 // pred_check
      _
    $region19: #{stgcn_encoder.1} parent=1 // pred_check_branch
      %28 = sbr.rel (0) target = $region21
    $region20: #{stgcn_encoder.1} parent=1 // pred_region
      _
    $region21: #{stgcn_encoder.1} parent=1 // pred_fallthru
      _
    // Predicated region
    $region22: #{stgcn_encoder.1} parent=1 // pred_check
      _
    $region23: #{stgcn_encoder.1} parent=1 // pred_check_branch
      %30 = sbr.rel (0) target = $region25
    $region24: #{stgcn_encoder.1} parent=1 // pred_region
      _
    $region25: #{stgcn_encoder.1} parent=1 // pred_fallthru
      _
    // Predicated region
    $region26: #{stgcn_encoder.1} parent=1 // pred_check
      _
    $region27: #{stgcn_encoder.1} parent=1 // pred_check_branch
      %32 = sbr.rel (0) target = $region29
    $region28: #{stgcn_encoder.1} parent=1 // pred_region
      _
    $region29: #{stgcn_encoder.1} parent=1 // pred_fallthru
      _
    // Predicated region
    $region30: #{stgcn_encoder.1} parent=1 // pred_check
      _
    $region31: #{stgcn_encoder.1} parent=1 // pred_check_branch
      %34 = sbr.rel (0) target = $region33
    $region32: #{stgcn_encoder.1} parent=1 // pred_region
      _
    $region33: #{stgcn_encoder.1} parent=1 // pred_fallthru
      _
    // Predicated region
    $region34: #{stgcn_encoder.1} parent=1 // pred_check
      _
    $region35: #{stgcn_encoder.1} parent=1 // pred_check_branch
      %36 = sbr.rel (0) target = $region37
    $region36: #{stgcn_encoder.1} parent=1 // pred_region
      _
    $region37: #{stgcn_encoder.1} parent=1 // pred_fallthru
      _
    // Predicated region
    $region38: #{stgcn_encoder.1} parent=1 // pred_check
      _
    $region39: #{stgcn_encoder.1} parent=1 // pred_check_branch
      %38 = sbr.rel (0) target = $region41
    $region40: #{stgcn_encoder.1} parent=1 // pred_region
      _
    $region41: #{stgcn_encoder.1} parent=1 // pred_fallthru
      _
    // Predicated region
    $region42: #{stgcn_encoder.1} parent=1 // pred_check
      _
    $region43: #{stgcn_encoder.1} parent=1 // pred_check_branch
      %40 = sbr.rel (0) target = $region45
    $region44: #{stgcn_encoder.1} parent=1 // pred_region
      _
    $region45: #{stgcn_encoder.1} parent=1 // pred_fallthru
      _
    // Predicated region
    $region46: #{stgcn_encoder.1} parent=1 // pred_check
      _
    $region47: #{stgcn_encoder.1} parent=1 // pred_check_branch
      %42 = sbr.rel (0) target = $region49
    $region48: #{stgcn_encoder.1} parent=1 // pred_region
      _
    $region49: #{stgcn_encoder.1} parent=1 // pred_fallthru
      _
    // Predicated region
    $region50: #{stgcn_encoder.1} parent=1 // pred_check
      _
    $region51: #{stgcn_encoder.1} parent=1 // pred_check_branch
      %44 = sbr.rel (0) target = $region53
    $region52: #{stgcn_encoder.1} parent=1 // pred_region
      _
    $region53: #{stgcn_encoder.1} parent=1 // pred_fallthru
      _
    %v45 = vld [vmem:[%s0] sm:$0xff]
    %v46 = vld [vmem:[%s0 + $0x8] sm:$0xff]
    %v47 = vld [vmem:[%s4] sm:$0xf]
    %v48 = vld [vmem:[%s1] sm:$0xff]
    %v49 = vld [vmem:[%s1 + $0x8] sm:$0xf]
    %v50 = vlaneseq
    %v51 = vshrl.u32 %v50, 7
    %v52 = vsub.s32 0, %v51
    %v53 = vrot.slane %v47, %v52
    %vm54 = vcmask 97280
    %v56 = vsel %vm54, %v45, 0
    %v59 = vsel %vm54, %v46, 0
    %vm61 = vcmask 1043456
    %v63 = vsel %vm61, %v49, 0
    %65 = vmatprep.subr.mxu0 0.0
    %66 = vmatpush1.msra.mxu0 %v48
    %67 = vmatprep.subr.mxu0 0.0
    %68 = vmatpush1.msra.mxu0 %v63
    %69 = vmatprep.subr.mxu0 0.0
    %70 = vmatpush1.msra.mxu0 0.0
    %71 = vmatprep.subr.mxu0 0.0
    %72 = vmatpush1.msra.mxu0 0.0
    %73 = vmatprep.subr.mxu0 0.0
    %74 = vmatpush1.msra.mxu0 0.0
    %75 = vmatprep.subr.mxu0 0.0
    %76 = vmatpush1.msra.mxu0 0.0
    %77 = vmatprep.subr.mxu0 0.0
    %78 = vmatpush1.msra.mxu0 0.0
    %79 = vmatprep.subr.mxu0 0.0
    %80 = vmatpush1.msra.mxu0 0.0
    %81 = vmatprep.subr.mxu0 0.0
    %82 = vmatpush1.msra.mxu0 0.0
    %83 = vmatprep.subr.mxu0 0.0
    %84 = vmatpush1.msra.mxu0 0.0
    %85 = vmatprep.subr.mxu0 0.0
    %86 = vmatpush1.msra.mxu0 0.0
    %87 = vmatprep.subr.mxu0 0.0
    %88 = vmatpush1.msra.mxu0 0.0
    %89 = vmatprep.subr.mxu0 0.0
    %90 = vmatpush1.msra.mxu0 0.0
    %91 = vmatprep.subr.mxu0 0.0
    %92 = vmatpush1.msra.mxu0 0.0
    %93 = vmatprep.subr.mxu0 0.0
    %94 = vmatpush1.msra.mxu0 0.0
    %95 = vmatprep.subr.mxu0 0.0
    %96 = vmatpush1.msra.mxu0 0.0
    %97 = vmatprep.subr.mxu0 0.0
    %98 = vmatpush1.msra.mxu0 0.0
    %99 = vmatprep.subr.mxu0 0.0
    %100 = vmatpush1.msra.mxu0 0.0
    %101 = vmatprep.subr.mxu0 0.0
    %102 = vmatpush1.msra.mxu0 0.0
    %103 = vmatprep.subr.mxu0 0.0
    %104 = vmatpush1.msra.mxu0 0.0
    %105 = vmatprep.subr.mxu0 0.0
    %106 = vmatpush1.msra.mxu0 0.0
    %107 = vmatprep.subr.mxu0 0.0
    %108 = vmatpush1.msra.mxu0 0.0
    %109 = vmatprep.subr.mxu0 0.0
    %110 = vmatpush1.msra.mxu0 0.0
    %111 = vmatprep.subr.mxu0 0.0
    %112 = vmatpush1.msra.mxu0 0.0
    %113 = vmatprep.subr.mxu0 0.0
    %114 = vmatpush1.msra.mxu0 0.0
    %115 = vmatprep.subr.mxu0 0.0
    %116 = vmatpush1.msra.mxu0 0.0
    %117 = vmatprep.subr.mxu0 0.0
    %118 = vmatpush1.msra.mxu0 0.0
    %119 = vmatprep.subr.mxu0 0.0
    %120 = vmatpush1.msra.mxu0 0.0
    %121 = vmatprep.subr.mxu0 0.0
    %122 = vmatpush1.msra.mxu0 0.0
    %123 = vmatprep.subr.mxu0 0.0
    %124 = vmatpush1.msra.mxu0 0.0
    %125 = vmatprep.subr.mxu0 0.0
    %126 = vmatpush1.msra.mxu0 0.0
    %127 = vmatprep.subr.mxu0 0.0
    %128 = vmatpush1.msra.mxu0 0.0
    %129 = vmatprep.mubr.f32.mxu0 0.0
    %130 = vmatmul.mubr.f32.gmra.mrb[0].mxu0 %v56
    %v131 = vpop.f32.mrb[0].mxu0
    %v132 = vadd.f32 %v53, %v131
    %v133 = vpop.f32.mrb[0].mxu0
    %134 = vmatprep.mubr.f32.mxu0 0.0
    %135 = vmatmul.mubr.f32.gmra.mrb[0].mxu0 %v59
    %v136 = vpop.f32.mrb[0].mxu0
    %v137 = vadd.f32 %v53, %v136
    %v138 = vpop.f32.mrb[0].mxu0
    %139 = vdwg.mxu0
    %v140 = vmax.f32 %v132, 0.0
    %v141 = vmax.f32 %v137, 0.0
    %v144 = vrot.slane %v140, 4
    %v145 = vrot.slane %v141, 4
    %v148 = vsel %vm61, 0.0, %v144
    %v149 = vsel %vm61, 0.0, %v145
    %v150 = vsel %vm61, %v144, 0.0
    %v151 = vsel %vm61, %v145, 0.0
    %vm156 = vcmask 1046528
    %v157 = vrot.slane %v148, 1
    %v158 = vrot.slane %v150, 1
    %v159 = vsel %vm156, %v157, %v158
    %v160 = vrot.slane %v149, 1
    %v161 = vrot.slane %v151, 1
    %v162 = vsel %vm156, %v160, %v161
    %163 = vrot.lane.b32.xlu0 %v159, 48
    %v164 = vpop.permute.xlu0 %163
    %165 = vrot.lane.b32.xlu0 %v162, 48
    %v166 = vpop.permute.xlu0 %165
    %vm169 = vcmask 1045504
    %v170 = vrot.slane %v148, 2
    %v171 = vrot.slane %v150, 2
    %v172 = vsel %vm169, %v170, %v171
    %v173 = vrot.slane %v149, 2
    %v174 = vrot.slane %v151, 2
    %v175 = vsel %vm169, %v173, %v174
    %176 = vrot.lane.b32.xlu0 %v172, 96
    %v177 = vpop.permute.xlu0 %176
    %178 = vrot.lane.b32.xlu0 %v175, 96
    %v179 = vpop.permute.xlu0 %178
    %vm182 = vcmask 1044480
    %v183 = vrot.slane %v148, 3
    %v184 = vrot.slane %v150, 3
    %v185 = vsel %vm182, %v183, %v184
    %v186 = vrot.slane %v149, 3
    %v187 = vrot.slane %v151, 3
    %v188 = vsel %vm182, %v186, %v187
    %189 = vrot.lane.b32.xlu0 %v185, 16
    %v190 = vpop.permute.xlu0 %189
    %191 = vrot.lane.b32.xlu0 %v188, 16
    %v192 = vpop.permute.xlu0 %191
    %v195 = vrot.slane %v148, 4
    %v196 = vrot.slane %v150, 4
    %v197 = vsel %vm61, %v195, %v196
    %v198 = vrot.slane %v149, 4
    %v199 = vrot.slane %v151, 4
    %v200 = vsel %vm61, %v198, %v199
    %201 = vrot.lane.b32.xlu0 %v197, 64
    %v202 = vpop.permute.xlu0 %201
    %203 = vrot.lane.b32.xlu0 %v200, 64
    %v204 = vpop.permute.xlu0 %203
    %vm207 = vcmask 1042432
    %v208 = vrot.slane %v148, 5
    %v209 = vrot.slane %v150, 5
    %v210 = vsel %vm207, %v208, %v209
    %v211 = vrot.slane %v149, 5
    %v212 = vrot.slane %v151, 5
    %v213 = vsel %vm207, %v211, %v212
    %214 = vrot.lane.b32.xlu0 %v210, 112
    %v215 = vpop.permute.xlu0 %214
    %216 = vrot.lane.b32.xlu0 %v213, 112
    %v217 = vpop.permute.xlu0 %216
    %vm220 = vcmask 1041408
    %v221 = vrot.slane %v148, 6
    %v222 = vrot.slane %v150, 6
    %v223 = vsel %vm220, %v221, %v222
    %v224 = vrot.slane %v149, 6
    %v225 = vrot.slane %v151, 6
    %v226 = vsel %vm220, %v224, %v225
    %227 = vrot.lane.b32.xlu0 %v223, 32
    %v228 = vpop.permute.xlu0 %227
    %229 = vrot.lane.b32.xlu0 %v226, 32
    %v230 = vpop.permute.xlu0 %229
    %vm233 = vcmask 1040384
    %v234 = vrot.slane %v148, 7
    %v235 = vrot.slane %v150, 7
    %v236 = vsel %vm233, %v234, %v235
    %v237 = vrot.slane %v149, 7
    %v238 = vrot.slane %v151, 7
    %v239 = vsel %vm233, %v237, %v238
    %240 = vrot.lane.b32.xlu0 %v236, 80
    %v241 = vpop.permute.xlu0 %240
    %242 = vrot.lane.b32.xlu0 %v239, 80
    %v243 = vpop.permute.xlu0 %242
    %vm246 = vcmask 392192
    %v247 = vsel %vm246, %v148, %v164
    %v248 = vsel %vm246, %v149, %v166
    %vm249 = vcmask 785408
    %v250 = vsel %vm249, %v247, %v177
    %v251 = vsel %vm249, %v248, %v179
    %vm252 = vcmask 130048
    %v253 = vsel %vm252, %v177, %v190
    %v254 = vsel %vm252, %v179, %v192
    %vm255 = vcmask 523264
    %v256 = vsel %vm255, %v253, %v202
    %v257 = vsel %vm255, %v254, %v204
    %vm258 = vcmask 916480
    %v259 = vsel %vm258, %v256, %v215
    %v260 = vsel %vm258, %v257, %v217
    %vm261 = vcmask 261120
    %v262 = vsel %vm261, %v215, %v228
    %v263 = vsel %vm261, %v217, %v230
    %vm264 = vcmask 654336
    %v265 = vsel %vm264, %v262, %v241
    %v266 = vsel %vm264, %v263, %v243
    %v267 = vld [vmem:[%s2] sm:$0xff]
    %v268 = vld [vmem:[%s2 + $0x8] sm:$0xff]
    %v269 = vld [vmem:[%s2 + $0x10] sm:$0xff]
    %v270 = vld [vmem:[%s2 + $0x18] sm:$0xff]
    %v271 = vld [vmem:[%s2 + $0x20] sm:$0xff]
    %v272 = vld [vmem:[%s2 + $0x28] sm:$0xff]
    %v273 = vld [vmem:[%s2 + $0x30] sm:$0xff]
    %v274 = vld [vmem:[%s2 + $0x38] sm:$0xff]
    %v275 = vld [vmem:[%s2 + $0x40] sm:$0xff]
    %v276 = vld [vmem:[%s2 + $0x48] sm:$0xff]
    %v277 = vld [vmem:[%s2 + $0x50] sm:$0xff]
    %v278 = vld [vmem:[%s2 + $0x58] sm:$0xff]
    %v279 = vld [vmem:[%s2 + $0x60] sm:$0xff]
    %v280 = vld [vmem:[%s2 + $0x68] sm:$0xff]
    %v281 = vld [vmem:[%s2 + $0x70] sm:$0xff]
    %v282 = vld [vmem:[%s2 + $0x78] sm:$0xff]
    %v283 = vld [vmem:[%s2 + $0x80] sm:$0xff]
    %v284 = vld [vmem:[%s2 + $0x88] sm:$0xff]
    %v285 = vld [vmem:[%s2 + $0x90] sm:$0xff]
    %v286 = vld [vmem:[%s2 + $0x98] sm:$0xff]
    %v287 = vld [vmem:[%s2 + $0xa0] sm:$0xff]
    %v288 = vld [vmem:[%s2 + $0xa8] sm:$0xff]
    %v289 = vld [vmem:[%s2 + $0xb0] sm:$0xff]
    %v290 = vld [vmem:[%s2 + $0xb8] sm:$0xff]
    %v291 = vld [vmem:[%s2 + $0xc0] sm:$0xff]
    %v292 = vld [vmem:[%s2 + $0xc8] sm:$0xff]
    %v293 = vld [vmem:[%s2 + $0xd0] sm:$0xff]
    %v294 = vld [vmem:[%s2 + $0xd8] sm:$0xff]
    %v295 = vld [vmem:[%s2 + $0xe0] sm:$0xff]
    %v296 = vld [vmem:[%s2 + $0xe8] sm:$0xff]
    %v297 = vld [vmem:[%s2 + $0xf0] sm:$0xff]
    %v298 = vld [vmem:[%s2 + $0xf8] sm:$0xff]
    %v299 = vld [vmem:[%s2 + $0x100] sm:$0xff]
    %v300 = vld [vmem:[%s2 + $0x108] sm:$0xff]
    %v301 = vld [vmem:[%s2 + $0x110] sm:$0xff]
    %v302 = vld [vmem:[%s2 + $0x118] sm:$0xff]
    %v303 = vld [vmem:[%s2 + $0x120] sm:$0xff]
    %v304 = vld [vmem:[%s2 + $0x128] sm:$0xff]
    %v305 = vld [vmem:[%s2 + $0x130] sm:$0xff]
    %v306 = vld [vmem:[%s2 + $0x138] sm:$0xff]
    %v307 = vld [vmem:[%s2 + $0x140] sm:$0xff]
    %v308 = vld [vmem:[%s2 + $0x148] sm:$0xff]
    %v309 = vld [vmem:[%s2 + $0x150] sm:$0xff]
    %v310 = vld [vmem:[%s2 + $0x158] sm:$0xff]
    %v311 = vld [vmem:[%s2 + $0x160] sm:$0xff]
    %v312 = vld [vmem:[%s2 + $0x168] sm:$0xff]
    %v313 = vld [vmem:[%s2 + $0x170] sm:$0xff]
    %v314 = vld [vmem:[%s2 + $0x178] sm:$0xff]
    %v315 = vld [vmem:[%s2 + $0x180] sm:$0xff]
    %v316 = vld [vmem:[%s2 + $0x188] sm:$0xff]
    %v317 = vld [vmem:[%s2 + $0x190] sm:$0xff]
    %v318 = vld [vmem:[%s2 + $0x198] sm:$0xff]
    %v319 = vld [vmem:[%s2 + $0x1a0] sm:$0xff]
    %v320 = vld [vmem:[%s2 + $0x1a8] sm:$0xff]
    %v321 = vlaneseq
    %v322 = vshrl.u32 %v321, 7
    %v323 = vsub.s32 1, %v322
    %v324 = vrot.slane %v47, %v323
    %v325 = vsel %vm246, %v150, 0
    %v327 = vsel %vm246, %v151, 0
    %329 = vmatprep.subr.mxu0 0.0
    %330 = vmatpush1.msra.mxu0 %v267
    %331 = vmatprep.subr.mxu0 0.0
    %332 = vmatpush1.msra.mxu0 %v268
    %333 = vmatprep.subr.mxu0 0.0
    %334 = vmatpush1.msra.mxu0 %v269
    %335 = vmatprep.subr.mxu0 0.0
    %336 = vmatpush1.msra.mxu0 %v270
    %337 = vmatprep.subr.mxu0 0.0
    %338 = vmatpush1.msra.mxu0 %v271
    %339 = vmatprep.subr.mxu0 0.0
    %340 = vmatpush1.msra.mxu0 %v272
    %341 = vmatprep.subr.mxu0 0.0
    %342 = vmatpush1.msra.mxu0 %v273
    %343 = vmatprep.subr.mxu0 0.0
    %344 = vmatpush1.msra.mxu0 %v274
    %345 = vmatprep.subr.mxu0 0.0
    %346 = vmatpush1.msra.mxu0 %v275
    %347 = vmatprep.subr.mxu0 0.0
    %348 = vmatpush1.msra.mxu0 %v276
    %349 = vmatprep.subr.mxu0 0.0
    %350 = vmatpush1.msra.mxu0 %v277
    %351 = vmatprep.subr.mxu0 0.0
    %352 = vmatpush1.msra.mxu0 %v278
    %353 = vmatprep.subr.mxu0 0.0
    %354 = vmatpush1.msra.mxu0 %v279
    %355 = vmatprep.subr.mxu0 0.0
    %356 = vmatpush1.msra.mxu0 %v280
    %357 = vmatprep.subr.mxu0 0.0
    %358 = vmatpush1.msra.mxu0 %v281
    %359 = vmatprep.subr.mxu0 0.0
    %360 = vmatpush1.msra.mxu0 %v282
    %361 = vmatprep.subr.mxu0 0.0
    %362 = vmatpush1.msra.mxu0 %v283
    %363 = vmatprep.subr.mxu0 0.0
    %364 = vmatpush1.msra.mxu0 %v284
    %365 = vmatprep.subr.mxu0 0.0
    %366 = vmatpush1.msra.mxu0 %v285
    %367 = vmatprep.subr.mxu0 0.0
    %368 = vmatpush1.msra.mxu0 %v286
    %369 = vmatprep.subr.mxu0 0.0
    %370 = vmatpush1.msra.mxu0 %v287
    %371 = vmatprep.subr.mxu0 0.0
    %372 = vmatpush1.msra.mxu0 %v288
    %373 = vmatprep.subr.mxu0 0.0
    %374 = vmatpush1.msra.mxu0 %v289
    %375 = vmatprep.subr.mxu0 0.0
    %376 = vmatpush1.msra.mxu0 %v290
    %377 = vmatprep.subr.mxu0 0.0
    %378 = vmatpush1.msra.mxu0 %v291
    %379 = vmatprep.subr.mxu0 0.0
    %380 = vmatpush1.msra.mxu0 %v292
    %381 = vmatprep.subr.mxu0 0.0
    %382 = vmatpush1.msra.mxu0 %v293
    %383 = vmatprep.subr.mxu0 0.0
    %384 = vmatpush1.msra.mxu0 %v294
    %385 = vmatprep.subr.mxu0 0.0
    %386 = vmatpush1.msra.mxu0 %v295
    %387 = vmatprep.subr.mxu0 0.0
    %388 = vmatpush1.msra.mxu0 %v296
    %389 = vmatprep.subr.mxu0 0.0
    %390 = vmatpush1.msra.mxu0 %v297
    %391 = vmatprep.subr.mxu0 0.0
    %392 = vmatpush1.msra.mxu0 %v298
    %393 = vmatprep.mubr.f32.mxu0 %v259
    %394 = vmatmul.mubr.f32.gmra.mrb[0].mxu0 %v250
    %v395 = vpop.f32.mrb[0].mxu0
    %v396 = vadd.f32 %v324, %v395
    %v397 = vpop.f32.mrb[0].mxu0
    %398 = vmatprep.mubr.f32.mxu0 %v260
    %399 = vmatmul.mubr.f32.gmra.mrb[0].mxu0 %v251
    %v400 = vpop.f32.mrb[0].mxu0
    %v401 = vadd.f32 %v324, %v400
    %v402 = vpop.f32.mrb[0].mxu0
    %403 = vdwg.mxu0
    %404 = vmatprep.subr.mxu0 0.0
    %405 = vmatpush1.msra.mxu0 %v299
    %406 = vmatprep.subr.mxu0 0.0
    %407 = vmatpush1.msra.mxu0 %v300
    %408 = vmatprep.subr.mxu0 0.0
    %409 = vmatpush1.msra.mxu0 %v301
    %410 = vmatprep.subr.mxu0 0.0
    %411 = vmatpush1.msra.mxu0 %v302
    %412 = vmatprep.subr.mxu0 0.0
    %413 = vmatpush1.msra.mxu0 %v303
    %414 = vmatprep.subr.mxu0 0.0
    %415 = vmatpush1.msra.mxu0 %v304
    %416 = vmatprep.subr.mxu0 0.0
    %417 = vmatpush1.msra.mxu0 %v305
    %418 = vmatprep.subr.mxu0 0.0
    %419 = vmatpush1.msra.mxu0 %v306
    %420 = vmatprep.subr.mxu0 0.0
    %421 = vmatpush1.msra.mxu0 %v307
    %422 = vmatprep.subr.mxu0 0.0
    %423 = vmatpush1.msra.mxu0 %v308
    %424 = vmatprep.subr.mxu0 0.0
    %425 = vmatpush1.msra.mxu0 %v309
    %426 = vmatprep.subr.mxu0 0.0
    %427 = vmatpush1.msra.mxu0 %v310
    %428 = vmatprep.subr.mxu0 0.0
    %429 = vmatpush1.msra.mxu0 %v311
    %430 = vmatprep.subr.mxu0 0.0
    %431 = vmatpush1.msra.mxu0 %v312
    %432 = vmatprep.subr.mxu0 0.0
    %433 = vmatpush1.msra.mxu0 %v313
    %434 = vmatprep.subr.mxu0 0.0
    %435 = vmatpush1.msra.mxu0 %v314
    %436 = vmatprep.subr.mxu0 0.0
    %437 = vmatpush1.msra.mxu0 %v315
    %438 = vmatprep.subr.mxu0 0.0
    %439 = vmatpush1.msra.mxu0 %v316
    %440 = vmatprep.subr.mxu0 0.0
    %441 = vmatpush1.msra.mxu0 %v317
    %442 = vmatprep.subr.mxu0 0.0
    %443 = vmatpush1.msra.mxu0 %v318
    %444 = vmatprep.subr.mxu0 0.0
    %445 = vmatpush1.msra.mxu0 %v319
    %446 = vmatprep.subr.mxu0 0.0
    %447 = vmatpush1.msra.mxu0 %v320
    %448 = vmatprep.subr.mxu0 0.0
    %449 = vmatpush1.msra.mxu0 0.0
    %450 = vmatprep.subr.mxu0 0.0
    %451 = vmatpush1.msra.mxu0 0.0
    %452 = vmatprep.subr.mxu0 0.0
    %453 = vmatpush1.msra.mxu0 0.0
    %454 = vmatprep.subr.mxu0 0.0
    %455 = vmatpush1.msra.mxu0 0.0
    %456 = vmatprep.subr.mxu0 0.0
    %457 = vmatpush1.msra.mxu0 0.0
    %458 = vmatprep.subr.mxu0 0.0
    %459 = vmatpush1.msra.mxu0 0.0
    %460 = vmatprep.subr.mxu0 0.0
    %461 = vmatpush1.msra.mxu0 0.0
    %462 = vmatprep.subr.mxu0 0.0
    %463 = vmatpush1.msra.mxu0 0.0
    %464 = vmatprep.subr.mxu0 0.0
    %465 = vmatpush1.msra.mxu0 0.0
    %466 = vmatprep.subr.mxu0 0.0
    %467 = vmatpush1.msra.mxu0 0.0
    %468 = vmatprep.mubr.f32.mxu0 %v325
    %469 = vmatmul.mubr.f32.gmra.mrb[0].mxu0 %v265
    %v470 = vpop.f32.mrb[0].mxu0
    %v471 = vadd.f32 %v396, %v470
    %v472 = vpop.f32.mrb[0].mxu0
    %473 = vmatprep.mubr.f32.mxu0 %v327
    %474 = vmatmul.mubr.f32.gmra.mrb[0].mxu0 %v266
    %v475 = vpop.f32.mrb[0].mxu0
    %v476 = vadd.f32 %v401, %v475
    %v477 = vpop.f32.mrb[0].mxu0
    %478 = vdwg.mxu0
    %v479 = vld [vmem:[%s3] sm:$0xff]
    %v480 = vld [vmem:[%s3 + $0x8] sm:$0xff]
    %v481 = vld [vmem:[%s3 + $0x10] sm:$0xff]
    %v482 = vld [vmem:[%s3 + $0x18] sm:$0xff]
    %v483 = vld [vmem:[%s3 + $0x20] sm:$0xff]
    %v484 = vld [vmem:[%s3 + $0x28] sm:$0xff]
    %v485 = vsel %vm246, %v471, 0.0
    %v486 = vsel %vm246, %v476, 0.0
    %v487 = vadd.f32 %v485, %v486
    %v488 = vrot.slane %v487, 4
    %v489 = vadd.f32 %v487, %v488
    %v490 = vrot.slane %v489, 2
    %v491 = vadd.f32 %v489, %v490
    %v492 = vrot.slane %v491, 1
    %v493 = vadd.f32 %v491, %v492
    %v495 = vsel %vm246, %v493, 0
    %497 = vmatprep.subr.mxu0 0.0
    %498 = vmatpush1.msra.mxu0 %v479
    %499 = vmatprep.subr.mxu0 0.0
    %500 = vmatpush1.msra.mxu0 %v480
    %501 = vmatprep.subr.mxu0 0.0
    %502 = vmatpush1.msra.mxu0 %v481
    %503 = vmatprep.subr.mxu0 0.0
    %504 = vmatpush1.msra.mxu0 %v482
    %505 = vmatprep.subr.mxu0 0.0
    %506 = vmatpush1.msra.mxu0 %v483
    %507 = vmatprep.subr.mxu0 0.0
    %508 = vmatpush1.msra.mxu0 %v484
    %509 = vmatprep.subr.mxu0 0.0
    %510 = vmatpush1.msra.mxu0 0.0
    %511 = vmatprep.subr.mxu0 0.0
    %512 = vmatpush1.msra.mxu0 0.0
    %513 = vmatprep.subr.mxu0 0.0
    %514 = vmatpush1.msra.mxu0 0.0
    %515 = vmatprep.subr.mxu0 0.0
    %516 = vmatpush1.msra.mxu0 0.0
    %517 = vmatprep.subr.mxu0 0.0
    %518 = vmatpush1.msra.mxu0 0.0
    %519 = vmatprep.subr.mxu0 0.0
    %520 = vmatpush1.msra.mxu0 0.0
    %521 = vmatprep.subr.mxu0 0.0
    %522 = vmatpush1.msra.mxu0 0.0
    %523 = vmatprep.subr.mxu0 0.0
    %524 = vmatpush1.msra.mxu0 0.0
    %525 = vmatprep.subr.mxu0 0.0
    %526 = vmatpush1.msra.mxu0 0.0
    %527 = vmatprep.subr.mxu0 0.0
    %528 = vmatpush1.msra.mxu0 0.0
    %529 = vmatprep.subr.mxu0 0.0
    %530 = vmatpush1.msra.mxu0 0.0
    %531 = vmatprep.subr.mxu0 0.0
    %532 = vmatpush1.msra.mxu0 0.0
    %533 = vmatprep.subr.mxu0 0.0
    %534 = vmatpush1.msra.mxu0 0.0
    %535 = vmatprep.subr.mxu0 0.0
    %536 = vmatpush1.msra.mxu0 0.0
    %537 = vmatprep.subr.mxu0 0.0
    %538 = vmatpush1.msra.mxu0 0.0
    %539 = vmatprep.subr.mxu0 0.0
    %540 = vmatpush1.msra.mxu0 0.0
    %541 = vmatprep.subr.mxu0 0.0
    %542 = vmatpush1.msra.mxu0 0.0
    %543 = vmatprep.subr.mxu0 0.0
    %544 = vmatpush1.msra.mxu0 0.0
    %545 = vmatprep.subr.mxu0 0.0
    %546 = vmatpush1.msra.mxu0 0.0
    %547 = vmatprep.subr.mxu0 0.0
    %548 = vmatpush1.msra.mxu0 0.0
    %549 = vmatprep.subr.mxu0 0.0
    %550 = vmatpush1.msra.mxu0 0.0
    %551 = vmatprep.subr.mxu0 0.0
    %552 = vmatpush1.msra.mxu0 0.0
    %553 = vmatprep.subr.mxu0 0.0
    %554 = vmatpush1.msra.mxu0 0.0
    %555 = vmatprep.subr.mxu0 0.0
    %556 = vmatpush1.msra.mxu0 0.0
    %557 = vmatprep.subr.mxu0 0.0
    %558 = vmatpush1.msra.mxu0 0.0
    %559 = vmatprep.subr.mxu0 0.0
    %560 = vmatpush1.msra.mxu0 0.0
    %561 = vmatprep.mubr.f32.mxu0 0.0
    %562 = vmatmul.mubr.f32.gmra.mrb[0].mxu0 %v495
    %v563 = vpop.f32.mrb[0].mxu0
    %v564 = vadd.f32 0.0, %v563
    %v565 = vpop.f32.mrb[0].mxu0
    %566 = vdwg.mxu0
    %v567 = vmul.f32 %v564, 0.010416667
    %v568 = vlaneseq
    %v569 = vshrl.u32 %v568, 7
    %v570 = vsub.s32 0, %v569
    %v571 = vrot.slane %v567, %v570
    %v572 = vsub.f32 %v471, %v571
    %v573 = vsub.f32 %v476, %v571
    %v574 = vmul.f32 %v572, %v572
    %v575 = vmul.f32 %v573, %v573
    %v576 = vsel %vm246, %v574, 0.0
    %v577 = vsel %vm246, %v575, 0.0
    %v578 = vadd.f32 %v576, %v577
    %v579 = vrot.slane %v578, 4
    %v580 = vadd.f32 %v578, %v579
    %v581 = vrot.slane %v580, 2
    %v582 = vadd.f32 %v580, %v581
    %v583 = vrot.slane %v582, 1
    %v584 = vadd.f32 %v582, %v583
    %v586 = vsel %vm246, %v584, 0
    %588 = vmatprep.subr.mxu0 0.0
    %589 = vmatpush1.msra.mxu0 %v479
    %590 = vmatprep.subr.mxu0 0.0
    %591 = vmatpush1.msra.mxu0 %v480
    %592 = vmatprep.subr.mxu0 0.0
    %593 = vmatpush1.msra.mxu0 %v481
    %594 = vmatprep.subr.mxu0 0.0
    %595 = vmatpush1.msra.mxu0 %v482
    %596 = vmatprep.subr.mxu0 0.0
    %597 = vmatpush1.msra.mxu0 %v483
    %598 = vmatprep.subr.mxu0 0.0
    %599 = vmatpush1.msra.mxu0 %v484
    %600 = vmatprep.subr.mxu0 0.0
    %601 = vmatpush1.msra.mxu0 0.0
    %602 = vmatprep.subr.mxu0 0.0
    %603 = vmatpush1.msra.mxu0 0.0
    %604 = vmatprep.subr.mxu0 0.0
    %605 = vmatpush1.msra.mxu0 0.0
    %606 = vmatprep.subr.mxu0 0.0
    %607 = vmatpush1.msra.mxu0 0.0
    %608 = vmatprep.subr.mxu0 0.0
    %609 = vmatpush1.msra.mxu0 0.0
    %610 = vmatprep.subr.mxu0 0.0
    %611 = vmatpush1.msra.mxu0 0.0
    %612 = vmatprep.subr.mxu0 0.0
    %613 = vmatpush1.msra.mxu0 0.0
    %614 = vmatprep.subr.mxu0 0.0
    %615 = vmatpush1.msra.mxu0 0.0
    %616 = vmatprep.subr.mxu0 0.0
    %617 = vmatpush1.msra.mxu0 0.0
    %618 = vmatprep.subr.mxu0 0.0
    %619 = vmatpush1.msra.mxu0 0.0
    %620 = vmatprep.subr.mxu0 0.0
    %621 = vmatpush1.msra.mxu0 0.0
    %622 = vmatprep.subr.mxu0 0.0
    %623 = vmatpush1.msra.mxu0 0.0
    %624 = vmatprep.subr.mxu0 0.0
    %625 = vmatpush1.msra.mxu0 0.0
    %626 = vmatprep.subr.mxu0 0.0
    %627 = vmatpush1.msra.mxu0 0.0
    %628 = vmatprep.subr.mxu0 0.0
    %629 = vmatpush1.msra.mxu0 0.0
    %630 = vmatprep.subr.mxu0 0.0
    %631 = vmatpush1.msra.mxu0 0.0
    %632 = vmatprep.subr.mxu0 0.0
    %633 = vmatpush1.msra.mxu0 0.0
    %634 = vmatprep.subr.mxu0 0.0
    %635 = vmatpush1.msra.mxu0 0.0
    %636 = vmatprep.subr.mxu0 0.0
    %637 = vmatpush1.msra.mxu0 0.0
    %638 = vmatprep.subr.mxu0 0.0
    %639 = vmatpush1.msra.mxu0 0.0
    %640 = vmatprep.subr.mxu0 0.0
    %641 = vmatpush1.msra.mxu0 0.0
    %642 = vmatprep.subr.mxu0 0.0
    %643 = vmatpush1.msra.mxu0 0.0
    %644 = vmatprep.subr.mxu0 0.0
    %645 = vmatpush1.msra.mxu0 0.0
    %646 = vmatprep.subr.mxu0 0.0
    %647 = vmatpush1.msra.mxu0 0.0
    %648 = vmatprep.subr.mxu0 0.0
    %649 = vmatpush1.msra.mxu0 0.0
    %650 = vmatprep.subr.mxu0 0.0
    %651 = vmatpush1.msra.mxu0 0.0
    %652 = vmatprep.mubr.f32.mxu0 0.0
    %653 = vmatmul.mubr.f32.gmra.mrb[0].mxu0 %v586
    %v654 = vpop.f32.mrb[0].mxu0
    %v655 = vadd.f32 0.0, %v654
    %v656 = vpop.f32.mrb[0].mxu0
    %657 = vdwg.mxu0
    %v658 = vmul.f32 %v655, 0.010416667
    %v659 = vadd.f32 %v658, 1e-05
    %v660 = vrsqrt.pop %v659
    %v662 = vrot.slane %v660, 6
    %v664 = vmul.f32 %v47, %v662
    %v665 = vlaneseq
    %v666 = vshrl.u32 %v665, 7
    %v667 = vsub.s32 2, %v666
    %v668 = vrot.slane %v664, %v667
    %v669 = vmul.f32 %v572, %v668
    %v670 = vmul.f32 %v573, %v668
    %v671 = vlaneseq
    %v672 = vshrl.u32 %v671, 7
    %v673 = vsub.s32 3, %v672
    %v674 = vrot.slane %v47, %v673
    %v675 = vadd.f32 %v669, %v674
    %v676 = vadd.f32 %v670, %v674
    %v677 = vmax.f32 %v675, 0.0
    %v678 = vmax.f32 %v676, 0.0
    %v679 = vld [vmem:[%s8] sm:$0xf]
    %v680 = vld [vmem:[%s5] sm:$0xff]
    %v681 = vld [vmem:[%s5 + $0x8] sm:$0xff]
    %v682 = vld [vmem:[%s5 + $0x10] sm:$0xff]
    %v683 = vld [vmem:[%s5 + $0x18] sm:$0xff]
    %v684 = vld [vmem:[%s5 + $0x20] sm:$0xff]
    %v685 = vld [vmem:[%s5 + $0x28] sm:$0xff]
    %v686 = vlaneseq
    %v687 = vshrl.u32 %v686, 7
    %v688 = vsub.s32 0, %v687
    %v689 = vrot.slane %v679, %v688
    %v691 = vsel %vm246, %v677, 0
    %v694 = vsel %vm246, %v678, 0
    %696 = vmatprep.subr.mxu0 0.0
    %697 = vmatpush1.msra.mxu0 %v680
    %698 = vmatprep.subr.mxu0 0.0
    %699 = vmatpush1.msra.mxu0 %v681
    %700 = vmatprep.subr.mxu0 0.0
    %701 = vmatpush1.msra.mxu0 %v682
    %702 = vmatprep.subr.mxu0 0.0
    %703 = vmatpush1.msra.mxu0 %v683
    %704 = vmatprep.subr.mxu0 0.0
    %705 = vmatpush1.msra.mxu0 %v684
    %706 = vmatprep.subr.mxu0 0.0
    %707 = vmatpush1.msra.mxu0 %v685
    %708 = vmatprep.subr.mxu0 0.0
    %709 = vmatpush1.msra.mxu0 0.0
    %710 = vmatprep.subr.mxu0 0.0
    %711 = vmatpush1.msra.mxu0 0.0
    %712 = vmatprep.subr.mxu0 0.0
    %713 = vmatpush1.msra.mxu0 0.0
    %714 = vmatprep.subr.mxu0 0.0
    %715 = vmatpush1.msra.mxu0 0.0
    %716 = vmatprep.subr.mxu0 0.0
    %717 = vmatpush1.msra.mxu0 0.0
    %718 = vmatprep.subr.mxu0 0.0
    %719 = vmatpush1.msra.mxu0 0.0
    %720 = vmatprep.subr.mxu0 0.0
    %721 = vmatpush1.msra.mxu0 0.0
    %722 = vmatprep.subr.mxu0 0.0
    %723 = vmatpush1.msra.mxu0 0.0
    %724 = vmatprep.subr.mxu0 0.0
    %725 = vmatpush1.msra.mxu0 0.0
    %726 = vmatprep.subr.mxu0 0.0
    %727 = vmatpush1.msra.mxu0 0.0
    %728 = vmatprep.subr.mxu0 0.0
    %729 = vmatpush1.msra.mxu0 0.0
    %730 = vmatprep.subr.mxu0 0.0
    %731 = vmatpush1.msra.mxu0 0.0
    %732 = vmatprep.subr.mxu0 0.0
    %733 = vmatpush1.msra.mxu0 0.0
    %734 = vmatprep.subr.mxu0 0.0
    %735 = vmatpush1.msra.mxu0 0.0
    %736 = vmatprep.subr.mxu0 0.0
    %737 = vmatpush1.msra.mxu0 0.0
    %738 = vmatprep.subr.mxu0 0.0
    %739 = vmatpush1.msra.mxu0 0.0
    %740 = vmatprep.subr.mxu0 0.0
    %741 = vmatpush1.msra.mxu0 0.0
    %742 = vmatprep.subr.mxu0 0.0
    %743 = vmatpush1.msra.mxu0 0.0
    %744 = vmatprep.subr.mxu0 0.0
    %745 = vmatpush1.msra.mxu0 0.0
    %746 = vmatprep.subr.mxu0 0.0
    %747 = vmatpush1.msra.mxu0 0.0
    %748 = vmatprep.subr.mxu0 0.0
    %749 = vmatpush1.msra.mxu0 0.0
    %750 = vmatprep.subr.mxu0 0.0
    %751 = vmatpush1.msra.mxu0 0.0
    %752 = vmatprep.subr.mxu0 0.0
    %753 = vmatpush1.msra.mxu0 0.0
    %754 = vmatprep.subr.mxu0 0.0
    %755 = vmatpush1.msra.mxu0 0.0
    %756 = vmatprep.subr.mxu0 0.0
    %757 = vmatpush1.msra.mxu0 0.0
    %758 = vmatprep.subr.mxu0 0.0
    %759 = vmatpush1.msra.mxu0 0.0
    %760 = vmatprep.mubr.f32.mxu0 0.0
    %761 = vmatmul.mubr.f32.gmra.mrb[0].mxu0 %v691
    %v762 = vpop.f32.mrb[0].mxu0
    %v763 = vadd.f32 %v689, %v762
    %v764 = vpop.f32.mrb[0].mxu0
    %765 = vmatprep.mubr.f32.mxu0 0.0
    %766 = vmatmul.mubr.f32.gmra.mrb[0].mxu0 %v694
    %v767 = vpop.f32.mrb[0].mxu0
    %v768 = vadd.f32 %v689, %v767
    %v769 = vpop.f32.mrb[0].mxu0
    %770 = vdwg.mxu0
    %v771 = vmax.f32 %v763, 0.0
    %v772 = vmax.f32 %v768, 0.0
    %v775 = vrot.slane %v771, 4
    %v776 = vrot.slane %v772, 4
    %v779 = vsel %vm61, 0.0, %v775
    %v780 = vsel %vm61, 0.0, %v776
    %v781 = vsel %vm61, %v775, 0.0
    %v782 = vsel %vm61, %v776, 0.0
    %v787 = vrot.slane %v779, 1
    %v788 = vrot.slane %v781, 1
    %v789 = vsel %vm156, %v787, %v788
    %v790 = vrot.slane %v780, 1
    %v791 = vrot.slane %v782, 1
    %v792 = vsel %vm156, %v790, %v791
    %793 = vrot.lane.b32.xlu0 %v789, 96
    %v794 = vpop.permute.xlu0 %793
    %795 = vrot.lane.b32.xlu0 %v792, 96
    %v796 = vpop.permute.xlu0 %795
    %v799 = vrot.slane %v779, 2
    %v800 = vrot.slane %v781, 2
    %v801 = vsel %vm169, %v799, %v800
    %v802 = vrot.slane %v780, 2
    %v803 = vrot.slane %v782, 2
    %v804 = vsel %vm169, %v802, %v803
    %805 = vrot.lane.b32.xlu0 %v801, 64
    %v806 = vpop.permute.xlu0 %805
    %807 = vrot.lane.b32.xlu0 %v804, 64
    %v808 = vpop.permute.xlu0 %807
    %v811 = vrot.slane %v779, 3
    %v812 = vrot.slane %v781, 3
    %v813 = vsel %vm182, %v811, %v812
    %v814 = vrot.slane %v780, 3
    %v815 = vrot.slane %v782, 3
    %v816 = vsel %vm182, %v814, %v815
    %817 = vrot.lane.b32.xlu0 %v813, 32
    %v818 = vpop.permute.xlu0 %817
    %819 = vrot.lane.b32.xlu0 %v816, 32
    %v820 = vpop.permute.xlu0 %819
    %v823 = vrot.slane %v779, 4
    %v824 = vrot.slane %v781, 4
    %v825 = vsel %vm61, %v823, %v824
    %v826 = vrot.slane %v780, 4
    %v827 = vrot.slane %v782, 4
    %v828 = vsel %vm61, %v826, %v827
    %v831 = vrot.slane %v779, 5
    %v832 = vrot.slane %v781, 5
    %v833 = vsel %vm207, %v831, %v832
    %v834 = vrot.slane %v780, 5
    %v835 = vrot.slane %v782, 5
    %v836 = vsel %vm207, %v834, %v835
    %837 = vrot.lane.b32.xlu0 %v833, 96
    %v838 = vpop.permute.xlu0 %837
    %839 = vrot.lane.b32.xlu0 %v836, 96
    %v840 = vpop.permute.xlu0 %839
    %v843 = vrot.slane %v779, 6
    %v844 = vrot.slane %v781, 6
    %v845 = vsel %vm220, %v843, %v844
    %v846 = vrot.slane %v780, 6
    %v847 = vrot.slane %v782, 6
    %v848 = vsel %vm220, %v846, %v847
    %849 = vrot.lane.b32.xlu0 %v845, 64
    %v850 = vpop.permute.xlu0 %849
    %851 = vrot.lane.b32.xlu0 %v848, 64
    %v852 = vpop.permute.xlu0 %851
    %v855 = vrot.slane %v779, 7
    %v856 = vrot.slane %v781, 7
    %v857 = vsel %vm233, %v855, %v856
    %v858 = vrot.slane %v780, 7
    %v859 = vrot.slane %v782, 7
    %v860 = vsel %vm233, %v858, %v859
    %861 = vrot.lane.b32.xlu0 %v857, 32
    %v862 = vpop.permute.xlu0 %861
    %863 = vrot.lane.b32.xlu0 %v860, 32
    %v864 = vpop.permute.xlu0 %863
    %v867 = vsel %vm249, %v779, %v794
    %v868 = vsel %vm249, %v780, %v796
    %v869 = vsel %vm255, %v794, %v806
    %v870 = vsel %vm255, %v796, %v808
    %v871 = vsel %vm261, %v806, %v818
    %v872 = vsel %vm261, %v808, %v820
    %v873 = vsel %vm249, %v825, %v838
    %v874 = vsel %vm249, %v828, %v840
    %v875 = vsel %vm255, %v838, %v850
    %v876 = vsel %vm255, %v840, %v852
    %v877 = vsel %vm261, %v850, %v862
    %v878 = vsel %vm261, %v852, %v864
    %v879 = vld [vmem:[%s6] sm:$0xff]
    %v880 = vld [vmem:[%s6 + $0x8] sm:$0xff]
    %v881 = vld [vmem:[%s6 + $0x10] sm:$0xff]
    %v882 = vld [vmem:[%s6 + $0x18] sm:$0xff]
    %v883 = vld [vmem:[%s6 + $0x20] sm:$0xff]
    %v884 = vld [vmem:[%s6 + $0x28] sm:$0xff]
    %v885 = vld [vmem:[%s6 + $0x30] sm:$0xff]
    %v886 = vld [vmem:[%s6 + $0x38] sm:$0xff]
    %v887 = vld [vmem:[%s6 + $0x40] sm:$0xff]
    %v888 = vld [vmem:[%s6 + $0x48] sm:$0xff]
    %v889 = vld [vmem:[%s6 + $0x50] sm:$0xff]
    %v890 = vld [vmem:[%s6 + $0x58] sm:$0xff]
    %v891 = vld [vmem:[%s6 + $0x60] sm:$0xff]
    %v892 = vld [vmem:[%s6 + $0x68] sm:$0xff]
    %v893 = vld [vmem:[%s6 + $0x70] sm:$0xff]
    %v894 = vld [vmem:[%s6 + $0x78] sm:$0xff]
    %v895 = vld [vmem:[%s6 + $0x80] sm:$0xff]
    %v896 = vld [vmem:[%s6 + $0x88] sm:$0xff]
    %v897 = vld [vmem:[%s6 + $0x90] sm:$0xff]
    %v898 = vld [vmem:[%s6 + $0x98] sm:$0xff]
    %v899 = vld [vmem:[%s6 + $0xa0] sm:$0xff]
    %v900 = vld [vmem:[%s6 + $0xa8] sm:$0xff]
    %v901 = vld [vmem:[%s6 + $0xb0] sm:$0xff]
    %v902 = vld [vmem:[%s6 + $0xb8] sm:$0xff]
    %v903 = vld [vmem:[%s6 + $0xc0] sm:$0xff]
    %v904 = vld [vmem:[%s6 + $0xc8] sm:$0xff]
    %v905 = vld [vmem:[%s6 + $0xd0] sm:$0xff]
    %v906 = vld [vmem:[%s6 + $0xd8] sm:$0xff]
    %v907 = vld [vmem:[%s6 + $0xe0] sm:$0xff]
    %v908 = vld [vmem:[%s6 + $0xe8] sm:$0xff]
    %v909 = vld [vmem:[%s6 + $0xf0] sm:$0xff]
    %v910 = vld [vmem:[%s6 + $0xf8] sm:$0xff]
    %v911 = vld [vmem:[%s6 + $0x100] sm:$0xff]
    %v912 = vld [vmem:[%s6 + $0x108] sm:$0xff]
    %v913 = vld [vmem:[%s6 + $0x110] sm:$0xff]
    %v914 = vld [vmem:[%s6 + $0x118] sm:$0xff]
    %v915 = vld [vmem:[%s6 + $0x120] sm:$0xff]
    %v916 = vld [vmem:[%s6 + $0x128] sm:$0xff]
    %v917 = vld [vmem:[%s6 + $0x130] sm:$0xff]
    %v918 = vld [vmem:[%s6 + $0x138] sm:$0xff]
    %v919 = vld [vmem:[%s6 + $0x140] sm:$0xff]
    %v920 = vld [vmem:[%s6 + $0x148] sm:$0xff]
    %v921 = vld [vmem:[%s6 + $0x150] sm:$0xff]
    %v922 = vld [vmem:[%s6 + $0x158] sm:$0xff]
    %v923 = vld [vmem:[%s6 + $0x160] sm:$0xff]
    %v924 = vld [vmem:[%s6 + $0x168] sm:$0xff]
    %v925 = vld [vmem:[%s6 + $0x170] sm:$0xff]
    %v926 = vld [vmem:[%s6 + $0x178] sm:$0xff]
    %v927 = vld [vmem:[%s6 + $0x180] sm:$0xff]
    %v928 = vld [vmem:[%s6 + $0x188] sm:$0xff]
    %v929 = vld [vmem:[%s6 + $0x190] sm:$0xff]
    %v930 = vld [vmem:[%s6 + $0x198] sm:$0xff]
    %v931 = vld [vmem:[%s6 + $0x1a0] sm:$0xff]
    %v932 = vld [vmem:[%s6 + $0x1a8] sm:$0xff]
    %v933 = vld [vmem:[%s6 + $0x1b0] sm:$0xff]
    %v934 = vld [vmem:[%s6 + $0x1b8] sm:$0xff]
    %v935 = vld [vmem:[%s6 + $0x1c0] sm:$0xff]
    %v936 = vld [vmem:[%s6 + $0x1c8] sm:$0xff]
    %v937 = vld [vmem:[%s6 + $0x1d0] sm:$0xff]
    %v938 = vld [vmem:[%s6 + $0x1d8] sm:$0xff]
    %v939 = vld [vmem:[%s6 + $0x1e0] sm:$0xff]
    %v940 = vld [vmem:[%s6 + $0x1e8] sm:$0xff]
    %v941 = vld [vmem:[%s6 + $0x1f0] sm:$0xff]
    %v942 = vld [vmem:[%s6 + $0x1f8] sm:$0xff]
    %v943 = vld [vmem:[%s6 + $0x200] sm:$0xff]
    %v944 = vld [vmem:[%s6 + $0x208] sm:$0xff]
    %v945 = vld [vmem:[%s6 + $0x210] sm:$0xff]
    %v946 = vld [vmem:[%s6 + $0x218] sm:$0xff]
    %v947 = vld [vmem:[%s6 + $0x220] sm:$0xff]
    %v948 = vld [vmem:[%s6 + $0x228] sm:$0xff]
    %v949 = vld [vmem:[%s6 + $0x230] sm:$0xff]
    %v950 = vld [vmem:[%s6 + $0x238] sm:$0xff]
    %v951 = vld [vmem:[%s6 + $0x240] sm:$0xff]
    %v952 = vld [vmem:[%s6 + $0x248] sm:$0xff]
    %v953 = vld [vmem:[%s6 + $0x250] sm:$0xff]
    %v954 = vld [vmem:[%s6 + $0x258] sm:$0xff]
    %v955 = vld [vmem:[%s6 + $0x260] sm:$0xff]
    %v956 = vld [vmem:[%s6 + $0x268] sm:$0xff]
    %v957 = vld [vmem:[%s6 + $0x270] sm:$0xff]
    %v958 = vld [vmem:[%s6 + $0x278] sm:$0xff]
    %v959 = vld [vmem:[%s6 + $0x280] sm:$0xff]
    %v960 = vld [vmem:[%s6 + $0x288] sm:$0xff]
    %v961 = vld [vmem:[%s6 + $0x290] sm:$0xff]
    %v962 = vld [vmem:[%s6 + $0x298] sm:$0xff]
    %v963 = vld [vmem:[%s6 + $0x2a0] sm:$0xff]
    %v964 = vld [vmem:[%s6 + $0x2a8] sm:$0xff]
    %v965 = vld [vmem:[%s6 + $0x2b0] sm:$0xff]
    %v966 = vld [vmem:[%s6 + $0x2b8] sm:$0xff]
    %v967 = vld [vmem:[%s6 + $0x2c0] sm:$0xff]
    %v968 = vld [vmem:[%s6 + $0x2c8] sm:$0xff]
    %v969 = vld [vmem:[%s6 + $0x2d0] sm:$0xff]
    %v970 = vld [vmem:[%s6 + $0x2d8] sm:$0xff]
    %v971 = vld [vmem:[%s6 + $0x2e0] sm:$0xff]
    %v972 = vld [vmem:[%s6 + $0x2e8] sm:$0xff]
    %v973 = vld [vmem:[%s6 + $0x2f0] sm:$0xff]
    %v974 = vld [vmem:[%s6 + $0x2f8] sm:$0xff]
    %v975 = vld [vmem:[%s6 + $0x300] sm:$0xff]
    %v976 = vld [vmem:[%s6 + $0x308] sm:$0xff]
    %v977 = vld [vmem:[%s6 + $0x310] sm:$0xff]
    %v978 = vld [vmem:[%s6 + $0x318] sm:$0xff]
    %v979 = vld [vmem:[%s6 + $0x320] sm:$0xff]
    %v980 = vld [vmem:[%s6 + $0x328] sm:$0xff]
    %v981 = vld [vmem:[%s6 + $0x330] sm:$0xff]
    %v982 = vld [vmem:[%s6 + $0x338] sm:$0xff]
    %v983 = vld [vmem:[%s6 + $0x340] sm:$0xff]
    %v984 = vld [vmem:[%s6 + $0x348] sm:$0xff]
    %v985 = vld [vmem:[%s6 + $0x350] sm:$0xff]
    %v986 = vld [vmem:[%s6 + $0x358] sm:$0xff]
    %v987 = vlaneseq
    %v988 = vshrl.u32 %v987, 7
    %v989 = vsub.s32 1, %v988
    %v990 = vrot.slane %v679, %v989
    %v991 = vsel %vm249, %v781, 0
    %v993 = vsel %vm249, %v782, 0
    %995 = vmatprep.subr.mxu0 0.0
    %996 = vmatpush1.msra.mxu0 %v879
    %997 = vmatprep.subr.mxu0 0.0
    %998 = vmatpush1.msra.mxu0 %v880
    %999 = vmatprep.subr.mxu0 0.0
    %1000 = vmatpush1.msra.mxu0 %v881
    %1001 = vmatprep.subr.mxu0 0.0
    %1002 = vmatpush1.msra.mxu0 %v882
    %1003 = vmatprep.subr.mxu0 0.0
    %1004 = vmatpush1.msra.mxu0 %v883
    %1005 = vmatprep.subr.mxu0 0.0
    %1006 = vmatpush1.msra.mxu0 %v884
    %1007 = vmatprep.subr.mxu0 0.0
    %1008 = vmatpush1.msra.mxu0 %v885
    %1009 = vmatprep.subr.mxu0 0.0
    %1010 = vmatpush1.msra.mxu0 %v886
    %1011 = vmatprep.subr.mxu0 0.0
    %1012 = vmatpush1.msra.mxu0 %v887
    %1013 = vmatprep.subr.mxu0 0.0
    %1014 = vmatpush1.msra.mxu0 %v888
    %1015 = vmatprep.subr.mxu0 0.0
    %1016 = vmatpush1.msra.mxu0 %v889
    %1017 = vmatprep.subr.mxu0 0.0
    %1018 = vmatpush1.msra.mxu0 %v890
    %1019 = vmatprep.subr.mxu0 0.0
    %1020 = vmatpush1.msra.mxu0 %v891
    %1021 = vmatprep.subr.mxu0 0.0
    %1022 = vmatpush1.msra.mxu0 %v892
    %1023 = vmatprep.subr.mxu0 0.0
    %1024 = vmatpush1.msra.mxu0 %v893
    %1025 = vmatprep.subr.mxu0 0.0
    %1026 = vmatpush1.msra.mxu0 %v894
    %1027 = vmatprep.subr.mxu0 0.0
    %1028 = vmatpush1.msra.mxu0 %v895
    %1029 = vmatprep.subr.mxu0 0.0
    %1030 = vmatpush1.msra.mxu0 %v896
    %1031 = vmatprep.subr.mxu0 0.0
    %1032 = vmatpush1.msra.mxu0 %v897
    %1033 = vmatprep.subr.mxu0 0.0
    %1034 = vmatpush1.msra.mxu0 %v898
    %1035 = vmatprep.subr.mxu0 0.0
    %1036 = vmatpush1.msra.mxu0 %v899
    %1037 = vmatprep.subr.mxu0 0.0
    %1038 = vmatpush1.msra.mxu0 %v900
    %1039 = vmatprep.subr.mxu0 0.0
    %1040 = vmatpush1.msra.mxu0 %v901
    %1041 = vmatprep.subr.mxu0 0.0
    %1042 = vmatpush1.msra.mxu0 %v902
    %1043 = vmatprep.subr.mxu0 0.0
    %1044 = vmatpush1.msra.mxu0 %v903
    %1045 = vmatprep.subr.mxu0 0.0
    %1046 = vmatpush1.msra.mxu0 %v904
    %1047 = vmatprep.subr.mxu0 0.0
    %1048 = vmatpush1.msra.mxu0 %v905
    %1049 = vmatprep.subr.mxu0 0.0
    %1050 = vmatpush1.msra.mxu0 %v906
    %1051 = vmatprep.subr.mxu0 0.0
    %1052 = vmatpush1.msra.mxu0 %v907
    %1053 = vmatprep.subr.mxu0 0.0
    %1054 = vmatpush1.msra.mxu0 %v908
    %1055 = vmatprep.subr.mxu0 0.0
    %1056 = vmatpush1.msra.mxu0 %v909
    %1057 = vmatprep.subr.mxu0 0.0
    %1058 = vmatpush1.msra.mxu0 %v910
    %1059 = vmatprep.mubr.f32.mxu0 %v869
    %1060 = vmatmul.mubr.f32.gmra.mrb[0].mxu0 %v867
    %v1061 = vpop.f32.mrb[0].mxu0
    %v1062 = vadd.f32 %v990, %v1061
    %v1063 = vpop.f32.mrb[0].mxu0
    %1064 = vmatprep.mubr.f32.mxu0 %v870
    %1065 = vmatmul.mubr.f32.gmra.mrb[0].mxu0 %v868
    %v1066 = vpop.f32.mrb[0].mxu0
    %v1067 = vadd.f32 %v990, %v1066
    %v1068 = vpop.f32.mrb[0].mxu0
    %1069 = vdwg.mxu0
    %1070 = vmatprep.subr.mxu0 0.0
    %1071 = vmatpush1.msra.mxu0 %v911
    %1072 = vmatprep.subr.mxu0 0.0
    %1073 = vmatpush1.msra.mxu0 %v912
    %1074 = vmatprep.subr.mxu0 0.0
    %1075 = vmatpush1.msra.mxu0 %v913
    %1076 = vmatprep.subr.mxu0 0.0
    %1077 = vmatpush1.msra.mxu0 %v914
    %1078 = vmatprep.subr.mxu0 0.0
    %1079 = vmatpush1.msra.mxu0 %v915
    %1080 = vmatprep.subr.mxu0 0.0
    %1081 = vmatpush1.msra.mxu0 %v916
    %1082 = vmatprep.subr.mxu0 0.0
    %1083 = vmatpush1.msra.mxu0 %v917
    %1084 = vmatprep.subr.mxu0 0.0
    %1085 = vmatpush1.msra.mxu0 %v918
    %1086 = vmatprep.subr.mxu0 0.0
    %1087 = vmatpush1.msra.mxu0 %v919
    %1088 = vmatprep.subr.mxu0 0.0
    %1089 = vmatpush1.msra.mxu0 %v920
    %1090 = vmatprep.subr.mxu0 0.0
    %1091 = vmatpush1.msra.mxu0 %v921
    %1092 = vmatprep.subr.mxu0 0.0
    %1093 = vmatpush1.msra.mxu0 %v922
    %1094 = vmatprep.subr.mxu0 0.0
    %1095 = vmatpush1.msra.mxu0 %v923
    %1096 = vmatprep.subr.mxu0 0.0
    %1097 = vmatpush1.msra.mxu0 %v924
    %1098 = vmatprep.subr.mxu0 0.0
    %1099 = vmatpush1.msra.mxu0 %v925
    %1100 = vmatprep.subr.mxu0 0.0
    %1101 = vmatpush1.msra.mxu0 %v926
    %1102 = vmatprep.subr.mxu0 0.0
    %1103 = vmatpush1.msra.mxu0 %v927
    %1104 = vmatprep.subr.mxu0 0.0
    %1105 = vmatpush1.msra.mxu0 %v928
    %1106 = vmatprep.subr.mxu0 0.0
    %1107 = vmatpush1.msra.mxu0 %v929
    %1108 = vmatprep.subr.mxu0 0.0
    %1109 = vmatpush1.msra.mxu0 %v930
    %1110 = vmatprep.subr.mxu0 0.0
    %1111 = vmatpush1.msra.mxu0 %v931
    %1112 = vmatprep.subr.mxu0 0.0
    %1113 = vmatpush1.msra.mxu0 %v932
    %1114 = vmatprep.subr.mxu0 0.0
    %1115 = vmatpush1.msra.mxu0 %v933
    %1116 = vmatprep.subr.mxu0 0.0
    %1117 = vmatpush1.msra.mxu0 %v934
    %1118 = vmatprep.subr.mxu0 0.0
    %1119 = vmatpush1.msra.mxu0 %v935
    %1120 = vmatprep.subr.mxu0 0.0
    %1121 = vmatpush1.msra.mxu0 %v936
    %1122 = vmatprep.subr.mxu0 0.0
    %1123 = vmatpush1.msra.mxu0 %v937
    %1124 = vmatprep.subr.mxu0 0.0
    %1125 = vmatpush1.msra.mxu0 %v938
    %1126 = vmatprep.subr.mxu0 0.0
    %1127 = vmatpush1.msra.mxu0 %v939
    %1128 = vmatprep.subr.mxu0 0.0
    %1129 = vmatpush1.msra.mxu0 %v940
    %1130 = vmatprep.subr.mxu0 0.0
    %1131 = vmatpush1.msra.mxu0 %v941
    %1132 = vmatprep.subr.mxu0 0.0
    %1133 = vmatpush1.msra.mxu0 %v942
    %1134 = vmatprep.mubr.f32.mxu0 %v873
    %1135 = vmatmul.mubr.f32.gmra.mrb[0].mxu0 %v871
    %v1136 = vpop.f32.mrb[0].mxu0
    %v1137 = vadd.f32 %v1062, %v1136
    %v1138 = vpop.f32.mrb[0].mxu0
    %1139 = vmatprep.mubr.f32.mxu0 %v874
    %1140 = vmatmul.mubr.f32.gmra.mrb[0].mxu0 %v872
    %v1141 = vpop.f32.mrb[0].mxu0
    %v1142 = vadd.f32 %v1067, %v1141
    %v1143 = vpop.f32.mrb[0].mxu0
    %1144 = vdwg.mxu0
    %1145 = vmatprep.subr.mxu0 0.0
    %1146 = vmatpush1.msra.mxu0 %v943
    %1147 = vmatprep.subr.mxu0 0.0
    %1148 = vmatpush1.msra.mxu0 %v944
    %1149 = vmatprep.subr.mxu0 0.0
    %1150 = vmatpush1.msra.mxu0 %v945
    %1151 = vmatprep.subr.mxu0 0.0
    %1152 = vmatpush1.msra.mxu0 %v946
    %1153 = vmatprep.subr.mxu0 0.0
    %1154 = vmatpush1.msra.mxu0 %v947
    %1155 = vmatprep.subr.mxu0 0.0
    %1156 = vmatpush1.msra.mxu0 %v948
    %1157 = vmatprep.subr.mxu0 0.0
    %1158 = vmatpush1.msra.mxu0 %v949
    %1159 = vmatprep.subr.mxu0 0.0
    %1160 = vmatpush1.msra.mxu0 %v950
    %1161 = vmatprep.subr.mxu0 0.0
    %1162 = vmatpush1.msra.mxu0 %v951
    %1163 = vmatprep.subr.mxu0 0.0
    %1164 = vmatpush1.msra.mxu0 %v952
    %1165 = vmatprep.subr.mxu0 0.0
    %1166 = vmatpush1.msra.mxu0 %v953
    %1167 = vmatprep.subr.mxu0 0.0
    %1168 = vmatpush1.msra.mxu0 %v954
    %1169 = vmatprep.subr.mxu0 0.0
    %1170 = vmatpush1.msra.mxu0 %v955
    %1171 = vmatprep.subr.mxu0 0.0
    %1172 = vmatpush1.msra.mxu0 %v956
    %1173 = vmatprep.subr.mxu0 0.0
    %1174 = vmatpush1.msra.mxu0 %v957
    %1175 = vmatprep.subr.mxu0 0.0
    %1176 = vmatpush1.msra.mxu0 %v958
    %1177 = vmatprep.subr.mxu0 0.0
    %1178 = vmatpush1.msra.mxu0 %v959
    %1179 = vmatprep.subr.mxu0 0.0
    %1180 = vmatpush1.msra.mxu0 %v960
    %1181 = vmatprep.subr.mxu0 0.0
    %1182 = vmatpush1.msra.mxu0 %v961
    %1183 = vmatprep.subr.mxu0 0.0
    %1184 = vmatpush1.msra.mxu0 %v962
    %1185 = vmatprep.subr.mxu0 0.0
    %1186 = vmatpush1.msra.mxu0 %v963
    %1187 = vmatprep.subr.mxu0 0.0
    %1188 = vmatpush1.msra.mxu0 %v964
    %1189 = vmatprep.subr.mxu0 0.0
    %1190 = vmatpush1.msra.mxu0 %v965
    %1191 = vmatprep.subr.mxu0 0.0
    %1192 = vmatpush1.msra.mxu0 %v966
    %1193 = vmatprep.subr.mxu0 0.0
    %1194 = vmatpush1.msra.mxu0 %v967
    %1195 = vmatprep.subr.mxu0 0.0
    %1196 = vmatpush1.msra.mxu0 %v968
    %1197 = vmatprep.subr.mxu0 0.0
    %1198 = vmatpush1.msra.mxu0 %v969
    %1199 = vmatprep.subr.mxu0 0.0
    %1200 = vmatpush1.msra.mxu0 %v970
    %1201 = vmatprep.subr.mxu0 0.0
    %1202 = vmatpush1.msra.mxu0 %v971
    %1203 = vmatprep.subr.mxu0 0.0
    %1204 = vmatpush1.msra.mxu0 %v972
    %1205 = vmatprep.subr.mxu0 0.0
    %1206 = vmatpush1.msra.mxu0 %v973
    %1207 = vmatprep.subr.mxu0 0.0
    %1208 = vmatpush1.msra.mxu0 %v974
    %1209 = vmatprep.mubr.f32.mxu0 %v877
    %1210 = vmatmul.mubr.f32.gmra.mrb[0].mxu0 %v875
    %v1211 = vpop.f32.mrb[0].mxu0
    %v1212 = vadd.f32 %v1137, %v1211
    %v1213 = vpop.f32.mrb[0].mxu0
    %1214 = vmatprep.mubr.f32.mxu0 %v878
    %1215 = vmatmul.mubr.f32.gmra.mrb[0].mxu0 %v876
    %v1216 = vpop.f32.mrb[0].mxu0
    %v1217 = vadd.f32 %v1142, %v1216
    %v1218 = vpop.f32.mrb[0].mxu0
    %1219 = vdwg.mxu0
    %1220 = vmatprep.subr.mxu0 0.0
    %1221 = vmatpush1.msra.mxu0 %v975
    %1222 = vmatprep.subr.mxu0 0.0
    %1223 = vmatpush1.msra.mxu0 %v976
    %1224 = vmatprep.subr.mxu0 0.0
    %1225 = vmatpush1.msra.mxu0 %v977
    %1226 = vmatprep.subr.mxu0 0.0
    %1227 = vmatpush1.msra.mxu0 %v978
    %1228 = vmatprep.subr.mxu0 0.0
    %1229 = vmatpush1.msra.mxu0 %v979
    %1230 = vmatprep.subr.mxu0 0.0
    %1231 = vmatpush1.msra.mxu0 %v980
    %1232 = vmatprep.subr.mxu0 0.0
    %1233 = vmatpush1.msra.mxu0 %v981
    %1234 = vmatprep.subr.mxu0 0.0
    %1235 = vmatpush1.msra.mxu0 %v982
    %1236 = vmatprep.subr.mxu0 0.0
    %1237 = vmatpush1.msra.mxu0 %v983
    %1238 = vmatprep.subr.mxu0 0.0
    %1239 = vmatpush1.msra.mxu0 %v984
    %1240 = vmatprep.subr.mxu0 0.0
    %1241 = vmatpush1.msra.mxu0 %v985
    %1242 = vmatprep.subr.mxu0 0.0
    %1243 = vmatpush1.msra.mxu0 %v986
    %1244 = vmatprep.subr.mxu0 0.0
    %1245 = vmatpush1.msra.mxu0 0.0
    %1246 = vmatprep.subr.mxu0 0.0
    %1247 = vmatpush1.msra.mxu0 0.0
    %1248 = vmatprep.subr.mxu0 0.0
    %1249 = vmatpush1.msra.mxu0 0.0
    %1250 = vmatprep.subr.mxu0 0.0
    %1251 = vmatpush1.msra.mxu0 0.0
    %1252 = vmatprep.subr.mxu0 0.0
    %1253 = vmatpush1.msra.mxu0 0.0
    %1254 = vmatprep.subr.mxu0 0.0
    %1255 = vmatpush1.msra.mxu0 0.0
    %1256 = vmatprep.subr.mxu0 0.0
    %1257 = vmatpush1.msra.mxu0 0.0
    %1258 = vmatprep.subr.mxu0 0.0
    %1259 = vmatpush1.msra.mxu0 0.0
    %1260 = vmatprep.subr.mxu0 0.0
    %1261 = vmatpush1.msra.mxu0 0.0
    %1262 = vmatprep.subr.mxu0 0.0
    %1263 = vmatpush1.msra.mxu0 0.0
    %1264 = vmatprep.subr.mxu0 0.0
    %1265 = vmatpush1.msra.mxu0 0.0
    %1266 = vmatprep.subr.mxu0 0.0
    %1267 = vmatpush1.msra.mxu0 0.0
    %1268 = vmatprep.subr.mxu0 0.0
    %1269 = vmatpush1.msra.mxu0 0.0
    %1270 = vmatprep.subr.mxu0 0.0
    %1271 = vmatpush1.msra.mxu0 0.0
    %1272 = vmatprep.subr.mxu0 0.0
    %1273 = vmatpush1.msra.mxu0 0.0
    %1274 = vmatprep.subr.mxu0 0.0
    %1275 = vmatpush1.msra.mxu0 0.0
    %1276 = vmatprep.subr.mxu0 0.0
    %1277 = vmatpush1.msra.mxu0 0.0
    %1278 = vmatprep.subr.mxu0 0.0
    %1279 = vmatpush1.msra.mxu0 0.0
    %1280 = vmatprep.subr.mxu0 0.0
    %1281 = vmatpush1.msra.mxu0 0.0
    %1282 = vmatprep.subr.mxu0 0.0
    %1283 = vmatpush1.msra.mxu0 0.0
    %1284 = vmatprep.mubr.f32.mxu0 0.0
    %1285 = vmatmul.mubr.f32.gmra.mrb[0].mxu0 %v991
    %v1286 = vpop.f32.mrb[0].mxu0
    %v1287 = vadd.f32 %v1212, %v1286
    %v1288 = vpop.f32.mrb[0].mxu0
    %1289 = vmatprep.mubr.f32.mxu0 0.0
    %1290 = vmatmul.mubr.f32.gmra.mrb[0].mxu0 %v993
    %v1291 = vpop.f32.mrb[0].mxu0
    %v1292 = vadd.f32 %v1217, %v1291
    %v1293 = vpop.f32.mrb[0].mxu0
    %1294 = vdwg.mxu0
    %v1295 = vld [vmem:[%s7] sm:$0xff]
    %v1296 = vld [vmem:[%s7 + $0x8] sm:$0xff]
    %v1297 = vld [vmem:[%s7 + $0x10] sm:$0xff]
    %v1298 = vld [vmem:[%s7 + $0x18] sm:$0xff]
    %v1299 = vld [vmem:[%s7 + $0x20] sm:$0xff]
    %v1300 = vld [vmem:[%s7 + $0x28] sm:$0xff]
    %v1301 = vld [vmem:[%s7 + $0x30] sm:$0xff]
    %v1302 = vld [vmem:[%s7 + $0x38] sm:$0xff]
    %v1303 = vld [vmem:[%s7 + $0x40] sm:$0xff]
    %v1304 = vld [vmem:[%s7 + $0x48] sm:$0xff]
    %v1305 = vld [vmem:[%s7 + $0x50] sm:$0xff]
    %v1306 = vld [vmem:[%s7 + $0x58] sm:$0xff]
    %v1307 = vsel %vm249, %v1287, 0.0
    %v1308 = vsel %vm249, %v1292, 0.0
    %v1309 = vadd.f32 %v1307, %v1308
    %v1310 = vrot.slane %v1309, 4
    %v1311 = vadd.f32 %v1309, %v1310
    %v1312 = vrot.slane %v1311, 2
    %v1313 = vadd.f32 %v1311, %v1312
    %v1314 = vrot.slane %v1313, 1
    %v1315 = vadd.f32 %v1313, %v1314
    %v1317 = vsel %vm249, %v1315, 0
    %1319 = vmatprep.subr.mxu0 0.0
    %1320 = vmatpush1.msra.mxu0 %v1295
    %1321 = vmatprep.subr.mxu0 0.0
    %1322 = vmatpush1.msra.mxu0 %v1296
    %1323 = vmatprep.subr.mxu0 0.0
    %1324 = vmatpush1.msra.mxu0 %v1297
    %1325 = vmatprep.subr.mxu0 0.0
    %1326 = vmatpush1.msra.mxu0 %v1298
    %1327 = vmatprep.subr.mxu0 0.0
    %1328 = vmatpush1.msra.mxu0 %v1299
    %1329 = vmatprep.subr.mxu0 0.0
    %1330 = vmatpush1.msra.mxu0 %v1300
    %1331 = vmatprep.subr.mxu0 0.0
    %1332 = vmatpush1.msra.mxu0 %v1301
    %1333 = vmatprep.subr.mxu0 0.0
    %1334 = vmatpush1.msra.mxu0 %v1302
    %1335 = vmatprep.subr.mxu0 0.0
    %1336 = vmatpush1.msra.mxu0 %v1303
    %1337 = vmatprep.subr.mxu0 0.0
    %1338 = vmatpush1.msra.mxu0 %v1304
    %1339 = vmatprep.subr.mxu0 0.0
    %1340 = vmatpush1.msra.mxu0 %v1305
    %1341 = vmatprep.subr.mxu0 0.0
    %1342 = vmatpush1.msra.mxu0 %v1306
    %1343 = vmatprep.subr.mxu0 0.0
    %1344 = vmatpush1.msra.mxu0 0.0
    %1345 = vmatprep.subr.mxu0 0.0
    %1346 = vmatpush1.msra.mxu0 0.0
    %1347 = vmatprep.subr.mxu0 0.0
    %1348 = vmatpush1.msra.mxu0 0.0
    %1349 = vmatprep.subr.mxu0 0.0
    %1350 = vmatpush1.msra.mxu0 0.0
    %1351 = vmatprep.subr.mxu0 0.0
    %1352 = vmatpush1.msra.mxu0 0.0
    %1353 = vmatprep.subr.mxu0 0.0
    %1354 = vmatpush1.msra.mxu0 0.0
    %1355 = vmatprep.subr.mxu0 0.0
    %1356 = vmatpush1.msra.mxu0 0.0
    %1357 = vmatprep.subr.mxu0 0.0
    %1358 = vmatpush1.msra.mxu0 0.0
    %1359 = vmatprep.subr.mxu0 0.0
    %1360 = vmatpush1.msra.mxu0 0.0
    %1361 = vmatprep.subr.mxu0 0.0
    %1362 = vmatpush1.msra.mxu0 0.0
    %1363 = vmatprep.subr.mxu0 0.0
    %1364 = vmatpush1.msra.mxu0 0.0
    %1365 = vmatprep.subr.mxu0 0.0
    %1366 = vmatpush1.msra.mxu0 0.0
    %1367 = vmatprep.subr.mxu0 0.0
    %1368 = vmatpush1.msra.mxu0 0.0
    %1369 = vmatprep.subr.mxu0 0.0
    %1370 = vmatpush1.msra.mxu0 0.0
    %1371 = vmatprep.subr.mxu0 0.0
    %1372 = vmatpush1.msra.mxu0 0.0
    %1373 = vmatprep.subr.mxu0 0.0
    %1374 = vmatpush1.msra.mxu0 0.0
    %1375 = vmatprep.subr.mxu0 0.0
    %1376 = vmatpush1.msra.mxu0 0.0
    %1377 = vmatprep.subr.mxu0 0.0
    %1378 = vmatpush1.msra.mxu0 0.0
    %1379 = vmatprep.subr.mxu0 0.0
    %1380 = vmatpush1.msra.mxu0 0.0
    %1381 = vmatprep.subr.mxu0 0.0
    %1382 = vmatpush1.msra.mxu0 0.0
    %1383 = vmatprep.mubr.f32.mxu0 0.0
    %1384 = vmatmul.mubr.f32.gmra.mrb[0].mxu0 %v1317
    %v1385 = vpop.f32.mrb[0].mxu0
    %v1386 = vadd.f32 0.0, %v1385
    %v1387 = vpop.f32.mrb[0].mxu0
    %1388 = vdwg.mxu0
    %v1389 = vmul.f32 %v1386, 0.010416667
    %v1390 = vlaneseq
    %v1391 = vshrl.u32 %v1390, 7
    %v1392 = vsub.s32 0, %v1391
    %v1393 = vrot.slane %v1389, %v1392
    %v1394 = vsub.f32 %v1287, %v1393
    %v1395 = vsub.f32 %v1292, %v1393
    %v1396 = vmul.f32 %v1394, %v1394
    %v1397 = vmul.f32 %v1395, %v1395
    %v1398 = vsel %vm249, %v1396, 0.0
    %v1399 = vsel %vm249, %v1397, 0.0
    %v1400 = vadd.f32 %v1398, %v1399
    %v1401 = vrot.slane %v1400, 4
    %v1402 = vadd.f32 %v1400, %v1401
    %v1403 = vrot.slane %v1402, 2
    %v1404 = vadd.f32 %v1402, %v1403
    %v1405 = vrot.slane %v1404, 1
    %v1406 = vadd.f32 %v1404, %v1405
    %v1408 = vsel %vm249, %v1406, 0
    %1410 = vmatprep.subr.mxu0 0.0
    %1411 = vmatpush1.msra.mxu0 %v1295
    %1412 = vmatprep.subr.mxu0 0.0
    %1413 = vmatpush1.msra.mxu0 %v1296
    %1414 = vmatprep.subr.mxu0 0.0
    %1415 = vmatpush1.msra.mxu0 %v1297
    %1416 = vmatprep.subr.mxu0 0.0
    %1417 = vmatpush1.msra.mxu0 %v1298
    %1418 = vmatprep.subr.mxu0 0.0
    %1419 = vmatpush1.msra.mxu0 %v1299
    %1420 = vmatprep.subr.mxu0 0.0
    %1421 = vmatpush1.msra.mxu0 %v1300
    %1422 = vmatprep.subr.mxu0 0.0
    %1423 = vmatpush1.msra.mxu0 %v1301
    %1424 = vmatprep.subr.mxu0 0.0
    %1425 = vmatpush1.msra.mxu0 %v1302
    %1426 = vmatprep.subr.mxu0 0.0
    %1427 = vmatpush1.msra.mxu0 %v1303
    %1428 = vmatprep.subr.mxu0 0.0
    %1429 = vmatpush1.msra.mxu0 %v1304
    %1430 = vmatprep.subr.mxu0 0.0
    %1431 = vmatpush1.msra.mxu0 %v1305
    %1432 = vmatprep.subr.mxu0 0.0
    %1433 = vmatpush1.msra.mxu0 %v1306
    %1434 = vmatprep.subr.mxu0 0.0
    %1435 = vmatpush1.msra.mxu0 0.0
    %1436 = vmatprep.subr.mxu0 0.0
    %1437 = vmatpush1.msra.mxu0 0.0
    %1438 = vmatprep.subr.mxu0 0.0
    %1439 = vmatpush1.msra.mxu0 0.0
    %1440 = vmatprep.subr.mxu0 0.0
    %1441 = vmatpush1.msra.mxu0 0.0
    %1442 = vmatprep.subr.mxu0 0.0
    %1443 = vmatpush1.msra.mxu0 0.0
    %1444 = vmatprep.subr.mxu0 0.0
    %1445 = vmatpush1.msra.mxu0 0.0
    %1446 = vmatprep.subr.mxu0 0.0
    %1447 = vmatpush1.msra.mxu0 0.0
    %1448 = vmatprep.subr.mxu0 0.0
    %1449 = vmatpush1.msra.mxu0 0.0
    %1450 = vmatprep.subr.mxu0 0.0
    %1451 = vmatpush1.msra.mxu0 0.0
    %1452 = vmatprep.subr.mxu0 0.0
    %1453 = vmatpush1.msra.mxu0 0.0
    %1454 = vmatprep.subr.mxu0 0.0
    %1455 = vmatpush1.msra.mxu0 0.0
    %1456 = vmatprep.subr.mxu0 0.0
    %1457 = vmatpush1.msra.mxu0 0.0
    %1458 = vmatprep.subr.mxu0 0.0
    %1459 = vmatpush1.msra.mxu0 0.0
    %1460 = vmatprep.subr.mxu0 0.0
    %1461 = vmatpush1.msra.mxu0 0.0
    %1462 = vmatprep.subr.mxu0 0.0
    %1463 = vmatpush1.msra.mxu0 0.0
    %1464 = vmatprep.subr.mxu0 0.0
    %1465 = vmatpush1.msra.mxu0 0.0
    %1466 = vmatprep.subr.mxu0 0.0
    %1467 = vmatpush1.msra.mxu0 0.0
    %1468 = vmatprep.subr.mxu0 0.0
    %1469 = vmatpush1.msra.mxu0 0.0
    %1470 = vmatprep.subr.mxu0 0.0
    %1471 = vmatpush1.msra.mxu0 0.0
    %1472 = vmatprep.subr.mxu0 0.0
    %1473 = vmatpush1.msra.mxu0 0.0
    %1474 = vmatprep.mubr.f32.mxu0 0.0
    %1475 = vmatmul.mubr.f32.gmra.mrb[0].mxu0 %v1408
    %v1476 = vpop.f32.mrb[0].mxu0
    %v1477 = vadd.f32 0.0, %v1476
    %v1478 = vpop.f32.mrb[0].mxu0
    %1479 = vdwg.mxu0
    %v1480 = vmul.f32 %v1477, 0.010416667
    %v1481 = vadd.f32 %v1480, 1e-05
    %v1482 = vrsqrt.pop %v1481
    %v1484 = vrot.slane %v1482, 6
    %v1486 = vmul.f32 %v679, %v1484
    %v1487 = vlaneseq
    %v1488 = vshrl.u32 %v1487, 7
    %v1489 = vsub.s32 2, %v1488
    %v1490 = vrot.slane %v1486, %v1489
    %v1491 = vmul.f32 %v1394, %v1490
    %v1492 = vmul.f32 %v1395, %v1490
    %v1493 = vlaneseq
    %v1494 = vshrl.u32 %v1493, 7
    %v1495 = vsub.s32 3, %v1494
    %v1496 = vrot.slane %v679, %v1495
    %v1497 = vadd.f32 %v1491, %v1496
    %v1498 = vadd.f32 %v1492, %v1496
    %v1499 = vmax.f32 %v1497, 0.0
    %v1500 = vmax.f32 %v1498, 0.0
    %v1501 = vld [vmem:[%s12] sm:$0xff]
    %v1502 = vld [vmem:[%s9] sm:$0xff]
    %v1503 = vld [vmem:[%s9 + $0x8] sm:$0xff]
    %v1504 = vld [vmem:[%s9 + $0x10] sm:$0xff]
    %v1505 = vld [vmem:[%s9 + $0x18] sm:$0xff]
    %v1506 = vld [vmem:[%s9 + $0x20] sm:$0xff]
    %v1507 = vld [vmem:[%s9 + $0x28] sm:$0xff]
    %v1508 = vld [vmem:[%s9 + $0x30] sm:$0xff]
    %v1509 = vld [vmem:[%s9 + $0x38] sm:$0xff]
    %v1510 = vld [vmem:[%s9 + $0x40] sm:$0xff]
    %v1511 = vld [vmem:[%s9 + $0x48] sm:$0xff]
    %v1512 = vld [vmem:[%s9 + $0x50] sm:$0xff]
    %v1513 = vld [vmem:[%s9 + $0x58] sm:$0xff]
    %v1514 = vld [vmem:[%s9 + $0x60] sm:$0xff]
    %v1515 = vld [vmem:[%s9 + $0x68] sm:$0xff]
    %v1516 = vld [vmem:[%s9 + $0x70] sm:$0xff]
    %v1517 = vld [vmem:[%s9 + $0x78] sm:$0xff]
    %v1518 = vld [vmem:[%s9 + $0x80] sm:$0xff]
    %v1519 = vld [vmem:[%s9 + $0x88] sm:$0xff]
    %v1520 = vld [vmem:[%s9 + $0x90] sm:$0xff]
    %v1521 = vld [vmem:[%s9 + $0x98] sm:$0xff]
    %v1522 = vld [vmem:[%s9 + $0xa0] sm:$0xff]
    %v1523 = vld [vmem:[%s9 + $0xa8] sm:$0xff]
    %v1524 = vld [vmem:[%s9 + $0xb0] sm:$0xff]
    %v1525 = vld [vmem:[%s9 + $0xb8] sm:$0xff]
    %v1527 = vlaneseq
    %v1528 = vshrl.u32 %v1527, 7
    %v1529 = vsub.s32 0, %v1528
    %v1530 = vrot.slane %v1501, %v1529
    %v1531 = vlaneseq
    %v1532 = vshrl.u32 %v1531, 7
    %v1533 = vsub.s32 4, %v1532
    %v1534 = vrot.slane %v1501, %v1533
    %v1537 = vlaneseq
    %v1538 = vshrl.u32 %v1537, 7
    %v1539 = vsub.s32 0, %v1538
    %v1540 = vrot.slane %v1530, %v1539
    %v1541 = vlaneseq
    %v1542 = vshrl.u32 %v1541, 7
    %v1543 = vsub.s32 0, %v1542
    %v1544 = vrot.slane %v1534, %v1543
    %v1546 = vsel %vm249, %v1499, 0
    %v1549 = vsel %vm249, %v1500, 0
    %1551 = vmatprep.subr.mxu0 %v1503
    %1552 = vmatpush1.msra.mxu0 %v1502
    %1553 = vmatprep.subr.mxu0 %v1505
    %1554 = vmatpush1.msra.mxu0 %v1504
    %1555 = vmatprep.subr.mxu0 %v1507
    %1556 = vmatpush1.msra.mxu0 %v1506
    %1557 = vmatprep.subr.mxu0 %v1509
    %1558 = vmatpush1.msra.mxu0 %v1508
    %1559 = vmatprep.subr.mxu0 %v1511
    %1560 = vmatpush1.msra.mxu0 %v1510
    %1561 = vmatprep.subr.mxu0 %v1513
    %1562 = vmatpush1.msra.mxu0 %v1512
    %1563 = vmatprep.subr.mxu0 %v1515
    %1564 = vmatpush1.msra.mxu0 %v1514
    %1565 = vmatprep.subr.mxu0 %v1517
    %1566 = vmatpush1.msra.mxu0 %v1516
    %1567 = vmatprep.subr.mxu0 %v1519
    %1568 = vmatpush1.msra.mxu0 %v1518
    %1569 = vmatprep.subr.mxu0 %v1521
    %1570 = vmatpush1.msra.mxu0 %v1520
    %1571 = vmatprep.subr.mxu0 %v1523
    %1572 = vmatpush1.msra.mxu0 %v1522
    %1573 = vmatprep.subr.mxu0 %v1525
    %1574 = vmatpush1.msra.mxu0 %v1524
    %1575 = vmatprep.subr.mxu0 0.0
    %1576 = vmatpush1.msra.mxu0 0.0
    %1577 = vmatprep.subr.mxu0 0.0
    %1578 = vmatpush1.msra.mxu0 0.0
    %1579 = vmatprep.subr.mxu0 0.0
    %1580 = vmatpush1.msra.mxu0 0.0
    %1581 = vmatprep.subr.mxu0 0.0
    %1582 = vmatpush1.msra.mxu0 0.0
    %1583 = vmatprep.subr.mxu0 0.0
    %1584 = vmatpush1.msra.mxu0 0.0
    %1585 = vmatprep.subr.mxu0 0.0
    %1586 = vmatpush1.msra.mxu0 0.0
    %1587 = vmatprep.subr.mxu0 0.0
    %1588 = vmatpush1.msra.mxu0 0.0
    %1589 = vmatprep.subr.mxu0 0.0
    %1590 = vmatpush1.msra.mxu0 0.0
    %1591 = vmatprep.subr.mxu0 0.0
    %1592 = vmatpush1.msra.mxu0 0.0
    %1593 = vmatprep.subr.mxu0 0.0
    %1594 = vmatpush1.msra.mxu0 0.0
    %1595 = vmatprep.subr.mxu0 0.0
    %1596 = vmatpush1.msra.mxu0 0.0
    %1597 = vmatprep.subr.mxu0 0.0
    %1598 = vmatpush1.msra.mxu0 0.0
    %1599 = vmatprep.subr.mxu0 0.0
    %1600 = vmatpush1.msra.mxu0 0.0
    %1601 = vmatprep.subr.mxu0 0.0
    %1602 = vmatpush1.msra.mxu0 0.0
    %1603 = vmatprep.subr.mxu0 0.0
    %1604 = vmatpush1.msra.mxu0 0.0
    %1605 = vmatprep.subr.mxu0 0.0
    %1606 = vmatpush1.msra.mxu0 0.0
    %1607 = vmatprep.subr.mxu0 0.0
    %1608 = vmatpush1.msra.mxu0 0.0
    %1609 = vmatprep.subr.mxu0 0.0
    %1610 = vmatpush1.msra.mxu0 0.0
    %1611 = vmatprep.subr.mxu0 0.0
    %1612 = vmatpush1.msra.mxu0 0.0
    %1613 = vmatprep.subr.mxu0 0.0
    %1614 = vmatpush1.msra.mxu0 0.0
    %1615 = vmatprep.mubr.f32.mxu0 0.0
    %1616 = vmatmul.mubr.f32.gmra.mrb[0].mxu0 %v1546
    %v1617 = vpop.f32.mrb[0].mxu0
    %v1618 = vadd.f32 %v1540, %v1617
    %v1619 = vpop.f32.mrb[0].mxu0
    %v1620 = vadd.f32 %v1544, %v1619
    %1621 = vmatprep.mubr.f32.mxu0 0.0
    %1622 = vmatmul.mubr.f32.gmra.mrb[0].mxu0 %v1549
    %v1623 = vpop.f32.mrb[0].mxu0
    %v1624 = vadd.f32 %v1540, %v1623
    %v1625 = vpop.f32.mrb[0].mxu0
    %v1626 = vadd.f32 %v1544, %v1625
    %1627 = vdwg.mxu0
    %v1628 = vmax.f32 %v1618, 0.0
    %v1629 = vmax.f32 %v1620, 0.0
    %v1630 = vmax.f32 %v1624, 0.0
    %v1631 = vmax.f32 %v1626, 0.0
    %v1636 = vrot.slane %v1628, 4
    %v1637 = vrot.slane %v1629, 4
    %v1638 = vrot.slane %v1630, 4
    %v1639 = vrot.slane %v1631, 4
    %v1644 = vsel %vm61, 0.0, %v1636
    %v1645 = vsel %vm61, 0.0, %v1637
    %v1646 = vsel %vm61, 0.0, %v1638
    %v1647 = vsel %vm61, 0.0, %v1639
    %v1648 = vsel %vm61, %v1636, 0.0
    %v1649 = vsel %vm61, %v1637, 0.0
    %v1650 = vsel %vm61, %v1638, 0.0
    %v1651 = vsel %vm61, %v1639, 0.0
    %v1660 = vrot.slane %v1644, 1
    %v1661 = vrot.slane %v1648, 1
    %v1662 = vsel %vm156, %v1660, %v1661
    %v1663 = vrot.slane %v1645, 1
    %v1664 = vrot.slane %v1649, 1
    %v1665 = vsel %vm156, %v1663, %v1664
    %v1666 = vrot.slane %v1646, 1
    %v1667 = vrot.slane %v1650, 1
    %v1668 = vsel %vm156, %v1666, %v1667
    %v1669 = vrot.slane %v1647, 1
    %v1670 = vrot.slane %v1651, 1
    %v1671 = vsel %vm156, %v1669, %v1670
    %1672 = vrot.lane.b32.xlu0 %v1662, 64
    %v1673 = vpop.permute.xlu0 %1672
    %1674 = vrot.lane.b32.xlu0 %v1665, 64
    %v1675 = vpop.permute.xlu0 %1674
    %1676 = vrot.lane.b32.xlu0 %v1668, 64
    %v1677 = vpop.permute.xlu0 %1676
    %1678 = vrot.lane.b32.xlu0 %v1671, 64
    %v1679 = vpop.permute.xlu0 %1678
    %v1680 = vsel %vm255, %v1673, %v1675
    %v1681 = vsel %vm255, %v1677, %v1679
    %v1686 = vrot.slane %v1644, 2
    %v1687 = vrot.slane %v1648, 2
    %v1688 = vsel %vm169, %v1686, %v1687
    %v1689 = vrot.slane %v1645, 2
    %v1690 = vrot.slane %v1649, 2
    %v1691 = vsel %vm169, %v1689, %v1690
    %v1692 = vrot.slane %v1646, 2
    %v1693 = vrot.slane %v1650, 2
    %v1694 = vsel %vm169, %v1692, %v1693
    %v1695 = vrot.slane %v1647, 2
    %v1696 = vrot.slane %v1651, 2
    %v1697 = vsel %vm169, %v1695, %v1696
    %v1702 = vrot.slane %v1644, 3
    %v1703 = vrot.slane %v1648, 3
    %v1704 = vsel %vm182, %v1702, %v1703
    %v1705 = vrot.slane %v1645, 3
    %v1706 = vrot.slane %v1649, 3
    %v1707 = vsel %vm182, %v1705, %v1706
    %v1708 = vrot.slane %v1646, 3
    %v1709 = vrot.slane %v1650, 3
    %v1710 = vsel %vm182, %v1708, %v1709
    %v1711 = vrot.slane %v1647, 3
    %v1712 = vrot.slane %v1651, 3
    %v1713 = vsel %vm182, %v1711, %v1712
    %1714 = vrot.lane.b32.xlu0 %v1704, 64
    %v1715 = vpop.permute.xlu0 %1714
    %1716 = vrot.lane.b32.xlu0 %v1707, 64
    %v1717 = vpop.permute.xlu0 %1716
    %1718 = vrot.lane.b32.xlu0 %v1710, 64
    %v1719 = vpop.permute.xlu0 %1718
    %1720 = vrot.lane.b32.xlu0 %v1713, 64
    %v1721 = vpop.permute.xlu0 %1720
    %v1722 = vsel %vm255, %v1715, %v1717
    %v1723 = vsel %vm255, %v1719, %v1721
    %v1728 = vrot.slane %v1644, 4
    %v1729 = vrot.slane %v1648, 4
    %v1730 = vsel %vm61, %v1728, %v1729
    %v1731 = vrot.slane %v1645, 4
    %v1732 = vrot.slane %v1649, 4
    %v1733 = vsel %vm61, %v1731, %v1732
    %v1734 = vrot.slane %v1646, 4
    %v1735 = vrot.slane %v1650, 4
    %v1736 = vsel %vm61, %v1734, %v1735
    %v1737 = vrot.slane %v1647, 4
    %v1738 = vrot.slane %v1651, 4
    %v1739 = vsel %vm61, %v1737, %v1738
    %v1744 = vrot.slane %v1644, 5
    %v1745 = vrot.slane %v1648, 5
    %v1746 = vsel %vm207, %v1744, %v1745
    %v1747 = vrot.slane %v1645, 5
    %v1748 = vrot.slane %v1649, 5
    %v1749 = vsel %vm207, %v1747, %v1748
    %v1750 = vrot.slane %v1646, 5
    %v1751 = vrot.slane %v1650, 5
    %v1752 = vsel %vm207, %v1750, %v1751
    %v1753 = vrot.slane %v1647, 5
    %v1754 = vrot.slane %v1651, 5
    %v1755 = vsel %vm207, %v1753, %v1754
    %1756 = vrot.lane.b32.xlu0 %v1746, 64
    %v1757 = vpop.permute.xlu0 %1756
    %1758 = vrot.lane.b32.xlu0 %v1749, 64
    %v1759 = vpop.permute.xlu0 %1758
    %1760 = vrot.lane.b32.xlu0 %v1752, 64
    %v1761 = vpop.permute.xlu0 %1760
    %1762 = vrot.lane.b32.xlu0 %v1755, 64
    %v1763 = vpop.permute.xlu0 %1762
    %v1764 = vsel %vm255, %v1757, %v1759
    %v1765 = vsel %vm255, %v1761, %v1763
    %v1770 = vrot.slane %v1644, 6
    %v1771 = vrot.slane %v1648, 6
    %v1772 = vsel %vm220, %v1770, %v1771
    %v1773 = vrot.slane %v1645, 6
    %v1774 = vrot.slane %v1649, 6
    %v1775 = vsel %vm220, %v1773, %v1774
    %v1776 = vrot.slane %v1646, 6
    %v1777 = vrot.slane %v1650, 6
    %v1778 = vsel %vm220, %v1776, %v1777
    %v1779 = vrot.slane %v1647, 6
    %v1780 = vrot.slane %v1651, 6
    %v1781 = vsel %vm220, %v1779, %v1780
    %v1786 = vrot.slane %v1644, 7
    %v1787 = vrot.slane %v1648, 7
    %v1788 = vsel %vm233, %v1786, %v1787
    %v1789 = vrot.slane %v1645, 7
    %v1790 = vrot.slane %v1649, 7
    %v1791 = vsel %vm233, %v1789, %v1790
    %v1792 = vrot.slane %v1646, 7
    %v1793 = vrot.slane %v1650, 7
    %v1794 = vsel %vm233, %v1792, %v1793
    %v1795 = vrot.slane %v1647, 7
    %v1796 = vrot.slane %v1651, 7
    %v1797 = vsel %vm233, %v1795, %v1796
    %1798 = vrot.lane.b32.xlu0 %v1788, 64
    %v1799 = vpop.permute.xlu0 %1798
    %1800 = vrot.lane.b32.xlu0 %v1791, 64
    %v1801 = vpop.permute.xlu0 %1800
    %1802 = vrot.lane.b32.xlu0 %v1794, 64
    %v1803 = vpop.permute.xlu0 %1802
    %1804 = vrot.lane.b32.xlu0 %v1797, 64
    %v1805 = vpop.permute.xlu0 %1804
    %v1806 = vsel %vm255, %v1799, %v1801
    %v1807 = vsel %vm255, %v1803, %v1805
    %v1812 = vsel %vm255, %v1645, %v1673
    %v1813 = vsel %vm255, %v1647, %v1677
    %v1814 = vsel %vm255, %v1691, %v1715
    %v1815 = vsel %vm255, %v1697, %v1719
    %v1816 = vsel %vm255, %v1733, %v1757
    %v1817 = vsel %vm255, %v1739, %v1761
    %v1818 = vsel %vm255, %v1775, %v1799
    %v1819 = vsel %vm255, %v1781, %v1803
    %v1820 = vld [vmem:[%s10] sm:$0xff]
    %v1821 = vld [vmem:[%s10 + $0x8] sm:$0xff]
    %v1822 = vld [vmem:[%s10 + $0x10] sm:$0xff]
    %v1823 = vld [vmem:[%s10 + $0x18] sm:$0xff]
    %v1824 = vld [vmem:[%s10 + $0x20] sm:$0xff]
    %v1825 = vld [vmem:[%s10 + $0x28] sm:$0xff]
    %v1826 = vld [vmem:[%s10 + $0x30] sm:$0xff]
    %v1827 = vld [vmem:[%s10 + $0x38] sm:$0xff]
    %v1828 = vld [vmem:[%s10 + $0x40] sm:$0xff]
    %v1829 = vld [vmem:[%s10 + $0x48] sm:$0xff]
    %v1830 = vld [vmem:[%s10 + $0x50] sm:$0xff]
    %v1831 = vld [vmem:[%s10 + $0x58] sm:$0xff]
    %v1832 = vld [vmem:[%s10 + $0x60] sm:$0xff]
    %v1833 = vld [vmem:[%s10 + $0x68] sm:$0xff]
    %v1834 = vld [vmem:[%s10 + $0x70] sm:$0xff]
    %v1835 = vld [vmem:[%s10 + $0x78] sm:$0xff]
    %v1836 = vld [vmem:[%s10 + $0x80] sm:$0xff]
    %v1837 = vld [vmem:[%s10 + $0x88] sm:$0xff]
    %v1838 = vld [vmem:[%s10 + $0x90] sm:$0xff]
    %v1839 = vld [vmem:[%s10 + $0x98] sm:$0xff]
    %v1840 = vld [vmem:[%s10 + $0xa0] sm:$0xff]
    %v1841 = vld [vmem:[%s10 + $0xa8] sm:$0xff]
    %v1842 = vld [vmem:[%s10 + $0xb0] sm:$0xff]
    %v1843 = vld [vmem:[%s10 + $0xb8] sm:$0xff]
    %v1844 = vld [vmem:[%s10 + $0xc0] sm:$0xff]
    %v1845 = vld [vmem:[%s10 + $0xc8] sm:$0xff]
    %v1846 = vld [vmem:[%s10 + $0xd0] sm:$0xff]
    %v1847 = vld [vmem:[%s10 + $0xd8] sm:$0xff]
    %v1848 = vld [vmem:[%s10 + $0xe0] sm:$0xff]
    %v1849 = vld [vmem:[%s10 + $0xe8] sm:$0xff]
    %v1850 = vld [vmem:[%s10 + $0xf0] sm:$0xff]
    %v1851 = vld [vmem:[%s10 + $0xf8] sm:$0xff]
    %v1852 = vld [vmem:[%s10 + $0x100] sm:$0xff]
    %v1853 = vld [vmem:[%s10 + $0x108] sm:$0xff]
    %v1854 = vld [vmem:[%s10 + $0x110] sm:$0xff]
    %v1855 = vld [vmem:[%s10 + $0x118] sm:$0xff]
    %v1856 = vld [vmem:[%s10 + $0x120] sm:$0xff]
    %v1857 = vld [vmem:[%s10 + $0x128] sm:$0xff]
    %v1858 = vld [vmem:[%s10 + $0x130] sm:$0xff]
    %v1859 = vld [vmem:[%s10 + $0x138] sm:$0xff]
    %v1860 = vld [vmem:[%s10 + $0x140] sm:$0xff]
    %v1861 = vld [vmem:[%s10 + $0x148] sm:$0xff]
    %v1862 = vld [vmem:[%s10 + $0x150] sm:$0xff]
    %v1863 = vld [vmem:[%s10 + $0x158] sm:$0xff]
    %v1864 = vld [vmem:[%s10 + $0x160] sm:$0xff]
    %v1865 = vld [vmem:[%s10 + $0x168] sm:$0xff]
    %v1866 = vld [vmem:[%s10 + $0x170] sm:$0xff]
    %v1867 = vld [vmem:[%s10 + $0x178] sm:$0xff]
    %v1868 = vld [vmem:[%s10 + $0x180] sm:$0xff]
    %v1869 = vld [vmem:[%s10 + $0x188] sm:$0xff]
    %v1870 = vld [vmem:[%s10 + $0x190] sm:$0xff]
    %v1871 = vld [vmem:[%s10 + $0x198] sm:$0xff]
    %v1872 = vld [vmem:[%s10 + $0x1a0] sm:$0xff]
    %v1873 = vld [vmem:[%s10 + $0x1a8] sm:$0xff]
    %v1874 = vld [vmem:[%s10 + $0x1b0] sm:$0xff]
    %v1875 = vld [vmem:[%s10 + $0x1b8] sm:$0xff]
    %v1876 = vld [vmem:[%s10 + $0x1c0] sm:$0xff]
    %v1877 = vld [vmem:[%s10 + $0x1c8] sm:$0xff]
    %v1878 = vld [vmem:[%s10 + $0x1d0] sm:$0xff]
    %v1879 = vld [vmem:[%s10 + $0x1d8] sm:$0xff]
    %v1880 = vld [vmem:[%s10 + $0x1e0] sm:$0xff]
    %v1881 = vld [vmem:[%s10 + $0x1e8] sm:$0xff]
    %v1882 = vld [vmem:[%s10 + $0x1f0] sm:$0xff]
    %v1883 = vld [vmem:[%s10 + $0x1f8] sm:$0xff]
    %v1884 = vld [vmem:[%s10 + $0x200] sm:$0xff]
    %v1885 = vld [vmem:[%s10 + $0x208] sm:$0xff]
    %v1886 = vld [vmem:[%s10 + $0x210] sm:$0xff]
    %v1887 = vld [vmem:[%s10 + $0x218] sm:$0xff]
    %v1888 = vld [vmem:[%s10 + $0x220] sm:$0xff]
    %v1889 = vld [vmem:[%s10 + $0x228] sm:$0xff]
    %v1890 = vld [vmem:[%s10 + $0x230] sm:$0xff]
    %v1891 = vld [vmem:[%s10 + $0x238] sm:$0xff]
    %v1892 = vld [vmem:[%s10 + $0x240] sm:$0xff]
    %v1893 = vld [vmem:[%s10 + $0x248] sm:$0xff]
    %v1894 = vld [vmem:[%s10 + $0x250] sm:$0xff]
    %v1895 = vld [vmem:[%s10 + $0x258] sm:$0xff]
    %v1896 = vld [vmem:[%s10 + $0x260] sm:$0xff]
    %v1897 = vld [vmem:[%s10 + $0x268] sm:$0xff]
    %v1898 = vld [vmem:[%s10 + $0x270] sm:$0xff]
    %v1899 = vld [vmem:[%s10 + $0x278] sm:$0xff]
    %v1900 = vld [vmem:[%s10 + $0x280] sm:$0xff]
    %v1901 = vld [vmem:[%s10 + $0x288] sm:$0xff]
    %v1902 = vld [vmem:[%s10 + $0x290] sm:$0xff]
    %v1903 = vld [vmem:[%s10 + $0x298] sm:$0xff]
    %v1904 = vld [vmem:[%s10 + $0x2a0] sm:$0xff]
    %v1905 = vld [vmem:[%s10 + $0x2a8] sm:$0xff]
    %v1906 = vld [vmem:[%s10 + $0x2b0] sm:$0xff]
    %v1907 = vld [vmem:[%s10 + $0x2b8] sm:$0xff]
    %v1908 = vld [vmem:[%s10 + $0x2c0] sm:$0xff]
    %v1909 = vld [vmem:[%s10 + $0x2c8] sm:$0xff]
    %v1910 = vld [vmem:[%s10 + $0x2d0] sm:$0xff]
    %v1911 = vld [vmem:[%s10 + $0x2d8] sm:$0xff]
    %v1912 = vld [vmem:[%s10 + $0x2e0] sm:$0xff]
    %v1913 = vld [vmem:[%s10 + $0x2e8] sm:$0xff]
    %v1914 = vld [vmem:[%s10 + $0x2f0] sm:$0xff]
    %v1915 = vld [vmem:[%s10 + $0x2f8] sm:$0xff]
    %v1916 = vld [vmem:[%s10 + $0x300] sm:$0xff]
    %v1917 = vld [vmem:[%s10 + $0x308] sm:$0xff]
    %v1918 = vld [vmem:[%s10 + $0x310] sm:$0xff]
    %v1919 = vld [vmem:[%s10 + $0x318] sm:$0xff]
    %v1920 = vld [vmem:[%s10 + $0x320] sm:$0xff]
    %v1921 = vld [vmem:[%s10 + $0x328] sm:$0xff]
    %v1922 = vld [vmem:[%s10 + $0x330] sm:$0xff]
    %v1923 = vld [vmem:[%s10 + $0x338] sm:$0xff]
    %v1924 = vld [vmem:[%s10 + $0x340] sm:$0xff]
    %v1925 = vld [vmem:[%s10 + $0x348] sm:$0xff]
    %v1926 = vld [vmem:[%s10 + $0x350] sm:$0xff]
    %v1927 = vld [vmem:[%s10 + $0x358] sm:$0xff]
    %v1928 = vld [vmem:[%s10 + $0x360] sm:$0xff]
    %v1929 = vld [vmem:[%s10 + $0x368] sm:$0xff]
    %v1930 = vld [vmem:[%s10 + $0x370] sm:$0xff]
    %v1931 = vld [vmem:[%s10 + $0x378] sm:$0xff]
    %v1932 = vld [vmem:[%s10 + $0x380] sm:$0xff]
    %v1933 = vld [vmem:[%s10 + $0x388] sm:$0xff]
    %v1934 = vld [vmem:[%s10 + $0x390] sm:$0xff]
    %v1935 = vld [vmem:[%s10 + $0x398] sm:$0xff]
    %v1936 = vld [vmem:[%s10 + $0x3a0] sm:$0xff]
    %v1937 = vld [vmem:[%s10 + $0x3a8] sm:$0xff]
    %v1938 = vld [vmem:[%s10 + $0x3b0] sm:$0xff]
    %v1939 = vld [vmem:[%s10 + $0x3b8] sm:$0xff]
    %v1940 = vld [vmem:[%s10 + $0x3c0] sm:$0xff]
    %v1941 = vld [vmem:[%s10 + $0x3c8] sm:$0xff]
    %v1942 = vld [vmem:[%s10 + $0x3d0] sm:$0xff]
    %v1943 = vld [vmem:[%s10 + $0x3d8] sm:$0xff]
    %v1944 = vld [vmem:[%s10 + $0x3e0] sm:$0xff]
    %v1945 = vld [vmem:[%s10 + $0x3e8] sm:$0xff]
    %v1946 = vld [vmem:[%s10 + $0x3f0] sm:$0xff]
    %v1947 = vld [vmem:[%s10 + $0x3f8] sm:$0xff]
    %v1948 = vld [vmem:[%s10 + $0x400] sm:$0xff]
    %v1949 = vld [vmem:[%s10 + $0x408] sm:$0xff]
    %v1950 = vld [vmem:[%s10 + $0x410] sm:$0xff]
    %v1951 = vld [vmem:[%s10 + $0x418] sm:$0xff]
    %v1952 = vld [vmem:[%s10 + $0x420] sm:$0xff]
    %v1953 = vld [vmem:[%s10 + $0x428] sm:$0xff]
    %v1954 = vld [vmem:[%s10 + $0x430] sm:$0xff]
    %v1955 = vld [vmem:[%s10 + $0x438] sm:$0xff]
    %v1956 = vld [vmem:[%s10 + $0x440] sm:$0xff]
    %v1957 = vld [vmem:[%s10 + $0x448] sm:$0xff]
    %v1958 = vld [vmem:[%s10 + $0x450] sm:$0xff]
    %v1959 = vld [vmem:[%s10 + $0x458] sm:$0xff]
    %v1960 = vld [vmem:[%s10 + $0x460] sm:$0xff]
    %v1961 = vld [vmem:[%s10 + $0x468] sm:$0xff]
    %v1962 = vld [vmem:[%s10 + $0x470] sm:$0xff]
    %v1963 = vld [vmem:[%s10 + $0x478] sm:$0xff]
    %v1964 = vld [vmem:[%s10 + $0x480] sm:$0xff]
    %v1965 = vld [vmem:[%s10 + $0x488] sm:$0xff]
    %v1966 = vld [vmem:[%s10 + $0x490] sm:$0xff]
    %v1967 = vld [vmem:[%s10 + $0x498] sm:$0xff]
    %v1968 = vld [vmem:[%s10 + $0x4a0] sm:$0xff]
    %v1969 = vld [vmem:[%s10 + $0x4a8] sm:$0xff]
    %v1970 = vld [vmem:[%s10 + $0x4b0] sm:$0xff]
    %v1971 = vld [vmem:[%s10 + $0x4b8] sm:$0xff]
    %v1972 = vld [vmem:[%s10 + $0x4c0] sm:$0xff]
    %v1973 = vld [vmem:[%s10 + $0x4c8] sm:$0xff]
    %v1974 = vld [vmem:[%s10 + $0x4d0] sm:$0xff]
    %v1975 = vld [vmem:[%s10 + $0x4d8] sm:$0xff]
    %v1976 = vld [vmem:[%s10 + $0x4e0] sm:$0xff]
    %v1977 = vld [vmem:[%s10 + $0x4e8] sm:$0xff]
    %v1978 = vld [vmem:[%s10 + $0x4f0] sm:$0xff]
    %v1979 = vld [vmem:[%s10 + $0x4f8] sm:$0xff]
    %v1980 = vld [vmem:[%s10 + $0x500] sm:$0xff]
    %v1981 = vld [vmem:[%s10 + $0x508] sm:$0xff]
    %v1982 = vld [vmem:[%s10 + $0x510] sm:$0xff]
    %v1983 = vld [vmem:[%s10 + $0x518] sm:$0xff]
    %v1984 = vld [vmem:[%s10 + $0x520] sm:$0xff]
    %v1985 = vld [vmem:[%s10 + $0x528] sm:$0xff]
    %v1986 = vld [vmem:[%s10 + $0x530] sm:$0xff]
    %v1987 = vld [vmem:[%s10 + $0x538] sm:$0xff]
    %v1988 = vld [vmem:[%s10 + $0x540] sm:$0xff]
    %v1989 = vld [vmem:[%s10 + $0x548] sm:$0xff]
    %v1990 = vld [vmem:[%s10 + $0x550] sm:$0xff]
    %v1991 = vld [vmem:[%s10 + $0x558] sm:$0xff]
    %v1992 = vld [vmem:[%s10 + $0x560] sm:$0xff]
    %v1993 = vld [vmem:[%s10 + $0x568] sm:$0xff]
    %v1994 = vld [vmem:[%s10 + $0x570] sm:$0xff]
    %v1995 = vld [vmem:[%s10 + $0x578] sm:$0xff]
    %v1996 = vld [vmem:[%s10 + $0x580] sm:$0xff]
    %v1997 = vld [vmem:[%s10 + $0x588] sm:$0xff]
    %v1998 = vld [vmem:[%s10 + $0x590] sm:$0xff]
    %v1999 = vld [vmem:[%s10 + $0x598] sm:$0xff]
    %v2000 = vld [vmem:[%s10 + $0x5a0] sm:$0xff]
    %v2001 = vld [vmem:[%s10 + $0x5a8] sm:$0xff]
    %v2002 = vld [vmem:[%s10 + $0x5b0] sm:$0xff]
    %v2003 = vld [vmem:[%s10 + $0x5b8] sm:$0xff]
    %v2004 = vld [vmem:[%s10 + $0x5c0] sm:$0xff]
    %v2005 = vld [vmem:[%s10 + $0x5c8] sm:$0xff]
    %v2006 = vld [vmem:[%s10 + $0x5d0] sm:$0xff]
    %v2007 = vld [vmem:[%s10 + $0x5d8] sm:$0xff]
    %v2008 = vld [vmem:[%s10 + $0x5e0] sm:$0xff]
    %v2009 = vld [vmem:[%s10 + $0x5e8] sm:$0xff]
    %v2010 = vld [vmem:[%s10 + $0x5f0] sm:$0xff]
    %v2011 = vld [vmem:[%s10 + $0x5f8] sm:$0xff]
    %v2012 = vld [vmem:[%s10 + $0x600] sm:$0xff]
    %v2013 = vld [vmem:[%s10 + $0x608] sm:$0xff]
    %v2014 = vld [vmem:[%s10 + $0x610] sm:$0xff]
    %v2015 = vld [vmem:[%s10 + $0x618] sm:$0xff]
    %v2016 = vld [vmem:[%s10 + $0x620] sm:$0xff]
    %v2017 = vld [vmem:[%s10 + $0x628] sm:$0xff]
    %v2018 = vld [vmem:[%s10 + $0x630] sm:$0xff]
    %v2019 = vld [vmem:[%s10 + $0x638] sm:$0xff]
    %v2020 = vld [vmem:[%s10 + $0x640] sm:$0xff]
    %v2021 = vld [vmem:[%s10 + $0x648] sm:$0xff]
    %v2022 = vld [vmem:[%s10 + $0x650] sm:$0xff]
    %v2023 = vld [vmem:[%s10 + $0x658] sm:$0xff]
    %v2024 = vld [vmem:[%s10 + $0x660] sm:$0xff]
    %v2025 = vld [vmem:[%s10 + $0x668] sm:$0xff]
    %v2026 = vld [vmem:[%s10 + $0x670] sm:$0xff]
    %v2027 = vld [vmem:[%s10 + $0x678] sm:$0xff]
    %v2028 = vld [vmem:[%s10 + $0x680] sm:$0xff]
    %v2029 = vld [vmem:[%s10 + $0x688] sm:$0xff]
    %v2030 = vld [vmem:[%s10 + $0x690] sm:$0xff]
    %v2031 = vld [vmem:[%s10 + $0x698] sm:$0xff]
    %v2032 = vld [vmem:[%s10 + $0x6a0] sm:$0xff]
    %v2033 = vld [vmem:[%s10 + $0x6a8] sm:$0xff]
    %v2034 = vld [vmem:[%s10 + $0x6b0] sm:$0xff]
    %v2035 = vld [vmem:[%s10 + $0x6b8] sm:$0xff]
    %v2036 = vld [vmem:[%s10 + $0x6c0] sm:$0xff]
    %v2037 = vld [vmem:[%s10 + $0x6c8] sm:$0xff]
    %v2038 = vld [vmem:[%s10 + $0x6d0] sm:$0xff]
    %v2039 = vld [vmem:[%s10 + $0x6d8] sm:$0xff]
    %v2040 = vld [vmem:[%s10 + $0x6e0] sm:$0xff]
    %v2041 = vld [vmem:[%s10 + $0x6e8] sm:$0xff]
    %v2042 = vld [vmem:[%s10 + $0x6f0] sm:$0xff]
    %v2043 = vld [vmem:[%s10 + $0x6f8] sm:$0xff]
    %v2044 = vld [vmem:[%s10 + $0x700] sm:$0xff]
    %v2045 = vld [vmem:[%s10 + $0x708] sm:$0xff]
    %v2046 = vld [vmem:[%s10 + $0x710] sm:$0xff]
    %v2047 = vld [vmem:[%s10 + $0x718] sm:$0xff]
    %v2048 = vld [vmem:[%s10 + $0x720] sm:$0xff]
    %v2049 = vld [vmem:[%s10 + $0x728] sm:$0xff]
    %v2050 = vld [vmem:[%s10 + $0x730] sm:$0xff]
    %v2051 = vld [vmem:[%s10 + $0x738] sm:$0xff]
    %v2052 = vld [vmem:[%s10 + $0x740] sm:$0xff]
    %v2053 = vld [vmem:[%s10 + $0x748] sm:$0xff]
    %v2054 = vld [vmem:[%s10 + $0x750] sm:$0xff]
    %v2055 = vld [vmem:[%s10 + $0x758] sm:$0xff]
    %v2056 = vld [vmem:[%s10 + $0x760] sm:$0xff]
    %v2057 = vld [vmem:[%s10 + $0x768] sm:$0xff]
    %v2058 = vld [vmem:[%s10 + $0x770] sm:$0xff]
    %v2059 = vld [vmem:[%s10 + $0x778] sm:$0xff]
    %v2060 = vld [vmem:[%s10 + $0x780] sm:$0xff]
    %v2061 = vld [vmem:[%s10 + $0x788] sm:$0xff]
    %v2062 = vld [vmem:[%s10 + $0x790] sm:$0xff]
    %v2063 = vld [vmem:[%s10 + $0x798] sm:$0xff]
    %v2064 = vld [vmem:[%s10 + $0x7a0] sm:$0xff]
    %v2065 = vld [vmem:[%s10 + $0x7a8] sm:$0xff]
    %v2066 = vld [vmem:[%s10 + $0x7b0] sm:$0xff]
    %v2067 = vld [vmem:[%s10 + $0x7b8] sm:$0xff]
    %v2068 = vld [vmem:[%s10 + $0x7c0] sm:$0xff]
    %v2069 = vld [vmem:[%s10 + $0x7c8] sm:$0xff]
    %v2070 = vld [vmem:[%s10 + $0x7d0] sm:$0xff]
    %v2071 = vld [vmem:[%s10 + $0x7d8] sm:$0xff]
    %v2072 = vld [vmem:[%s10 + $0x7e0] sm:$0xff]
    %v2073 = vld [vmem:[%s10 + $0x7e8] sm:$0xff]
    %v2074 = vld [vmem:[%s10 + $0x7f0] sm:$0xff]
    %v2075 = vld [vmem:[%s10 + $0x7f8] sm:$0xff]
    %v2076 = vld [vmem:[%s10 + $0x800] sm:$0xff]
    %v2077 = vld [vmem:[%s10 + $0x808] sm:$0xff]
    %v2078 = vld [vmem:[%s10 + $0x810] sm:$0xff]
    %v2079 = vld [vmem:[%s10 + $0x818] sm:$0xff]
    %v2080 = vld [vmem:[%s10 + $0x820] sm:$0xff]
    %v2081 = vld [vmem:[%s10 + $0x828] sm:$0xff]
    %v2082 = vld [vmem:[%s10 + $0x830] sm:$0xff]
    %v2083 = vld [vmem:[%s10 + $0x838] sm:$0xff]
    %v2084 = vld [vmem:[%s10 + $0x840] sm:$0xff]
    %v2085 = vld [vmem:[%s10 + $0x848] sm:$0xff]
    %v2086 = vld [vmem:[%s10 + $0x850] sm:$0xff]
    %v2087 = vld [vmem:[%s10 + $0x858] sm:$0xff]
    %v2088 = vld [vmem:[%s10 + $0x860] sm:$0xff]
    %v2089 = vld [vmem:[%s10 + $0x868] sm:$0xff]
    %v2090 = vld [vmem:[%s10 + $0x870] sm:$0xff]
    %v2091 = vld [vmem:[%s10 + $0x878] sm:$0xff]
    %v2092 = vld [vmem:[%s10 + $0x880] sm:$0xff]
    %v2093 = vld [vmem:[%s10 + $0x888] sm:$0xff]
    %v2094 = vld [vmem:[%s10 + $0x890] sm:$0xff]
    %v2095 = vld [vmem:[%s10 + $0x898] sm:$0xff]
    %v2096 = vld [vmem:[%s10 + $0x8a0] sm:$0xff]
    %v2097 = vld [vmem:[%s10 + $0x8a8] sm:$0xff]
    %v2098 = vld [vmem:[%s10 + $0x8b0] sm:$0xff]
    %v2099 = vld [vmem:[%s10 + $0x8b8] sm:$0xff]
    %v2100 = vld [vmem:[%s10 + $0x8c0] sm:$0xff]
    %v2101 = vld [vmem:[%s10 + $0x8c8] sm:$0xff]
    %v2102 = vld [vmem:[%s10 + $0x8d0] sm:$0xff]
    %v2103 = vld [vmem:[%s10 + $0x8d8] sm:$0xff]
    %v2104 = vld [vmem:[%s10 + $0x8e0] sm:$0xff]
    %v2105 = vld [vmem:[%s10 + $0x8e8] sm:$0xff]
    %v2106 = vld [vmem:[%s10 + $0x8f0] sm:$0xff]
    %v2107 = vld [vmem:[%s10 + $0x8f8] sm:$0xff]
    %v2108 = vld [vmem:[%s10 + $0x900] sm:$0xff]
    %v2109 = vld [vmem:[%s10 + $0x908] sm:$0xff]
    %v2110 = vld [vmem:[%s10 + $0x910] sm:$0xff]
    %v2111 = vld [vmem:[%s10 + $0x918] sm:$0xff]
    %v2112 = vld [vmem:[%s10 + $0x920] sm:$0xff]
    %v2113 = vld [vmem:[%s10 + $0x928] sm:$0xff]
    %v2114 = vld [vmem:[%s10 + $0x930] sm:$0xff]
    %v2115 = vld [vmem:[%s10 + $0x938] sm:$0xff]
    %v2116 = vld [vmem:[%s10 + $0x940] sm:$0xff]
    %v2117 = vld [vmem:[%s10 + $0x948] sm:$0xff]
    %v2118 = vld [vmem:[%s10 + $0x950] sm:$0xff]
    %v2119 = vld [vmem:[%s10 + $0x958] sm:$0xff]
    %v2120 = vld [vmem:[%s10 + $0x960] sm:$0xff]
    %v2121 = vld [vmem:[%s10 + $0x968] sm:$0xff]
    %v2122 = vld [vmem:[%s10 + $0x970] sm:$0xff]
    %v2123 = vld [vmem:[%s10 + $0x978] sm:$0xff]
    %v2124 = vld [vmem:[%s10 + $0x980] sm:$0xff]
    %v2125 = vld [vmem:[%s10 + $0x988] sm:$0xff]
    %v2126 = vld [vmem:[%s10 + $0x990] sm:$0xff]
    %v2127 = vld [vmem:[%s10 + $0x998] sm:$0xff]
    %v2128 = vld [vmem:[%s10 + $0x9a0] sm:$0xff]
    %v2129 = vld [vmem:[%s10 + $0x9a8] sm:$0xff]
    %v2130 = vld [vmem:[%s10 + $0x9b0] sm:$0xff]
    %v2131 = vld [vmem:[%s10 + $0x9b8] sm:$0xff]
    %v2132 = vld [vmem:[%s10 + $0x9c0] sm:$0xff]
    %v2133 = vld [vmem:[%s10 + $0x9c8] sm:$0xff]
    %v2134 = vld [vmem:[%s10 + $0x9d0] sm:$0xff]
    %v2135 = vld [vmem:[%s10 + $0x9d8] sm:$0xff]
    %v2136 = vld [vmem:[%s10 + $0x9e0] sm:$0xff]
    %v2137 = vld [vmem:[%s10 + $0x9e8] sm:$0xff]
    %v2138 = vld [vmem:[%s10 + $0x9f0] sm:$0xff]
    %v2139 = vld [vmem:[%s10 + $0x9f8] sm:$0xff]
    %v2140 = vld [vmem:[%s10 + $0xa00] sm:$0xff]
    %v2141 = vld [vmem:[%s10 + $0xa08] sm:$0xff]
    %v2142 = vld [vmem:[%s10 + $0xa10] sm:$0xff]
    %v2143 = vld [vmem:[%s10 + $0xa18] sm:$0xff]
    %v2144 = vld [vmem:[%s10 + $0xa20] sm:$0xff]
    %v2145 = vld [vmem:[%s10 + $0xa28] sm:$0xff]
    %v2146 = vld [vmem:[%s10 + $0xa30] sm:$0xff]
    %v2147 = vld [vmem:[%s10 + $0xa38] sm:$0xff]
    %v2148 = vld [vmem:[%s10 + $0xa40] sm:$0xff]
    %v2149 = vld [vmem:[%s10 + $0xa48] sm:$0xff]
    %v2150 = vld [vmem:[%s10 + $0xa50] sm:$0xff]
    %v2151 = vld [vmem:[%s10 + $0xa58] sm:$0xff]
    %v2152 = vld [vmem:[%s10 + $0xa60] sm:$0xff]
    %v2153 = vld [vmem:[%s10 + $0xa68] sm:$0xff]
    %v2154 = vld [vmem:[%s10 + $0xa70] sm:$0xff]
    %v2155 = vld [vmem:[%s10 + $0xa78] sm:$0xff]
    %v2156 = vld [vmem:[%s10 + $0xa80] sm:$0xff]
    %v2157 = vld [vmem:[%s10 + $0xa88] sm:$0xff]
    %v2158 = vld [vmem:[%s10 + $0xa90] sm:$0xff]
    %v2159 = vld [vmem:[%s10 + $0xa98] sm:$0xff]
    %v2160 = vld [vmem:[%s10 + $0xaa0] sm:$0xff]
    %v2161 = vld [vmem:[%s10 + $0xaa8] sm:$0xff]
    %v2162 = vld [vmem:[%s10 + $0xab0] sm:$0xff]
    %v2163 = vld [vmem:[%s10 + $0xab8] sm:$0xff]
    %v2164 = vld [vmem:[%s10 + $0xac0] sm:$0xff]
    %v2165 = vld [vmem:[%s10 + $0xac8] sm:$0xff]
    %v2166 = vld [vmem:[%s10 + $0xad0] sm:$0xff]
    %v2167 = vld [vmem:[%s10 + $0xad8] sm:$0xff]
    %v2168 = vld [vmem:[%s10 + $0xae0] sm:$0xff]
    %v2169 = vld [vmem:[%s10 + $0xae8] sm:$0xff]
    %v2170 = vld [vmem:[%s10 + $0xaf0] sm:$0xff]
    %v2171 = vld [vmem:[%s10 + $0xaf8] sm:$0xff]
    %v2172 = vld [vmem:[%s10 + $0xb00] sm:$0xff]
    %v2173 = vld [vmem:[%s10 + $0xb08] sm:$0xff]
    %v2174 = vld [vmem:[%s10 + $0xb10] sm:$0xff]
    %v2175 = vld [vmem:[%s10 + $0xb18] sm:$0xff]
    %v2176 = vld [vmem:[%s10 + $0xb20] sm:$0xff]
    %v2177 = vld [vmem:[%s10 + $0xb28] sm:$0xff]
    %v2178 = vld [vmem:[%s10 + $0xb30] sm:$0xff]
    %v2179 = vld [vmem:[%s10 + $0xb38] sm:$0xff]
    %v2180 = vld [vmem:[%s10 + $0xb40] sm:$0xff]
    %v2181 = vld [vmem:[%s10 + $0xb48] sm:$0xff]
    %v2182 = vld [vmem:[%s10 + $0xb50] sm:$0xff]
    %v2183 = vld [vmem:[%s10 + $0xb58] sm:$0xff]
    %v2184 = vld [vmem:[%s10 + $0xb60] sm:$0xff]
    %v2185 = vld [vmem:[%s10 + $0xb68] sm:$0xff]
    %v2186 = vld [vmem:[%s10 + $0xb70] sm:$0xff]
    %v2187 = vld [vmem:[%s10 + $0xb78] sm:$0xff]
    %v2188 = vld [vmem:[%s10 + $0xb80] sm:$0xff]
    %v2189 = vld [vmem:[%s10 + $0xb88] sm:$0xff]
    %v2190 = vld [vmem:[%s10 + $0xb90] sm:$0xff]
    %v2191 = vld [vmem:[%s10 + $0xb98] sm:$0xff]
    %v2192 = vld [vmem:[%s10 + $0xba0] sm:$0xff]
    %v2193 = vld [vmem:[%s10 + $0xba8] sm:$0xff]
    %v2194 = vld [vmem:[%s10 + $0xbb0] sm:$0xff]
    %v2195 = vld [vmem:[%s10 + $0xbb8] sm:$0xff]
    %v2196 = vld [vmem:[%s10 + $0xbc0] sm:$0xff]
    %v2197 = vld [vmem:[%s10 + $0xbc8] sm:$0xff]
    %v2198 = vld [vmem:[%s10 + $0xbd0] sm:$0xff]
    %v2199 = vld [vmem:[%s10 + $0xbd8] sm:$0xff]
    %v2200 = vld [vmem:[%s10 + $0xbe0] sm:$0xff]
    %v2201 = vld [vmem:[%s10 + $0xbe8] sm:$0xff]
    %v2202 = vld [vmem:[%s10 + $0xbf0] sm:$0xff]
    %v2203 = vld [vmem:[%s10 + $0xbf8] sm:$0xff]
    %v2204 = vld [vmem:[%s10 + $0xc00] sm:$0xff]
    %v2205 = vld [vmem:[%s10 + $0xc08] sm:$0xff]
    %v2206 = vld [vmem:[%s10 + $0xc10] sm:$0xff]
    %v2207 = vld [vmem:[%s10 + $0xc18] sm:$0xff]
    %v2208 = vld [vmem:[%s10 + $0xc20] sm:$0xff]
    %v2209 = vld [vmem:[%s10 + $0xc28] sm:$0xff]
    %v2210 = vld [vmem:[%s10 + $0xc30] sm:$0xff]
    %v2211 = vld [vmem:[%s10 + $0xc38] sm:$0xff]
    %v2212 = vld [vmem:[%s10 + $0xc40] sm:$0xff]
    %v2213 = vld [vmem:[%s10 + $0xc48] sm:$0xff]
    %v2214 = vld [vmem:[%s10 + $0xc50] sm:$0xff]
    %v2215 = vld [vmem:[%s10 + $0xc58] sm:$0xff]
    %v2216 = vld [vmem:[%s10 + $0xc60] sm:$0xff]
    %v2217 = vld [vmem:[%s10 + $0xc68] sm:$0xff]
    %v2218 = vld [vmem:[%s10 + $0xc70] sm:$0xff]
    %v2219 = vld [vmem:[%s10 + $0xc78] sm:$0xff]
    %v2220 = vld [vmem:[%s10 + $0xc80] sm:$0xff]
    %v2221 = vld [vmem:[%s10 + $0xc88] sm:$0xff]
    %v2222 = vld [vmem:[%s10 + $0xc90] sm:$0xff]
    %v2223 = vld [vmem:[%s10 + $0xc98] sm:$0xff]
    %v2224 = vld [vmem:[%s10 + $0xca0] sm:$0xff]
    %v2225 = vld [vmem:[%s10 + $0xca8] sm:$0xff]
    %v2226 = vld [vmem:[%s10 + $0xcb0] sm:$0xff]
    %v2227 = vld [vmem:[%s10 + $0xcb8] sm:$0xff]
    %v2228 = vld [vmem:[%s10 + $0xcc0] sm:$0xff]
    %v2229 = vld [vmem:[%s10 + $0xcc8] sm:$0xff]
    %v2230 = vld [vmem:[%s10 + $0xcd0] sm:$0xff]
    %v2231 = vld [vmem:[%s10 + $0xcd8] sm:$0xff]
    %v2232 = vld [vmem:[%s10 + $0xce0] sm:$0xff]
    %v2233 = vld [vmem:[%s10 + $0xce8] sm:$0xff]
    %v2234 = vld [vmem:[%s10 + $0xcf0] sm:$0xff]
    %v2235 = vld [vmem:[%s10 + $0xcf8] sm:$0xff]
    %v2236 = vld [vmem:[%s10 + $0xd00] sm:$0xff]
    %v2237 = vld [vmem:[%s10 + $0xd08] sm:$0xff]
    %v2238 = vld [vmem:[%s10 + $0xd10] sm:$0xff]
    %v2239 = vld [vmem:[%s10 + $0xd18] sm:$0xff]
    %v2240 = vld [vmem:[%s10 + $0xd20] sm:$0xff]
    %v2241 = vld [vmem:[%s10 + $0xd28] sm:$0xff]
    %v2242 = vld [vmem:[%s10 + $0xd30] sm:$0xff]
    %v2243 = vld [vmem:[%s10 + $0xd38] sm:$0xff]
    %v2244 = vld [vmem:[%s10 + $0xd40] sm:$0xff]
    %v2245 = vld [vmem:[%s10 + $0xd48] sm:$0xff]
    %v2246 = vld [vmem:[%s10 + $0xd50] sm:$0xff]
    %v2247 = vld [vmem:[%s10 + $0xd58] sm:$0xff]
    %v2248 = vld [vmem:[%s10 + $0xd60] sm:$0xff]
    %v2249 = vld [vmem:[%s10 + $0xd68] sm:$0xff]
    %v2250 = vld [vmem:[%s10 + $0xd70] sm:$0xff]
    %v2251 = vld [vmem:[%s10 + $0xd78] sm:$0xff]
    %v2252 = vlaneseq
    %v2253 = vshrl.u32 %v2252, 7
    %v2254 = vsub.s32 1, %v2253
    %v2255 = vrot.slane %v1501, %v2254
    %v2256 = vlaneseq
    %v2257 = vshrl.u32 %v2256, 7
    %v2258 = vsub.s32 5, %v2257
    %v2259 = vrot.slane %v1501, %v2258
    %v2262 = vlaneseq
    %v2263 = vshrl.u32 %v2262, 7
    %v2264 = vsub.s32 1, %v2263
    %v2265 = vrot.slane %v2255, %v2264
    %v2266 = vlaneseq
    %v2267 = vshrl.u32 %v2266, 7
    %v2268 = vsub.s32 1, %v2267
    %v2269 = vrot.slane %v2259, %v2268
    %v2270 = vsel %vm255, %v1649, 0
    %v2272 = vsel %vm255, %v1651, 0
    %2274 = vmatprep.subr.mxu0 %v1821
    %2275 = vmatpush1.msra.mxu0 %v1820
    %2276 = vmatprep.subr.mxu0 %v1823
    %2277 = vmatpush1.msra.mxu0 %v1822
    %2278 = vmatprep.subr.mxu0 %v1825
    %2279 = vmatpush1.msra.mxu0 %v1824
    %2280 = vmatprep.subr.mxu0 %v1827
    %2281 = vmatpush1.msra.mxu0 %v1826
    %2282 = vmatprep.subr.mxu0 %v1829
    %2283 = vmatpush1.msra.mxu0 %v1828
    %2284 = vmatprep.subr.mxu0 %v1831
    %2285 = vmatpush1.msra.mxu0 %v1830
    %2286 = vmatprep.subr.mxu0 %v1833
    %2287 = vmatpush1.msra.mxu0 %v1832
    %2288 = vmatprep.subr.mxu0 %v1835
    %2289 = vmatpush1.msra.mxu0 %v1834
    %2290 = vmatprep.subr.mxu0 %v1837
    %2291 = vmatpush1.msra.mxu0 %v1836
    %2292 = vmatprep.subr.mxu0 %v1839
    %2293 = vmatpush1.msra.mxu0 %v1838
    %2294 = vmatprep.subr.mxu0 %v1841
    %2295 = vmatpush1.msra.mxu0 %v1840
    %2296 = vmatprep.subr.mxu0 %v1843
    %2297 = vmatpush1.msra.mxu0 %v1842
    %2298 = vmatprep.subr.mxu0 %v1845
    %2299 = vmatpush1.msra.mxu0 %v1844
    %2300 = vmatprep.subr.mxu0 %v1847
    %2301 = vmatpush1.msra.mxu0 %v1846
    %2302 = vmatprep.subr.mxu0 %v1849
    %2303 = vmatpush1.msra.mxu0 %v1848
    %2304 = vmatprep.subr.mxu0 %v1851
    %2305 = vmatpush1.msra.mxu0 %v1850
    %2306 = vmatprep.subr.mxu0 %v1853
    %2307 = vmatpush1.msra.mxu0 %v1852
    %2308 = vmatprep.subr.mxu0 %v1855
    %2309 = vmatpush1.msra.mxu0 %v1854
    %2310 = vmatprep.subr.mxu0 %v1857
    %2311 = vmatpush1.msra.mxu0 %v1856
    %2312 = vmatprep.subr.mxu0 %v1859
    %2313 = vmatpush1.msra.mxu0 %v1858
    %2314 = vmatprep.subr.mxu0 %v1861
    %2315 = vmatpush1.msra.mxu0 %v1860
    %2316 = vmatprep.subr.mxu0 %v1863
    %2317 = vmatpush1.msra.mxu0 %v1862
    %2318 = vmatprep.subr.mxu0 %v1865
    %2319 = vmatpush1.msra.mxu0 %v1864
    %2320 = vmatprep.subr.mxu0 %v1867
    %2321 = vmatpush1.msra.mxu0 %v1866
    %2322 = vmatprep.subr.mxu0 %v1869
    %2323 = vmatpush1.msra.mxu0 %v1868
    %2324 = vmatprep.subr.mxu0 %v1871
    %2325 = vmatpush1.msra.mxu0 %v1870
    %2326 = vmatprep.subr.mxu0 %v1873
    %2327 = vmatpush1.msra.mxu0 %v1872
    %2328 = vmatprep.subr.mxu0 %v1875
    %2329 = vmatpush1.msra.mxu0 %v1874
    %2330 = vmatprep.subr.mxu0 %v1877
    %2331 = vmatpush1.msra.mxu0 %v1876
    %2332 = vmatprep.subr.mxu0 %v1879
    %2333 = vmatpush1.msra.mxu0 %v1878
    %2334 = vmatprep.subr.mxu0 %v1881
    %2335 = vmatpush1.msra.mxu0 %v1880
    %2336 = vmatprep.subr.mxu0 %v1883
    %2337 = vmatpush1.msra.mxu0 %v1882
    %2338 = vmatprep.mubr.f32.mxu0 %v1812
    %2339 = vmatmul.mubr.f32.gmra.mrb[0].mxu0 %v1644
    %v2340 = vpop.f32.mrb[0].mxu0
    %v2341 = vadd.f32 %v2265, %v2340
    %v2342 = vpop.f32.mrb[0].mxu0
    %v2343 = vadd.f32 %v2269, %v2342
    %2344 = vmatprep.mubr.f32.mxu0 %v1813
    %2345 = vmatmul.mubr.f32.gmra.mrb[0].mxu0 %v1646
    %v2346 = vpop.f32.mrb[0].mxu0
    %v2347 = vadd.f32 %v2265, %v2346
    %v2348 = vpop.f32.mrb[0].mxu0
    %v2349 = vadd.f32 %v2269, %v2348
    %2350 = vdwg.mxu0
    %2351 = vmatprep.subr.mxu0 %v1885
    %2352 = vmatpush1.msra.mxu0 %v1884
    %2353 = vmatprep.subr.mxu0 %v1887
    %2354 = vmatpush1.msra.mxu0 %v1886
    %2355 = vmatprep.subr.mxu0 %v1889
    %2356 = vmatpush1.msra.mxu0 %v1888
    %2357 = vmatprep.subr.mxu0 %v1891
    %2358 = vmatpush1.msra.mxu0 %v1890
    %2359 = vmatprep.subr.mxu0 %v1893
    %2360 = vmatpush1.msra.mxu0 %v1892
    %2361 = vmatprep.subr.mxu0 %v1895
    %2362 = vmatpush1.msra.mxu0 %v1894
    %2363 = vmatprep.subr.mxu0 %v1897
    %2364 = vmatpush1.msra.mxu0 %v1896
    %2365 = vmatprep.subr.mxu0 %v1899
    %2366 = vmatpush1.msra.mxu0 %v1898
    %2367 = vmatprep.subr.mxu0 %v1901
    %2368 = vmatpush1.msra.mxu0 %v1900
    %2369 = vmatprep.subr.mxu0 %v1903
    %2370 = vmatpush1.msra.mxu0 %v1902
    %2371 = vmatprep.subr.mxu0 %v1905
    %2372 = vmatpush1.msra.mxu0 %v1904
    %2373 = vmatprep.subr.mxu0 %v1907
    %2374 = vmatpush1.msra.mxu0 %v1906
    %2375 = vmatprep.subr.mxu0 %v1909
    %2376 = vmatpush1.msra.mxu0 %v1908
    %2377 = vmatprep.subr.mxu0 %v1911
    %2378 = vmatpush1.msra.mxu0 %v1910
    %2379 = vmatprep.subr.mxu0 %v1913
    %2380 = vmatpush1.msra.mxu0 %v1912
    %2381 = vmatprep.subr.mxu0 %v1915
    %2382 = vmatpush1.msra.mxu0 %v1914
    %2383 = vmatprep.subr.mxu0 %v1917
    %2384 = vmatpush1.msra.mxu0 %v1916
    %2385 = vmatprep.subr.mxu0 %v1919
    %2386 = vmatpush1.msra.mxu0 %v1918
    %2387 = vmatprep.subr.mxu0 %v1921
    %2388 = vmatpush1.msra.mxu0 %v1920
    %2389 = vmatprep.subr.mxu0 %v1923
    %2390 = vmatpush1.msra.mxu0 %v1922
    %2391 = vmatprep.subr.mxu0 %v1925
    %2392 = vmatpush1.msra.mxu0 %v1924
    %2393 = vmatprep.subr.mxu0 %v1927
    %2394 = vmatpush1.msra.mxu0 %v1926
    %2395 = vmatprep.subr.mxu0 %v1929
    %2396 = vmatpush1.msra.mxu0 %v1928
    %2397 = vmatprep.subr.mxu0 %v1931
    %2398 = vmatpush1.msra.mxu0 %v1930
    %2399 = vmatprep.subr.mxu0 %v1933
    %2400 = vmatpush1.msra.mxu0 %v1932
    %2401 = vmatprep.subr.mxu0 %v1935
    %2402 = vmatpush1.msra.mxu0 %v1934
    %2403 = vmatprep.subr.mxu0 %v1937
    %2404 = vmatpush1.msra.mxu0 %v1936
    %2405 = vmatprep.subr.mxu0 %v1939
    %2406 = vmatpush1.msra.mxu0 %v1938
    %2407 = vmatprep.subr.mxu0 %v1941
    %2408 = vmatpush1.msra.mxu0 %v1940
    %2409 = vmatprep.subr.mxu0 %v1943
    %2410 = vmatpush1.msra.mxu0 %v1942
    %2411 = vmatprep.subr.mxu0 %v1945
    %2412 = vmatpush1.msra.mxu0 %v1944
    %2413 = vmatprep.subr.mxu0 %v1947
    %2414 = vmatpush1.msra.mxu0 %v1946
    %2415 = vmatprep.mubr.f32.mxu0 %v1688
    %2416 = vmatmul.mubr.f32.gmra.mrb[0].mxu0 %v1680
    %v2417 = vpop.f32.mrb[0].mxu0
    %v2418 = vadd.f32 %v2341, %v2417
    %v2419 = vpop.f32.mrb[0].mxu0
    %v2420 = vadd.f32 %v2343, %v2419
    %2421 = vmatprep.mubr.f32.mxu0 %v1694
    %2422 = vmatmul.mubr.f32.gmra.mrb[0].mxu0 %v1681
    %v2423 = vpop.f32.mrb[0].mxu0
    %v2424 = vadd.f32 %v2347, %v2423
    %v2425 = vpop.f32.mrb[0].mxu0
    %v2426 = vadd.f32 %v2349, %v2425
    %2427 = vdwg.mxu0
    %2428 = vmatprep.subr.mxu0 %v1949
    %2429 = vmatpush1.msra.mxu0 %v1948
    %2430 = vmatprep.subr.mxu0 %v1951
    %2431 = vmatpush1.msra.mxu0 %v1950
    %2432 = vmatprep.subr.mxu0 %v1953
    %2433 = vmatpush1.msra.mxu0 %v1952
    %2434 = vmatprep.subr.mxu0 %v1955
    %2435 = vmatpush1.msra.mxu0 %v1954
    %2436 = vmatprep.subr.mxu0 %v1957
    %2437 = vmatpush1.msra.mxu0 %v1956
    %2438 = vmatprep.subr.mxu0 %v1959
    %2439 = vmatpush1.msra.mxu0 %v1958
    %2440 = vmatprep.subr.mxu0 %v1961
    %2441 = vmatpush1.msra.mxu0 %v1960
    %2442 = vmatprep.subr.mxu0 %v1963
    %2443 = vmatpush1.msra.mxu0 %v1962
    %2444 = vmatprep.subr.mxu0 %v1965
    %2445 = vmatpush1.msra.mxu0 %v1964
    %2446 = vmatprep.subr.mxu0 %v1967
    %2447 = vmatpush1.msra.mxu0 %v1966
    %2448 = vmatprep.subr.mxu0 %v1969
    %2449 = vmatpush1.msra.mxu0 %v1968
    %2450 = vmatprep.subr.mxu0 %v1971
    %2451 = vmatpush1.msra.mxu0 %v1970
    %2452 = vmatprep.subr.mxu0 %v1973
    %2453 = vmatpush1.msra.mxu0 %v1972
    %2454 = vmatprep.subr.mxu0 %v1975
    %2455 = vmatpush1.msra.mxu0 %v1974
    %2456 = vmatprep.subr.mxu0 %v1977
    %2457 = vmatpush1.msra.mxu0 %v1976
    %2458 = vmatprep.subr.mxu0 %v1979
    %2459 = vmatpush1.msra.mxu0 %v1978
    %2460 = vmatprep.subr.mxu0 %v1981
    %2461 = vmatpush1.msra.mxu0 %v1980
    %2462 = vmatprep.subr.mxu0 %v1983
    %2463 = vmatpush1.msra.mxu0 %v1982
    %2464 = vmatprep.subr.mxu0 %v1985
    %2465 = vmatpush1.msra.mxu0 %v1984
    %2466 = vmatprep.subr.mxu0 %v1987
    %2467 = vmatpush1.msra.mxu0 %v1986
    %2468 = vmatprep.subr.mxu0 %v1989
    %2469 = vmatpush1.msra.mxu0 %v1988
    %2470 = vmatprep.subr.mxu0 %v1991
    %2471 = vmatpush1.msra.mxu0 %v1990
    %2472 = vmatprep.subr.mxu0 %v1993
    %2473 = vmatpush1.msra.mxu0 %v1992
    %2474 = vmatprep.subr.mxu0 %v1995
    %2475 = vmatpush1.msra.mxu0 %v1994
    %2476 = vmatprep.subr.mxu0 %v1997
    %2477 = vmatpush1.msra.mxu0 %v1996
    %2478 = vmatprep.subr.mxu0 %v1999
    %2479 = vmatpush1.msra.mxu0 %v1998
    %2480 = vmatprep.subr.mxu0 %v2001
    %2481 = vmatpush1.msra.mxu0 %v2000
    %2482 = vmatprep.subr.mxu0 %v2003
    %2483 = vmatpush1.msra.mxu0 %v2002
    %2484 = vmatprep.subr.mxu0 %v2005
    %2485 = vmatpush1.msra.mxu0 %v2004
    %2486 = vmatprep.subr.mxu0 %v2007
    %2487 = vmatpush1.msra.mxu0 %v2006
    %2488 = vmatprep.subr.mxu0 %v2009
    %2489 = vmatpush1.msra.mxu0 %v2008
    %2490 = vmatprep.subr.mxu0 %v2011
    %2491 = vmatpush1.msra.mxu0 %v2010
    %2492 = vmatprep.mubr.f32.mxu0 %v1722
    %2493 = vmatmul.mubr.f32.gmra.mrb[0].mxu0 %v1814
    %v2494 = vpop.f32.mrb[0].mxu0
    %v2495 = vadd.f32 %v2418, %v2494
    %v2496 = vpop.f32.mrb[0].mxu0
    %v2497 = vadd.f32 %v2420, %v2496
    %2498 = vmatprep.mubr.f32.mxu0 %v1723
    %2499 = vmatmul.mubr.f32.gmra.mrb[0].mxu0 %v1815
    %v2500 = vpop.f32.mrb[0].mxu0
    %v2501 = vadd.f32 %v2424, %v2500
    %v2502 = vpop.f32.mrb[0].mxu0
    %v2503 = vadd.f32 %v2426, %v2502
    %2504 = vdwg.mxu0
    %2505 = vmatprep.subr.mxu0 %v2013
    %2506 = vmatpush1.msra.mxu0 %v2012
    %2507 = vmatprep.subr.mxu0 %v2015
    %2508 = vmatpush1.msra.mxu0 %v2014
    %2509 = vmatprep.subr.mxu0 %v2017
    %2510 = vmatpush1.msra.mxu0 %v2016
    %2511 = vmatprep.subr.mxu0 %v2019
    %2512 = vmatpush1.msra.mxu0 %v2018
    %2513 = vmatprep.subr.mxu0 %v2021
    %2514 = vmatpush1.msra.mxu0 %v2020
    %2515 = vmatprep.subr.mxu0 %v2023
    %2516 = vmatpush1.msra.mxu0 %v2022
    %2517 = vmatprep.subr.mxu0 %v2025
    %2518 = vmatpush1.msra.mxu0 %v2024
    %2519 = vmatprep.subr.mxu0 %v2027
    %2520 = vmatpush1.msra.mxu0 %v2026
    %2521 = vmatprep.subr.mxu0 %v2029
    %2522 = vmatpush1.msra.mxu0 %v2028
    %2523 = vmatprep.subr.mxu0 %v2031
    %2524 = vmatpush1.msra.mxu0 %v2030
    %2525 = vmatprep.subr.mxu0 %v2033
    %2526 = vmatpush1.msra.mxu0 %v2032
    %2527 = vmatprep.subr.mxu0 %v2035
    %2528 = vmatpush1.msra.mxu0 %v2034
    %2529 = vmatprep.subr.mxu0 %v2037
    %2530 = vmatpush1.msra.mxu0 %v2036
    %2531 = vmatprep.subr.mxu0 %v2039
    %2532 = vmatpush1.msra.mxu0 %v2038
    %2533 = vmatprep.subr.mxu0 %v2041
    %2534 = vmatpush1.msra.mxu0 %v2040
    %2535 = vmatprep.subr.mxu0 %v2043
    %2536 = vmatpush1.msra.mxu0 %v2042
    %2537 = vmatprep.subr.mxu0 %v2045
    %2538 = vmatpush1.msra.mxu0 %v2044
    %2539 = vmatprep.subr.mxu0 %v2047
    %2540 = vmatpush1.msra.mxu0 %v2046
    %2541 = vmatprep.subr.mxu0 %v2049
    %2542 = vmatpush1.msra.mxu0 %v2048
    %2543 = vmatprep.subr.mxu0 %v2051
    %2544 = vmatpush1.msra.mxu0 %v2050
    %2545 = vmatprep.subr.mxu0 %v2053
    %2546 = vmatpush1.msra.mxu0 %v2052
    %2547 = vmatprep.subr.mxu0 %v2055
    %2548 = vmatpush1.msra.mxu0 %v2054
    %2549 = vmatprep.subr.mxu0 %v2057
    %2550 = vmatpush1.msra.mxu0 %v2056
    %2551 = vmatprep.subr.mxu0 %v2059
    %2552 = vmatpush1.msra.mxu0 %v2058
    %2553 = vmatprep.subr.mxu0 %v2061
    %2554 = vmatpush1.msra.mxu0 %v2060
    %2555 = vmatprep.subr.mxu0 %v2063
    %2556 = vmatpush1.msra.mxu0 %v2062
    %2557 = vmatprep.subr.mxu0 %v2065
    %2558 = vmatpush1.msra.mxu0 %v2064
    %2559 = vmatprep.subr.mxu0 %v2067
    %2560 = vmatpush1.msra.mxu0 %v2066
    %2561 = vmatprep.subr.mxu0 %v2069
    %2562 = vmatpush1.msra.mxu0 %v2068
    %2563 = vmatprep.subr.mxu0 %v2071
    %2564 = vmatpush1.msra.mxu0 %v2070
    %2565 = vmatprep.subr.mxu0 %v2073
    %2566 = vmatpush1.msra.mxu0 %v2072
    %2567 = vmatprep.subr.mxu0 %v2075
    %2568 = vmatpush1.msra.mxu0 %v2074
    %2569 = vmatprep.mubr.f32.mxu0 %v1816
    %2570 = vmatmul.mubr.f32.gmra.mrb[0].mxu0 %v1730
    %v2571 = vpop.f32.mrb[0].mxu0
    %v2572 = vadd.f32 %v2495, %v2571
    %v2573 = vpop.f32.mrb[0].mxu0
    %v2574 = vadd.f32 %v2497, %v2573
    %2575 = vmatprep.mubr.f32.mxu0 %v1817
    %2576 = vmatmul.mubr.f32.gmra.mrb[0].mxu0 %v1736
    %v2577 = vpop.f32.mrb[0].mxu0
    %v2578 = vadd.f32 %v2501, %v2577
    %v2579 = vpop.f32.mrb[0].mxu0
    %v2580 = vadd.f32 %v2503, %v2579
    %2581 = vdwg.mxu0
    %2582 = vmatprep.subr.mxu0 %v2077
    %2583 = vmatpush1.msra.mxu0 %v2076
    %2584 = vmatprep.subr.mxu0 %v2079
    %2585 = vmatpush1.msra.mxu0 %v2078
    %2586 = vmatprep.subr.mxu0 %v2081
    %2587 = vmatpush1.msra.mxu0 %v2080
    %2588 = vmatprep.subr.mxu0 %v2083
    %2589 = vmatpush1.msra.mxu0 %v2082
    %2590 = vmatprep.subr.mxu0 %v2085
    %2591 = vmatpush1.msra.mxu0 %v2084
    %2592 = vmatprep.subr.mxu0 %v2087
    %2593 = vmatpush1.msra.mxu0 %v2086
    %2594 = vmatprep.subr.mxu0 %v2089
    %2595 = vmatpush1.msra.mxu0 %v2088
    %2596 = vmatprep.subr.mxu0 %v2091
    %2597 = vmatpush1.msra.mxu0 %v2090
    %2598 = vmatprep.subr.mxu0 %v2093
    %2599 = vmatpush1.msra.mxu0 %v2092
    %2600 = vmatprep.subr.mxu0 %v2095
    %2601 = vmatpush1.msra.mxu0 %v2094
    %2602 = vmatprep.subr.mxu0 %v2097
    %2603 = vmatpush1.msra.mxu0 %v2096
    %2604 = vmatprep.subr.mxu0 %v2099
    %2605 = vmatpush1.msra.mxu0 %v2098
    %2606 = vmatprep.subr.mxu0 %v2101
    %2607 = vmatpush1.msra.mxu0 %v2100
    %2608 = vmatprep.subr.mxu0 %v2103
    %2609 = vmatpush1.msra.mxu0 %v2102
    %2610 = vmatprep.subr.mxu0 %v2105
    %2611 = vmatpush1.msra.mxu0 %v2104
    %2612 = vmatprep.subr.mxu0 %v2107
    %2613 = vmatpush1.msra.mxu0 %v2106
    %2614 = vmatprep.subr.mxu0 %v2109
    %2615 = vmatpush1.msra.mxu0 %v2108
    %2616 = vmatprep.subr.mxu0 %v2111
    %2617 = vmatpush1.msra.mxu0 %v2110
    %2618 = vmatprep.subr.mxu0 %v2113
    %2619 = vmatpush1.msra.mxu0 %v2112
    %2620 = vmatprep.subr.mxu0 %v2115
    %2621 = vmatpush1.msra.mxu0 %v2114
    %2622 = vmatprep.subr.mxu0 %v2117
    %2623 = vmatpush1.msra.mxu0 %v2116
    %2624 = vmatprep.subr.mxu0 %v2119
    %2625 = vmatpush1.msra.mxu0 %v2118
    %2626 = vmatprep.subr.mxu0 %v2121
    %2627 = vmatpush1.msra.mxu0 %v2120
    %2628 = vmatprep.subr.mxu0 %v2123
    %2629 = vmatpush1.msra.mxu0 %v2122
    %2630 = vmatprep.subr.mxu0 %v2125
    %2631 = vmatpush1.msra.mxu0 %v2124
    %2632 = vmatprep.subr.mxu0 %v2127
    %2633 = vmatpush1.msra.mxu0 %v2126
    %2634 = vmatprep.subr.mxu0 %v2129
    %2635 = vmatpush1.msra.mxu0 %v2128
    %2636 = vmatprep.subr.mxu0 %v2131
    %2637 = vmatpush1.msra.mxu0 %v2130
    %2638 = vmatprep.subr.mxu0 %v2133
    %2639 = vmatpush1.msra.mxu0 %v2132
    %2640 = vmatprep.subr.mxu0 %v2135
    %2641 = vmatpush1.msra.mxu0 %v2134
    %2642 = vmatprep.subr.mxu0 %v2137
    %2643 = vmatpush1.msra.mxu0 %v2136
    %2644 = vmatprep.subr.mxu0 %v2139
    %2645 = vmatpush1.msra.mxu0 %v2138
    %2646 = vmatprep.mubr.f32.mxu0 %v1772
    %2647 = vmatmul.mubr.f32.gmra.mrb[0].mxu0 %v1764
    %v2648 = vpop.f32.mrb[0].mxu0
    %v2649 = vadd.f32 %v2572, %v2648
    %v2650 = vpop.f32.mrb[0].mxu0
    %v2651 = vadd.f32 %v2574, %v2650
    %2652 = vmatprep.mubr.f32.mxu0 %v1778
    %2653 = vmatmul.mubr.f32.gmra.mrb[0].mxu0 %v1765
    %v2654 = vpop.f32.mrb[0].mxu0
    %v2655 = vadd.f32 %v2578, %v2654
    %v2656 = vpop.f32.mrb[0].mxu0
    %v2657 = vadd.f32 %v2580, %v2656
    %2658 = vdwg.mxu0
    %2659 = vmatprep.subr.mxu0 %v2141
    %2660 = vmatpush1.msra.mxu0 %v2140
    %2661 = vmatprep.subr.mxu0 %v2143
    %2662 = vmatpush1.msra.mxu0 %v2142
    %2663 = vmatprep.subr.mxu0 %v2145
    %2664 = vmatpush1.msra.mxu0 %v2144
    %2665 = vmatprep.subr.mxu0 %v2147
    %2666 = vmatpush1.msra.mxu0 %v2146
    %2667 = vmatprep.subr.mxu0 %v2149
    %2668 = vmatpush1.msra.mxu0 %v2148
    %2669 = vmatprep.subr.mxu0 %v2151
    %2670 = vmatpush1.msra.mxu0 %v2150
    %2671 = vmatprep.subr.mxu0 %v2153
    %2672 = vmatpush1.msra.mxu0 %v2152
    %2673 = vmatprep.subr.mxu0 %v2155
    %2674 = vmatpush1.msra.mxu0 %v2154
    %2675 = vmatprep.subr.mxu0 %v2157
    %2676 = vmatpush1.msra.mxu0 %v2156
    %2677 = vmatprep.subr.mxu0 %v2159
    %2678 = vmatpush1.msra.mxu0 %v2158
    %2679 = vmatprep.subr.mxu0 %v2161
    %2680 = vmatpush1.msra.mxu0 %v2160
    %2681 = vmatprep.subr.mxu0 %v2163
    %2682 = vmatpush1.msra.mxu0 %v2162
    %2683 = vmatprep.subr.mxu0 %v2165
    %2684 = vmatpush1.msra.mxu0 %v2164
    %2685 = vmatprep.subr.mxu0 %v2167
    %2686 = vmatpush1.msra.mxu0 %v2166
    %2687 = vmatprep.subr.mxu0 %v2169
    %2688 = vmatpush1.msra.mxu0 %v2168
    %2689 = vmatprep.subr.mxu0 %v2171
    %2690 = vmatpush1.msra.mxu0 %v2170
    %2691 = vmatprep.subr.mxu0 %v2173
    %2692 = vmatpush1.msra.mxu0 %v2172
    %2693 = vmatprep.subr.mxu0 %v2175
    %2694 = vmatpush1.msra.mxu0 %v2174
    %2695 = vmatprep.subr.mxu0 %v2177
    %2696 = vmatpush1.msra.mxu0 %v2176
    %2697 = vmatprep.subr.mxu0 %v2179
    %2698 = vmatpush1.msra.mxu0 %v2178
    %2699 = vmatprep.subr.mxu0 %v2181
    %2700 = vmatpush1.msra.mxu0 %v2180
    %2701 = vmatprep.subr.mxu0 %v2183
    %2702 = vmatpush1.msra.mxu0 %v2182
    %2703 = vmatprep.subr.mxu0 %v2185
    %2704 = vmatpush1.msra.mxu0 %v2184
    %2705 = vmatprep.subr.mxu0 %v2187
    %2706 = vmatpush1.msra.mxu0 %v2186
    %2707 = vmatprep.subr.mxu0 %v2189
    %2708 = vmatpush1.msra.mxu0 %v2188
    %2709 = vmatprep.subr.mxu0 %v2191
    %2710 = vmatpush1.msra.mxu0 %v2190
    %2711 = vmatprep.subr.mxu0 %v2193
    %2712 = vmatpush1.msra.mxu0 %v2192
    %2713 = vmatprep.subr.mxu0 %v2195
    %2714 = vmatpush1.msra.mxu0 %v2194
    %2715 = vmatprep.subr.mxu0 %v2197
    %2716 = vmatpush1.msra.mxu0 %v2196
    %2717 = vmatprep.subr.mxu0 %v2199
    %2718 = vmatpush1.msra.mxu0 %v2198
    %2719 = vmatprep.subr.mxu0 %v2201
    %2720 = vmatpush1.msra.mxu0 %v2200
    %2721 = vmatprep.subr.mxu0 %v2203
    %2722 = vmatpush1.msra.mxu0 %v2202
    %2723 = vmatprep.mubr.f32.mxu0 %v1806
    %2724 = vmatmul.mubr.f32.gmra.mrb[0].mxu0 %v1818
    %v2725 = vpop.f32.mrb[0].mxu0
    %v2726 = vadd.f32 %v2649, %v2725
    %v2727 = vpop.f32.mrb[0].mxu0
    %v2728 = vadd.f32 %v2651, %v2727
    %2729 = vmatprep.mubr.f32.mxu0 %v1807
    %2730 = vmatmul.mubr.f32.gmra.mrb[0].mxu0 %v1819
    %v2731 = vpop.f32.mrb[0].mxu0
    %v2732 = vadd.f32 %v2655, %v2731
    %v2733 = vpop.f32.mrb[0].mxu0
    %v2734 = vadd.f32 %v2657, %v2733
    %2735 = vdwg.mxu0
    %2736 = vmatprep.subr.mxu0 %v2205
    %2737 = vmatpush1.msra.mxu0 %v2204
    %2738 = vmatprep.subr.mxu0 %v2207
    %2739 = vmatpush1.msra.mxu0 %v2206
    %2740 = vmatprep.subr.mxu0 %v2209
    %2741 = vmatpush1.msra.mxu0 %v2208
    %2742 = vmatprep.subr.mxu0 %v2211
    %2743 = vmatpush1.msra.mxu0 %v2210
    %2744 = vmatprep.subr.mxu0 %v2213
    %2745 = vmatpush1.msra.mxu0 %v2212
    %2746 = vmatprep.subr.mxu0 %v2215
    %2747 = vmatpush1.msra.mxu0 %v2214
    %2748 = vmatprep.subr.mxu0 %v2217
    %2749 = vmatpush1.msra.mxu0 %v2216
    %2750 = vmatprep.subr.mxu0 %v2219
    %2751 = vmatpush1.msra.mxu0 %v2218
    %2752 = vmatprep.subr.mxu0 %v2221
    %2753 = vmatpush1.msra.mxu0 %v2220
    %2754 = vmatprep.subr.mxu0 %v2223
    %2755 = vmatpush1.msra.mxu0 %v2222
    %2756 = vmatprep.subr.mxu0 %v2225
    %2757 = vmatpush1.msra.mxu0 %v2224
    %2758 = vmatprep.subr.mxu0 %v2227
    %2759 = vmatpush1.msra.mxu0 %v2226
    %2760 = vmatprep.subr.mxu0 %v2229
    %2761 = vmatpush1.msra.mxu0 %v2228
    %2762 = vmatprep.subr.mxu0 %v2231
    %2763 = vmatpush1.msra.mxu0 %v2230
    %2764 = vmatprep.subr.mxu0 %v2233
    %2765 = vmatpush1.msra.mxu0 %v2232
    %2766 = vmatprep.subr.mxu0 %v2235
    %2767 = vmatpush1.msra.mxu0 %v2234
    %2768 = vmatprep.subr.mxu0 %v2237
    %2769 = vmatpush1.msra.mxu0 %v2236
    %2770 = vmatprep.subr.mxu0 %v2239
    %2771 = vmatpush1.msra.mxu0 %v2238
    %2772 = vmatprep.subr.mxu0 %v2241
    %2773 = vmatpush1.msra.mxu0 %v2240
    %2774 = vmatprep.subr.mxu0 %v2243
    %2775 = vmatpush1.msra.mxu0 %v2242
    %2776 = vmatprep.subr.mxu0 %v2245
    %2777 = vmatpush1.msra.mxu0 %v2244
    %2778 = vmatprep.subr.mxu0 %v2247
    %2779 = vmatpush1.msra.mxu0 %v2246
    %2780 = vmatprep.subr.mxu0 %v2249
    %2781 = vmatpush1.msra.mxu0 %v2248
    %2782 = vmatprep.subr.mxu0 %v2251
    %2783 = vmatpush1.msra.mxu0 %v2250
    %2784 = vmatprep.subr.mxu0 0.0
    %2785 = vmatpush1.msra.mxu0 0.0
    %2786 = vmatprep.subr.mxu0 0.0
    %2787 = vmatpush1.msra.mxu0 0.0
    %2788 = vmatprep.subr.mxu0 0.0
    %2789 = vmatpush1.msra.mxu0 0.0
    %2790 = vmatprep.subr.mxu0 0.0
    %2791 = vmatpush1.msra.mxu0 0.0
    %2792 = vmatprep.subr.mxu0 0.0
    %2793 = vmatpush1.msra.mxu0 0.0
    %2794 = vmatprep.subr.mxu0 0.0
    %2795 = vmatpush1.msra.mxu0 0.0
    %2796 = vmatprep.subr.mxu0 0.0
    %2797 = vmatpush1.msra.mxu0 0.0
    %2798 = vmatprep.subr.mxu0 0.0
    %2799 = vmatpush1.msra.mxu0 0.0
    %2800 = vmatprep.mubr.f32.mxu0 %v2270
    %2801 = vmatmul.mubr.f32.gmra.mrb[0].mxu0 %v1648
    %v2802 = vpop.f32.mrb[0].mxu0
    %v2803 = vadd.f32 %v2726, %v2802
    %v2804 = vpop.f32.mrb[0].mxu0
    %v2805 = vadd.f32 %v2728, %v2804
    %2806 = vmatprep.mubr.f32.mxu0 %v2272
    %2807 = vmatmul.mubr.f32.gmra.mrb[0].mxu0 %v1650
    %v2808 = vpop.f32.mrb[0].mxu0
    %v2809 = vadd.f32 %v2732, %v2808
    %v2810 = vpop.f32.mrb[0].mxu0
    %v2811 = vadd.f32 %v2734, %v2810
    %2812 = vdwg.mxu0
    %v2813 = vld [vmem:[%s11] sm:$0xff]
    %v2814 = vld [vmem:[%s11 + $0x8] sm:$0xff]
    %v2815 = vld [vmem:[%s11 + $0x10] sm:$0xff]
    %v2816 = vld [vmem:[%s11 + $0x18] sm:$0xff]
    %v2817 = vld [vmem:[%s11 + $0x20] sm:$0xff]
    %v2818 = vld [vmem:[%s11 + $0x28] sm:$0xff]
    %v2819 = vld [vmem:[%s11 + $0x30] sm:$0xff]
    %v2820 = vld [vmem:[%s11 + $0x38] sm:$0xff]
    %v2821 = vld [vmem:[%s11 + $0x40] sm:$0xff]
    %v2822 = vld [vmem:[%s11 + $0x48] sm:$0xff]
    %v2823 = vld [vmem:[%s11 + $0x50] sm:$0xff]
    %v2824 = vld [vmem:[%s11 + $0x58] sm:$0xff]
    %v2825 = vld [vmem:[%s11 + $0x60] sm:$0xff]
    %v2826 = vld [vmem:[%s11 + $0x68] sm:$0xff]
    %v2827 = vld [vmem:[%s11 + $0x70] sm:$0xff]
    %v2828 = vld [vmem:[%s11 + $0x78] sm:$0xff]
    %v2829 = vld [vmem:[%s11 + $0x80] sm:$0xff]
    %v2830 = vld [vmem:[%s11 + $0x88] sm:$0xff]
    %v2831 = vld [vmem:[%s11 + $0x90] sm:$0xff]
    %v2832 = vld [vmem:[%s11 + $0x98] sm:$0xff]
    %v2833 = vld [vmem:[%s11 + $0xa0] sm:$0xff]
    %v2834 = vld [vmem:[%s11 + $0xa8] sm:$0xff]
    %v2835 = vld [vmem:[%s11 + $0xb0] sm:$0xff]
    %v2836 = vld [vmem:[%s11 + $0xb8] sm:$0xff]
    %v2837 = vld [vmem:[%s11 + $0xc0] sm:$0xff]
    %v2838 = vld [vmem:[%s11 + $0xc8] sm:$0xff]
    %v2839 = vld [vmem:[%s11 + $0xd0] sm:$0xff]
    %v2840 = vld [vmem:[%s11 + $0xd8] sm:$0xff]
    %v2841 = vld [vmem:[%s11 + $0xe0] sm:$0xff]
    %v2842 = vld [vmem:[%s11 + $0xe8] sm:$0xff]
    %v2843 = vld [vmem:[%s11 + $0xf0] sm:$0xff]
    %v2844 = vld [vmem:[%s11 + $0xf8] sm:$0xff]
    %v2845 = vld [vmem:[%s11 + $0x100] sm:$0xff]
    %v2846 = vld [vmem:[%s11 + $0x108] sm:$0xff]
    %v2847 = vld [vmem:[%s11 + $0x110] sm:$0xff]
    %v2848 = vld [vmem:[%s11 + $0x118] sm:$0xff]
    %v2849 = vld [vmem:[%s11 + $0x120] sm:$0xff]
    %v2850 = vld [vmem:[%s11 + $0x128] sm:$0xff]
    %v2851 = vld [vmem:[%s11 + $0x130] sm:$0xff]
    %v2852 = vld [vmem:[%s11 + $0x138] sm:$0xff]
    %v2853 = vld [vmem:[%s11 + $0x140] sm:$0xff]
    %v2854 = vld [vmem:[%s11 + $0x148] sm:$0xff]
    %v2855 = vld [vmem:[%s11 + $0x150] sm:$0xff]
    %v2856 = vld [vmem:[%s11 + $0x158] sm:$0xff]
    %v2857 = vld [vmem:[%s11 + $0x160] sm:$0xff]
    %v2858 = vld [vmem:[%s11 + $0x168] sm:$0xff]
    %v2859 = vld [vmem:[%s11 + $0x170] sm:$0xff]
    %v2860 = vld [vmem:[%s11 + $0x178] sm:$0xff]
    %v2861 = vadd.f32 %v2803, %v2809
    %v2862 = vrot.slane %v2861, 4
    %v2863 = vadd.f32 %v2861, %v2862
    %v2864 = vrot.slane %v2863, 2
    %v2865 = vadd.f32 %v2863, %v2864
    %v2866 = vrot.slane %v2865, 1
    %v2867 = vadd.f32 %v2865, %v2866
    %v2868 = vsel %vm255, %v2805, 0.0
    %v2869 = vsel %vm255, %v2811, 0.0
    %v2870 = vadd.f32 %v2868, %v2869
    %v2871 = vrot.slane %v2870, 4
    %v2872 = vadd.f32 %v2870, %v2871
    %v2873 = vrot.slane %v2872, 2
    %v2874 = vadd.f32 %v2872, %v2873
    %v2875 = vrot.slane %v2874, 1
    %v2876 = vadd.f32 %v2874, %v2875
    %v2878 = vsel %vm255, %v2876, 0
    %2880 = vmatprep.subr.mxu0 %v2814
    %2881 = vmatpush1.msra.mxu0 %v2813
    %2882 = vmatprep.subr.mxu0 %v2816
    %2883 = vmatpush1.msra.mxu0 %v2815
    %2884 = vmatprep.subr.mxu0 %v2818
    %2885 = vmatpush1.msra.mxu0 %v2817
    %2886 = vmatprep.subr.mxu0 %v2820
    %2887 = vmatpush1.msra.mxu0 %v2819
    %2888 = vmatprep.subr.mxu0 %v2822
    %2889 = vmatpush1.msra.mxu0 %v2821
    %2890 = vmatprep.subr.mxu0 %v2824
    %2891 = vmatpush1.msra.mxu0 %v2823
    %2892 = vmatprep.subr.mxu0 %v2826
    %2893 = vmatpush1.msra.mxu0 %v2825
    %2894 = vmatprep.subr.mxu0 %v2828
    %2895 = vmatpush1.msra.mxu0 %v2827
    %2896 = vmatprep.subr.mxu0 %v2830
    %2897 = vmatpush1.msra.mxu0 %v2829
    %2898 = vmatprep.subr.mxu0 %v2832
    %2899 = vmatpush1.msra.mxu0 %v2831
    %2900 = vmatprep.subr.mxu0 %v2834
    %2901 = vmatpush1.msra.mxu0 %v2833
    %2902 = vmatprep.subr.mxu0 %v2836
    %2903 = vmatpush1.msra.mxu0 %v2835
    %2904 = vmatprep.subr.mxu0 %v2838
    %2905 = vmatpush1.msra.mxu0 %v2837
    %2906 = vmatprep.subr.mxu0 %v2840
    %2907 = vmatpush1.msra.mxu0 %v2839
    %2908 = vmatprep.subr.mxu0 %v2842
    %2909 = vmatpush1.msra.mxu0 %v2841
    %2910 = vmatprep.subr.mxu0 %v2844
    %2911 = vmatpush1.msra.mxu0 %v2843
    %2912 = vmatprep.subr.mxu0 %v2846
    %2913 = vmatpush1.msra.mxu0 %v2845
    %2914 = vmatprep.subr.mxu0 %v2848
    %2915 = vmatpush1.msra.mxu0 %v2847
    %2916 = vmatprep.subr.mxu0 %v2850
    %2917 = vmatpush1.msra.mxu0 %v2849
    %2918 = vmatprep.subr.mxu0 %v2852
    %2919 = vmatpush1.msra.mxu0 %v2851
    %2920 = vmatprep.subr.mxu0 %v2854
    %2921 = vmatpush1.msra.mxu0 %v2853
    %2922 = vmatprep.subr.mxu0 %v2856
    %2923 = vmatpush1.msra.mxu0 %v2855
    %2924 = vmatprep.subr.mxu0 %v2858
    %2925 = vmatpush1.msra.mxu0 %v2857
    %2926 = vmatprep.subr.mxu0 %v2860
    %2927 = vmatpush1.msra.mxu0 %v2859
    %2928 = vmatprep.subr.mxu0 0.0
    %2929 = vmatpush1.msra.mxu0 0.0
    %2930 = vmatprep.subr.mxu0 0.0
    %2931 = vmatpush1.msra.mxu0 0.0
    %2932 = vmatprep.subr.mxu0 0.0
    %2933 = vmatpush1.msra.mxu0 0.0
    %2934 = vmatprep.subr.mxu0 0.0
    %2935 = vmatpush1.msra.mxu0 0.0
    %2936 = vmatprep.subr.mxu0 0.0
    %2937 = vmatpush1.msra.mxu0 0.0
    %2938 = vmatprep.subr.mxu0 0.0
    %2939 = vmatpush1.msra.mxu0 0.0
    %2940 = vmatprep.subr.mxu0 0.0
    %2941 = vmatpush1.msra.mxu0 0.0
    %2942 = vmatprep.subr.mxu0 0.0
    %2943 = vmatpush1.msra.mxu0 0.0
    %2944 = vmatprep.mubr.f32.mxu0 %v2878
    %2945 = vmatmul.mubr.f32.gmra.mrb[0].mxu0 %v2867
    %v2946 = vpop.f32.mrb[0].mxu0
    %v2947 = vadd.f32 0.0, %v2946
    %v2948 = vpop.f32.mrb[0].mxu0
    %v2949 = vadd.f32 0.0, %v2948
    %2950 = vdwg.mxu0
    %v2951 = vmul.f32 %v2947, 0.010416667
    %v2952 = vmul.f32 %v2949, 0.010416667
    %v2953 = vlaneseq
    %v2954 = vshrl.u32 %v2953, 7
    %v2955 = vsub.s32 0, %v2954
    %v2956 = vrot.slane %v2951, %v2955
    %v2957 = vlaneseq
    %v2958 = vshrl.u32 %v2957, 7
    %v2959 = vsub.s32 0, %v2958
    %v2960 = vrot.slane %v2952, %v2959
    %v2961 = vsub.f32 %v2803, %v2956
    %v2962 = vsub.f32 %v2805, %v2960
    %v2963 = vsub.f32 %v2809, %v2956
    %v2964 = vsub.f32 %v2811, %v2960
    %v2965 = vmul.f32 %v2961, %v2961
    %v2966 = vmul.f32 %v2962, %v2962
    %v2967 = vmul.f32 %v2963, %v2963
    %v2968 = vmul.f32 %v2964, %v2964
    %v2969 = vadd.f32 %v2965, %v2967
    %v2970 = vrot.slane %v2969, 4
    %v2971 = vadd.f32 %v2969, %v2970
    %v2972 = vrot.slane %v2971, 2
    %v2973 = vadd.f32 %v2971, %v2972
    %v2974 = vrot.slane %v2973, 1
    %v2975 = vadd.f32 %v2973, %v2974
    %v2976 = vsel %vm255, %v2966, 0.0
    %v2977 = vsel %vm255, %v2968, 0.0
    %v2978 = vadd.f32 %v2976, %v2977
    %v2979 = vrot.slane %v2978, 4
    %v2980 = vadd.f32 %v2978, %v2979
    %v2981 = vrot.slane %v2980, 2
    %v2982 = vadd.f32 %v2980, %v2981
    %v2983 = vrot.slane %v2982, 1
    %v2984 = vadd.f32 %v2982, %v2983
    %v2986 = vsel %vm255, %v2984, 0
    %2988 = vmatprep.subr.mxu0 %v2814
    %2989 = vmatpush1.msra.mxu0 %v2813
    %2990 = vmatprep.subr.mxu0 %v2816
    %2991 = vmatpush1.msra.mxu0 %v2815
    %2992 = vmatprep.subr.mxu0 %v2818
    %2993 = vmatpush1.msra.mxu0 %v2817
    %2994 = vmatprep.subr.mxu0 %v2820
    %2995 = vmatpush1.msra.mxu0 %v2819
    %2996 = vmatprep.subr.mxu0 %v2822
    %2997 = vmatpush1.msra.mxu0 %v2821
    %2998 = vmatprep.subr.mxu0 %v2824
    %2999 = vmatpush1.msra.mxu0 %v2823
    %3000 = vmatprep.subr.mxu0 %v2826
    %3001 = vmatpush1.msra.mxu0 %v2825
    %3002 = vmatprep.subr.mxu0 %v2828
    %3003 = vmatpush1.msra.mxu0 %v2827
    %3004 = vmatprep.subr.mxu0 %v2830
    %3005 = vmatpush1.msra.mxu0 %v2829
    %3006 = vmatprep.subr.mxu0 %v2832
    %3007 = vmatpush1.msra.mxu0 %v2831
    %3008 = vmatprep.subr.mxu0 %v2834
    %3009 = vmatpush1.msra.mxu0 %v2833
    %3010 = vmatprep.subr.mxu0 %v2836
    %3011 = vmatpush1.msra.mxu0 %v2835
    %3012 = vmatprep.subr.mxu0 %v2838
    %3013 = vmatpush1.msra.mxu0 %v2837
    %3014 = vmatprep.subr.mxu0 %v2840
    %3015 = vmatpush1.msra.mxu0 %v2839
    %3016 = vmatprep.subr.mxu0 %v2842
    %3017 = vmatpush1.msra.mxu0 %v2841
    %3018 = vmatprep.subr.mxu0 %v2844
    %3019 = vmatpush1.msra.mxu0 %v2843
    %3020 = vmatprep.subr.mxu0 %v2846
    %3021 = vmatpush1.msra.mxu0 %v2845
    %3022 = vmatprep.subr.mxu0 %v2848
    %3023 = vmatpush1.msra.mxu0 %v2847
    %3024 = vmatprep.subr.mxu0 %v2850
    %3025 = vmatpush1.msra.mxu0 %v2849
    %3026 = vmatprep.subr.mxu0 %v2852
    %3027 = vmatpush1.msra.mxu0 %v2851
    %3028 = vmatprep.subr.mxu0 %v2854
    %3029 = vmatpush1.msra.mxu0 %v2853
    %3030 = vmatprep.subr.mxu0 %v2856
    %3031 = vmatpush1.msra.mxu0 %v2855
    %3032 = vmatprep.subr.mxu0 %v2858
    %3033 = vmatpush1.msra.mxu0 %v2857
    %3034 = vmatprep.subr.mxu0 %v2860
    %3035 = vmatpush1.msra.mxu0 %v2859
    %3036 = vmatprep.subr.mxu0 0.0
    %3037 = vmatpush1.msra.mxu0 0.0
    %3038 = vmatprep.subr.mxu0 0.0
    %3039 = vmatpush1.msra.mxu0 0.0
    %3040 = vmatprep.subr.mxu0 0.0
    %3041 = vmatpush1.msra.mxu0 0.0
    %3042 = vmatprep.subr.mxu0 0.0
    %3043 = vmatpush1.msra.mxu0 0.0
    %3044 = vmatprep.subr.mxu0 0.0
    %3045 = vmatpush1.msra.mxu0 0.0
    %3046 = vmatprep.subr.mxu0 0.0
    %3047 = vmatpush1.msra.mxu0 0.0
    %3048 = vmatprep.subr.mxu0 0.0
    %3049 = vmatpush1.msra.mxu0 0.0
    %3050 = vmatprep.subr.mxu0 0.0
    %3051 = vmatpush1.msra.mxu0 0.0
    %3052 = vmatprep.mubr.f32.mxu0 %v2986
    %3053 = vmatmul.mubr.f32.gmra.mrb[0].mxu0 %v2975
    %v3054 = vpop.f32.mrb[0].mxu0
    %v3055 = vadd.f32 0.0, %v3054
    %v3056 = vpop.f32.mrb[0].mxu0
    %v3057 = vadd.f32 0.0, %v3056
    %3058 = vdwg.mxu0
    %v3059 = vmul.f32 %v3055, 0.010416667
    %v3060 = vmul.f32 %v3057, 0.010416667
    %v3061 = vadd.f32 %v3059, 1e-05
    %v3062 = vadd.f32 %v3060, 1e-05
    %v3063 = vrsqrt.pop %v3061
    %v3064 = vrsqrt.pop %v3062
    %v3067 = vcombine.low %v3063, %v3064
    %v3068 = vrot.slane %v3067, 6
    %v3070 = vmul.f32 %v1501, %v3068
    %v3072 = vlaneseq
    %v3073 = vshrl.u32 %v3072, 7
    %v3074 = vsub.s32 2, %v3073
    %v3075 = vrot.slane %v3070, %v3074
    %v3076 = vlaneseq
    %v3077 = vshrl.u32 %v3076, 7
    %v3078 = vsub.s32 6, %v3077
    %v3079 = vrot.slane %v3070, %v3078
    %v3082 = vlaneseq
    %v3083 = vshrl.u32 %v3082, 7
    %v3084 = vsub.s32 2, %v3083
    %v3085 = vrot.slane %v3075, %v3084
    %v3086 = vlaneseq
    %v3087 = vshrl.u32 %v3086, 7
    %v3088 = vsub.s32 2, %v3087
    %v3089 = vrot.slane %v3079, %v3088
    %v3090 = vmul.f32 %v2961, %v3085
    %v3091 = vmul.f32 %v2962, %v3089
    %v3092 = vmul.f32 %v2963, %v3085
    %v3093 = vmul.f32 %v2964, %v3089
    %v3094 = vlaneseq
    %v3095 = vshrl.u32 %v3094, 7
    %v3096 = vsub.s32 3, %v3095
    %v3097 = vrot.slane %v1501, %v3096
    %v3098 = vlaneseq
    %v3099 = vshrl.u32 %v3098, 7
    %v3100 = vsub.s32 7, %v3099
    %v3101 = vrot.slane %v1501, %v3100
    %v3104 = vlaneseq
    %v3105 = vshrl.u32 %v3104, 7
    %v3106 = vsub.s32 3, %v3105
    %v3107 = vrot.slane %v3097, %v3106
    %v3108 = vlaneseq
    %v3109 = vshrl.u32 %v3108, 7
    %v3110 = vsub.s32 3, %v3109
    %v3111 = vrot.slane %v3101, %v3110
    %v3112 = vadd.f32 %v3090, %v3107
    %v3113 = vadd.f32 %v3091, %v3111
    %v3114 = vadd.f32 %v3092, %v3107
    %v3115 = vadd.f32 %v3093, %v3111
    %v3116 = vmax.f32 %v3112, 0.0
    %v3117 = vmax.f32 %v3113, 0.0
    %v3118 = vmax.f32 %v3114, 0.0
    %v3119 = vmax.f32 %v3115, 0.0
    %3120 = vst [vmem:[#allocation2] sm:$0xff] %v3116
    %3121 = vst.msk [vmem:[#allocation2 + $0x8] sm:$0xff] %vm255, %v3117
    %3122 = vst [vmem:[#allocation2 + $0x10] sm:$0xff] %v3118
    %3123 = vst.msk [vmem:[#allocation2 + $0x18] sm:$0xff] %vm255, %v3119
    // Predicated region
    $region54: #{stgcn_encoder.1} parent=1 // pred_check
      _
    $region55: #{stgcn_encoder.1} parent=1 // pred_check_branch
      %3125 = sbr.rel (0) target = $region57
    $region56: #{stgcn_encoder.1} parent=1 // pred_region
      %s3127 = ssub.s32 512, 512
      %3128 = vsyncadd [#allocation3], %s3127
      %s3129 = sshll.u32 [#allocation2], 4
      %s3130 = int_to_ptr.vmem [resolvable:$true] %s3129
      %3135 = dma.vmem_to_hbm [thread:$0]  %s3130, 512, %s13, [#allocation3], 256, 256, 16
    $region57: #{stgcn_encoder.1} parent=1 // pred_fallthru
      _
    // Predicated region
    $region58: #{stgcn_encoder.1} parent=1 // pred_check
      _
    $region59: #{stgcn_encoder.1} parent=1 // pred_check_branch
      %3137 = sbr.rel (0) target = $region61
    $region60: #{stgcn_encoder.1} parent=1 // pred_region
      %3138 = dma.done [#allocation3], 512
    $region61: #{stgcn_encoder.1} parent=1 // pred_fallthru
      _
    %3139 = vsyncpa [#allocation3], 1

</llo_original>
